<compile_context>
chip_gen: v5e
topology: v5e:2x2
jax: 0.10.0
libtpu: 0.0.40
codegen_flags: <defaults>
</compile_context>

<pallas_src>
from functools import partial

import jax
import jax.numpy as jnp
from jax.experimental import pallas as pl
from jax.experimental.pallas import tpu as pltpu


# ------------------------------------------------------------------
# Pallas kernel: fused MHSA for a block of Bt windows
# ------------------------------------------------------------------
def _attention_kernel(x_ref, wqkv_ref, bqkv_ref, wp_ref, bp_ref, rpb_ref,
                      *rest, num_heads, has_mask, wide_out, mxu_dtype):
    if has_mask:
        mask_ref, o_ref, oacc_ref = rest
    else:
        o_ref, oacc_ref = rest
        mask_ref = None

    Bt, Np, C = x_ref.shape
    d = C // num_heads
    M = Bt * Np

    # (Bt, Np, C) -> (Bt*Np, C): leading-dim merge only (Np % 8 == 0, so this
    # is relayout-free).  x is already in the MXU operand dtype (host cast).
    xm = x_ref[...].reshape(M, C)

    # One fused, lane-dense QKV projection: (M, C) @ (C, 3C), f32 accumulate.
    # The q scale is folded into the first C columns / bias entries host-side.
    qkv = jnp.dot(xm, wqkv_ref[...],
                  preferred_element_type=jnp.float32) + bqkv_ref[...]

    mask = mask_ref[...] if has_mask else None              # (Bt, Np, Np) f32

    # Static loop over heads: the lane offsets of the qkv split and of the
    # o scatter below must be static.  With the fused projections the
    # per-head live set is only the (Bt, Np, Np) score tile.
    for h in range(num_heads):
        q3 = qkv[:, h * d:(h + 1) * d].reshape(Bt, Np, d).astype(mxu_dtype)
        k3 = qkv[:, C + h * d:C + (h + 1) * d].reshape(Bt, Np, d).astype(mxu_dtype)
        v3 = qkv[:, 2 * C + h * d:2 * C + (h + 1) * d].reshape(Bt, Np, d).astype(mxu_dtype)

        # scores for all Bt windows of this head at once (batched matmul)
        s = jnp.einsum("bnd,bmd->bnm", q3, k3,
                       preferred_element_type=jnp.float32)   # (Bt, Np, Np)
        s = s + rpb_ref[h][None]
        if has_mask:
            s = s + mask

        # softmax: EUP exp + approx reciprocal; element-wise math stays f32.
        # TODO(synk): with N < 128 the score lane dim is partially masked;
        # packing several windows' key blocks into lanes (segmented row-sum)
        # would raise EUP/VPU occupancy further.
        s = s - jnp.max(s, axis=-1, keepdims=True)
        p = jnp.exp(s)
        p = p * pl.reciprocal(jnp.sum(p, axis=-1, keepdims=True), approx=True)

        o = jnp.einsum("bnm,bmd->bnd", p.astype(mxu_dtype), v3,
                       preferred_element_type=jnp.float32)   # (Bt, Np, d)
        # Scatter this head's output into its lane slot of the (M, C) scratch.
        oacc_ref[:, h * d:(h + 1) * d] = o.reshape(M, d)

    # Single lane-dense output projection: (M, C) @ (C, C) + b.
    y = jnp.dot(oacc_ref[...].astype(mxu_dtype), wp_ref[...],
                preferred_element_type=jnp.float32) + bp_ref[...]

    if wide_out:            # C < 128: present a lane-dense (Bt, Np*C) slab
        o_ref[...] = y.reshape(Bt, Np * C).astype(o_ref.dtype)
    else:
        o_ref[...] = y.reshape(Bt, Np, C).astype(o_ref.dtype)


# ------------------------------------------------------------------
# DynamicPosBias (tiny MLP) + relative position bias table (JAX glue)
# ------------------------------------------------------------------
def _layer_norm(x, g, b, eps=1e-5):
    mu = jnp.mean(x, axis=-1, keepdims=True)
    var = jnp.var(x, axis=-1, keepdims=True)
    return (x - mu) / jnp.sqrt(var + eps) * g + b


def _relative_position_bias(params, H, W, num_heads):
    pbh = jnp.arange(1 - H, H)
    pbw = jnp.arange(1 - W, W)
    biases = jnp.stack(jnp.meshgrid(pbh, pbw, indexing="ij"))     # (2, 2H-1, 2W-1)
    biases = biases.reshape(2, -1).T.astype(jnp.float32)          # (L, 2)

    coords = jnp.stack(jnp.meshgrid(jnp.arange(H), jnp.arange(W), indexing="ij"))
    coords_flat = coords.reshape(2, -1)                           # (2, N)
    rel = coords_flat[:, :, None] - coords_flat[:, None, :]       # (2, N, N)
    rel = rel.transpose(1, 2, 0)                                  # (N, N, 2)
    rel = rel.at[:, :, 0].add(H - 1)
    rel = rel.at[:, :, 1].add(W - 1)
    rel = rel.at[:, :, 0].multiply(2 * W - 1)
    rel_idx = rel.sum(-1)                                         # (N, N)

    h = biases @ params["pos_proj_w"] + params["pos_proj_b"]
    h = jax.nn.relu(_layer_norm(h, params["ln1_g"], params["ln1_b"]))
    h = h @ params["pos1_w"] + params["pos1_b"]
    h = jax.nn.relu(_layer_norm(h, params["ln2_g"], params["ln2_b"]))
    h = h @ params["pos2_w"] + params["pos2_b"]
    h = jax.nn.relu(_layer_norm(h, params["ln3_g"], params["ln3_b"]))
    pos = h @ params["pos3_w"] + params["pos3_b"]                 # (L, num_heads)

    N = H * W
    rpb = pos[rel_idx.reshape(-1)].reshape(N, N, num_heads)
    return rpb.transpose(2, 0, 1)                                 # (num_heads, N, N)


# ------------------------------------------------------------------
# Block-size (windows per grid step) selection, VMEM-model aware
# ------------------------------------------------------------------
def _vmem_budget_bytes():
    try:
        cap = int(pltpu.get_tpu_info().vmem_capacity_bytes)
    except Exception:
        cap = 64 * 1024 * 1024            # conservative default (v7x per-TC)
    return int(cap) * 3 // 4


def _step_vmem_bytes(bt, Np, C, num_heads, nP, x_bytes, w_bytes, out_bytes):
    m = bt * Np
    b = 2 * m * C * x_bytes                 # x block (double-buffered)
    b += 2 * m * C * out_bytes              # out block (double-buffered)
    if nP is not None:
        b += 2 * bt * Np * Np * 4           # mask block
    b += 4 * C * C * w_bytes + 4 * C * 4    # fused weights + biases (x1)
    b += num_heads * Np * Np * 4            # rel-pos bias (x1)
    b += m * 3 * C * 4                      # fused qkv activations (f32)
    b += 3 * bt * Np * Np * 4               # scores / probs temporaries
    b += 2 * m * C * 4                      # o scratch + y (f32)
    return b


def _choose_bt(B_, Np, C, num_heads, nP, x_bytes, w_bytes, out_bytes, budget):
    divisors = [dd for dd in range(1, B_ + 1) if B_ % dd == 0]

    def fits(bt):
        if nP is not None and not (bt % nP == 0 or nP % bt == 0):
            return False
        return _step_vmem_bytes(bt, Np, C, num_heads, nP,
                                x_bytes, w_bytes, out_bytes) <= budget

    def steps_ok(bt, level):
        n_steps = B_ // bt
        if level == 0:                      # even #steps: v7x 2-TC balance
            return n_steps >= 2 and n_steps % 2 == 0
        if level == 1:
            return n_steps >= 2
        return True

    for s_level in (0, 1, 2):
        for align in (256, 128, 1):         # 256: v6e/v7x MXU; 128: v5e
            cands = [bt for bt in divisors
                     if fits(bt) and steps_ok(bt, s_level)
                     and (bt * Np) % align == 0]
            if cands:
                return max(cands)
    return 1


# ------------------------------------------------------------------
# Wrapper
# ------------------------------------------------------------------
def attention_forward(x, params, H, W, num_heads, mask=None,
                      mxu_dtype=jnp.float32):
    B_, N, C = x.shape
    assert H * W == N and C % num_heads == 0
    d = C // num_heads
    scale = d ** (-0.5)
    out_dtype = x.dtype

    # ----- host-side weight prep: fused qkv, q-scale folded in --------------
    wqkv = params["qkv_w"].astype(jnp.float32)          # (C, 3C): [q | k | v]
    bqkv = params["qkv_b"].astype(jnp.float32)          # (3C,)
    wqkv = wqkv.at[:, :C].multiply(scale)
    bqkv = bqkv.at[:C].multiply(scale).reshape(1, 3 * C)
    wp = params["proj_w"].astype(jnp.float32)           # (C, C)
    bp = params["proj_b"].astype(jnp.float32).reshape(1, C)
    rpb = _relative_position_bias(params, H, W, num_heads).astype(jnp.float32)

    # ----- pad token count to a multiple of 8 (keeps reshapes relayout-free) -
    Np = ((N + 7) // 8) * 8
    if Np != N:
        pad = Np - N
        x = jnp.pad(x, ((0, 0), (0, pad), (0, 0)))
        rpb = jnp.pad(rpb, ((0, 0), (0, pad), (0, pad)))
        rpb = rpb.at[:, :, N:].set(-1e9)                 # mask padded keys
        if mask is not None:
            mask = jnp.pad(mask, ((0, 0), (0, pad), (0, pad)))

    # ----- bf16 MXU path: cast x/weights host-side (halves HBM traffic) ------
    if mxu_dtype == jnp.bfloat16:
        x = x.astype(jnp.bfloat16)
        wqkv = wqkv.astype(jnp.bfloat16)
        wp = wp.astype(jnp.bfloat16)
    x_bytes = x.dtype.itemsize
    w_bytes = wqkv.dtype.itemsize
    out_bytes = out_dtype.itemsize

    # ----- window-block (Bt) selection & VMEM budget --------------------------
    nP = None if mask is None else int(mask.shape[0])
    budget = _vmem_budget_bytes()
    Bt = _choose_bt(B_, Np, C, num_heads, nP, x_bytes, w_bytes, out_bytes, budget)
    grid = (B_ // Bt,)
    has_mask = mask is not None

    # lane-dense output only when it obeys the (8, 128) block constraint
    wide_pref = (C < 128) and (Bt % 8 == 0 or Bt == B_)

    period = 1
    mask_mode = None
    mask_arr = None
    if has_mask:
        mask_f = mask.astype(jnp.float32)
        if Bt % nP == 0:    # every block sees the same slab -> constant map
            mask_arr = jnp.tile(mask_f, (Bt // nP, 1, 1))
            mask_mode = "constant"
        else:               # nP % Bt == 0 (guaranteed by _choose_bt)
            assert nP % Bt == 0
            mask_arr = mask_f
            mask_mode = "periodic"
            period = nP // Bt

    # ----- advisory cost estimate ---------------------------------------------
    Mtot = B_ * Np
    cost = pl.CostEstimate(
        flops=8 * Mtot * C * C + 4 * B_ * Np * Np * C,
        transcendentals=B_ * num_heads * Np * Np,
        bytes_accessed=(Mtot * C * (x_bytes + out_bytes)
                        + 4 * C * C * w_bytes
                        + num_heads * Np * Np * 4
                        + (nP or 0) * Np * Np * 4))

    def build_specs(buffered, wide):
        def inv(shape):                     # grid-invariant input
            nd = len(shape)
            idx = lambda g, _nd=nd: (0,) * _nd
            if buffered:
                return pl.BlockSpec(shape, idx, pipeline_mode=pl.Buffered(1))
            return pl.BlockSpec(shape, idx)

        in_specs = [
            pl.BlockSpec((Bt, Np, C), lambda g: (g, 0, 0)),   # x
            inv((C, 3 * C)),                                   # fused qkv W
            inv((1, 3 * C)),                                   # fused qkv b
            inv((C, C)),                                       # proj W
            inv((1, C)),                                       # proj b
            inv((num_heads, Np, Np)),                          # rel-pos bias
        ]
        args = [x, wqkv, bqkv, wp, bp, rpb]
        if has_mask:
            if mask_mode == "constant":
                in_specs.append(inv((Bt, Np, Np)))
            else:
                in_specs.append(
                    pl.BlockSpec((Bt, Np, Np), lambda g: (g % period, 0, 0)))
            args.append(mask_arr)

        if wide:
            out_spec = pl.BlockSpec((Bt, Np * C), lambda g: (g, 0))
            out_shape = jax.ShapeDtypeStruct((B_, Np * C), out_dtype)
        else:
            out_spec = pl.BlockSpec((Bt, Np, C), lambda g: (g, 0, 0))
            out_shape = jax.ShapeDtypeStruct((B_, Np, C), out_dtype)
        return in_specs, args, out_spec, out_shape

    def run(buffered, wide):
        in_specs, args, out_spec, out_shape = build_specs(buffered, wide)
        kernel = partial(_attention_kernel, num_heads=num_heads,
                         has_mask=has_mask, wide_out=wide, mxu_dtype=mxu_dtype)
        out = pl.pallas_call(
            kernel,
            out_shape=out_shape,
            grid=grid,
            in_specs=in_specs,
            out_specs=out_spec,
            scratch_shapes=[pltpu.VMEM((Bt * Np, C), jnp.float32)],
            compiler_params=pltpu.CompilerParams(
                dimension_semantics=("parallel",),
                vmem_limit_bytes=int(min(budget, 100 * 1024 * 1024))),
            cost_estimate=cost,
        )(*args)
        return out.reshape(B_, Np, C) if wide else out

    # Preferred config first; fall back if this Pallas build rejects
    # pl.Buffered(1) single-buffering or the lane-dense output relayout.
    attempts, seen = [], set()
    for cfg in ((True, wide_pref), (False, wide_pref), (False, False)):
        if cfg not in seen:
            seen.add(cfg)
            attempts.append(cfg)
    out, err = None, None
    for buffered, wide in attempts:
        try:
            out = run(buffered, wide)
            break
        except Exception as e:
            err = e
    if out is None:
        raise err

    if Np != N:
        out = out[:, :N, :]
    return out


# ------------------------------------------------------------------
# Pure-JAX reference (mirrors PyTorch forward) for validation
# ------------------------------------------------------------------
def attention_reference(x, params, H, W, num_heads, mask=None):
    B_, N, C = x.shape
    d = C // num_heads
    scale = d ** (-0.5)

    qkv = x @ params["qkv_w"] + params["qkv_b"]
    qkv = qkv.reshape(B_, N, 3, num_heads, d).transpose(2, 0, 3, 1, 4)
    q, k, v = qkv[0] * scale, qkv[1], qkv[2]
    attn = jnp.einsum("bhnd,bhmd->bhnm", q, k)

    rpb = _relative_position_bias(params, H, W, num_heads)
    attn = attn + rpb[None]

    if mask is not None:
        nP = mask.shape[0]
        attn = attn.reshape(B_ // nP, nP, num_heads, N, N) + mask[None, :, None]
        attn = attn.reshape(B_, num_heads, N, N)

    attn = jax.nn.softmax(attn, axis=-1)
    out = jnp.einsum("bhnm,bhmd->bhnd", attn, v)
    out = out.transpose(0, 2, 1, 3).reshape(B_, N, C)
    return out @ params["proj_w"] + params["proj_b"]


# ------------------------------------------------------------------
# Deterministic parameter initialization
# ------------------------------------------------------------------
def init_params(key, dim, num_heads):
    pos_dim = (dim // 4) // 4            # DynamicPosBias(dim // 4).pos_dim
    keys = jax.random.split(key, 10)

    def lin(k, fan_in, fan_out):
        return jax.random.normal(k, (fan_in, fan_out), jnp.float32) * 0.02

    return {
        "qkv_w": lin(keys[0], dim, 3 * dim),
        "qkv_b": jax.random.normal(keys[1], (3 * dim,), jnp.float32) * 0.02,
        "proj_w": lin(keys[2], dim, dim),
        "proj_b": jax.random.normal(keys[3], (dim,), jnp.float32) * 0.02,
        "pos_proj_w": lin(keys[4], 2, pos_dim),
        "pos_proj_b": jnp.zeros((pos_dim,), jnp.float32),
        "ln1_g": jnp.ones((pos_dim,), jnp.float32),
        "ln1_b": jnp.zeros((pos_dim,), jnp.float32),
        "pos1_w": lin(keys[5], pos_dim, pos_dim),
        "pos1_b": jnp.zeros((pos_dim,), jnp.float32),
        "ln2_g": jnp.ones((pos_dim,), jnp.float32),
        "ln2_b": jnp.zeros((pos_dim,), jnp.float32),
        "pos2_w": lin(keys[6], pos_dim, pos_dim),
        "pos2_b": jnp.zeros((pos_dim,), jnp.float32),
        "ln3_g": jnp.ones((pos_dim,), jnp.float32),
        "ln3_b": jnp.zeros((pos_dim,), jnp.float32),
        "pos3_w": lin(keys[7], pos_dim, num_heads),
        "pos3_b": jnp.zeros((num_heads,), jnp.float32),
    }


if __name__ == "__main__":
    key = jax.random.PRNGKey(0)
    kx, kp, km, kx2, kp2 = jax.random.split(key, 5)

    # --- config 1: 16 windows of 4x4 tokens, C=32, 4 heads; f32, no mask ----
    # Bt=8 (Bt*N = 128, 2 even grid steps), lane-dense (Bt, N*C=512) output.
    B_, Hs, Ws, C, num_heads = 16, 4, 4, 32, 4
    N = Hs * Ws
    x = jax.random.normal(kx, (B_, N, C), jnp.float32)
    params = init_params(kp, C, num_heads)

    out = attention_forward(x, params, Hs, Ws, num_heads, mask=None,
                            mxu_dtype=jnp.float32)
    out = jax.block_until_ready(out)
    ref = attention_reference(x, params, Hs, Ws, num_heads, mask=None)
    assert out.shape == (B_, N, C)
    assert jnp.allclose(out, ref, atol=2e-3, rtol=2e-3), "f32 mismatch vs reference"

    # --- config 2: bf16 MXU path with shifted-window style mask (nP windows) -
    nP = 4
    base = jnp.where(jax.random.bernoulli(km, 0.5, (nP, N, N)), 0.0, -100.0)
    mask = jnp.where(jnp.eye(N, dtype=bool)[None], 0.0, base).astype(jnp.float32)
    out_m = attention_forward(x, params, Hs, Ws, num_heads, mask=mask,
                              mxu_dtype=jnp.bfloat16)
    out_m = jax.block_until_ready(out_m)
    ref_m = attention_reference(x, params, Hs, Ws, num_heads, mask=mask)
    assert jnp.allclose(out_m, ref_m, atol=3e-2, rtol=3e-2), "bf16 mismatch vs reference"

    # --- config 3: 7x7 windows (N=49, padded to 56 inside the wrapper) ------
    B2, H2, W2, C2, nh2 = 8, 7, 7, 32, 4
    N2 = H2 * W2
    x2 = jax.random.normal(kx2, (B2, N2, C2), jnp.float32)
    params2 = init_params(kp2, C2, nh2)
    out2 = attention_forward(x2, params2, H2, W2, nh2, mask=None,
                             mxu_dtype=jnp.float32)
    out2 = jax.block_until_ready(out2)
    ref2 = attention_reference(x2, params2, H2, W2, nh2, mask=None)
    assert out2.shape == (B2, N2, C2)
    assert jnp.allclose(out2, ref2, atol=2e-3, rtol=2e-3), "padded-N mismatch vs reference"

    # NOTE: attn_drop / proj_drop have p=0.0 -> identity (eval mode), omitted.
    print("KERNEL_OK")
</pallas_src>

<mosaic_0001>
module attributes {stable_mosaic.version = 11 : i64} {
  func.func @_attention_kernel(%arg0: i32, %arg1: memref<8x16x32xf32, #tpu.memory_space<vmem>>, %arg2: memref<32x96xf32, #tpu.memory_space<vmem>>, %arg3: memref<1x96xf32, #tpu.memory_space<vmem>>, %arg4: memref<32x32xf32, #tpu.memory_space<vmem>>, %arg5: memref<1x32xf32, #tpu.memory_space<vmem>>, %arg6: memref<4x16x16xf32, #tpu.memory_space<vmem>>, %arg7: memref<8x512xf32, #tpu.memory_space<vmem>>, %arg8: memref<128x32xf32, #tpu.memory_space<vmem>>) attributes {dimension_semantics = [#tpu.dimension_semantics<parallel>], iteration_bounds = array<i64: 2>, scalar_prefetch = 0 : i64, scratch_operands = 1 : i64, tpu.core_type = #tpu.core_type<tc>, window_params = [{transform_indices = @transform_0, window_bounds = array<i64: 8, 16, 32>}, {pipeline_mode = #tpu.pipeline_mode<synchronous>, transform_indices = @transform_1, window_bounds = array<i64: 32, 96>}, {pipeline_mode = #tpu.pipeline_mode<synchronous>, transform_indices = @transform_2, window_bounds = array<i64: 1, 96>}, {pipeline_mode = #tpu.pipeline_mode<synchronous>, transform_indices = @transform_3, window_bounds = array<i64: 32, 32>}, {pipeline_mode = #tpu.pipeline_mode<synchronous>, transform_indices = @transform_4, window_bounds = array<i64: 1, 32>}, {pipeline_mode = #tpu.pipeline_mode<synchronous>, transform_indices = @transform_5, window_bounds = array<i64: 4, 16, 16>}, {transform_indices = @transform_6, window_bounds = array<i64: 8, 512>}]} {
    %c0 = arith.constant 0 : index
    %c0_0 = arith.constant 0 : index
    %c0_1 = arith.constant 0 : index
    %0 = vector.load %arg1[%c0, %c0_0, %c0_1] : memref<8x16x32xf32, #tpu.memory_space<vmem>>, vector<8x16x32xf32>
    %1 = vector.shape_cast %0 : vector<8x16x32xf32> to vector<128x32xf32>
    %c0_2 = arith.constant 0 : index
    %c0_3 = arith.constant 0 : index
    %2 = vector.load %arg2[%c0_2, %c0_3] : memref<32x96xf32, #tpu.memory_space<vmem>>, vector<32x96xf32>
    %cst = arith.constant dense<0.000000e+00> : vector<128x96xf32>
    %3 = tpu.matmul %1, %2, %cst {dimension_numbers = #tpu.dot_dimension_numbers<[1], [0], [0], [1], [0, 0, 1, 1], [], []>} : vector<128x32xf32>, vector<32x96xf32>, vector<128x96xf32> -> vector<128x96xf32>
    %c0_4 = arith.constant 0 : index
    %c0_5 = arith.constant 0 : index
    %4 = vector.load %arg3[%c0_4, %c0_5] : memref<1x96xf32, #tpu.memory_space<vmem>>, vector<1x96xf32>
    %5 = vector.broadcast %4 : vector<1x96xf32> to vector<128x96xf32>
    %6 = arith.addf %3, %5 : vector<128x96xf32>
    %7 = vector.extract_strided_slice %6 {offsets = [0, 0], sizes = [128, 8], strides = [1, 1]} : vector<128x96xf32> to vector<128x8xf32>
    %8 = vector.shape_cast %7 : vector<128x8xf32> to vector<8x16x8xf32>
    %9 = vector.extract_strided_slice %6 {offsets = [0, 32], sizes = [128, 8], strides = [1, 1]} : vector<128x96xf32> to vector<128x8xf32>
    %10 = vector.shape_cast %9 : vector<128x8xf32> to vector<8x16x8xf32>
    %11 = vector.extract_strided_slice %6 {offsets = [0, 64], sizes = [128, 8], strides = [1, 1]} : vector<128x96xf32> to vector<128x8xf32>
    %12 = vector.shape_cast %11 : vector<128x8xf32> to vector<8x16x8xf32>
    "tpu.trace_start"() <{level = 10 : i32, message = "bnd,bmd->bnm"}> : () -> ()
    %cst_6 = arith.constant dense<0.000000e+00> : vector<8x16x16xf32>
    %13 = tpu.matmul %8, %10, %cst_6 {dimension_numbers = #tpu.dot_dimension_numbers<[2], [2], [1], [1], [0, 0, 0, 1, 1, 1], [0], [0]>} : vector<8x16x8xf32>, vector<8x16x8xf32>, vector<8x16x16xf32> -> vector<8x16x16xf32>
    "tpu.trace_stop"() : () -> ()
    %c0_7 = arith.constant 0 : index
    %c0_8 = arith.constant 0 : index
    %c0_9 = arith.constant 0 : index
    %14 = vector.load %arg6[%c0_7, %c0_8, %c0_9] : memref<4x16x16xf32, #tpu.memory_space<vmem>>, vector<1x16x16xf32>
    %15 = vector.shape_cast %14 : vector<1x16x16xf32> to vector<16x16xf32>
    %16 = vector.shape_cast %15 : vector<16x16xf32> to vector<1x16x16xf32>
    %17 = vector.broadcast %16 : vector<1x16x16xf32> to vector<8x16x16xf32>
    %18 = arith.addf %13, %17 : vector<8x16x16xf32>
    %cst_10 = arith.constant dense<0xFF800000> : vector<8x16xf32>
    %19 = vector.multi_reduction <maximumf>, %18, %cst_10 [2] : vector<8x16x16xf32> to vector<8x16xf32>
    %20 = vector.shape_cast %19 : vector<8x16xf32> to vector<8x16x1xf32>
    %21 = vector.broadcast %20 : vector<8x16x1xf32> to vector<8x16x16xf32>
    %22 = arith.subf %18, %21 : vector<8x16x16xf32>
    %23 = math.exp %22 : vector<8x16x16xf32>
    %cst_11 = arith.constant dense<0.000000e+00> : vector<8x16xf32>
    %24 = vector.multi_reduction <add>, %23, %cst_11 [2] : vector<8x16x16xf32> to vector<8x16xf32>
    %25 = vector.shape_cast %24 : vector<8x16xf32> to vector<8x16x1xf32>
    %26 = tpu.reciprocal %25 {approx = true} : vector<8x16x1xf32> -> vector<8x16x1xf32>
    %27 = vector.broadcast %26 : vector<8x16x1xf32> to vector<8x16x16xf32>
    %28 = arith.mulf %23, %27 : vector<8x16x16xf32>
    "tpu.trace_start"() <{level = 10 : i32, message = "bnm,bmd->bnd"}> : () -> ()
    %cst_12 = arith.constant dense<0.000000e+00> : vector<8x16x8xf32>
    %29 = tpu.matmul %28, %12, %cst_12 {dimension_numbers = #tpu.dot_dimension_numbers<[2], [1], [1], [2], [0, 0, 0, 1, 1, 2], [0], [0]>} : vector<8x16x16xf32>, vector<8x16x8xf32>, vector<8x16x8xf32> -> vector<8x16x8xf32>
    "tpu.trace_stop"() : () -> ()
    %30 = vector.shape_cast %29 : vector<8x16x8xf32> to vector<128x8xf32>
    %c0_13 = arith.constant 0 : index
    %c0_14 = arith.constant 0 : index
    %31 = vector.load %arg8[%c0_13, %c0_14] : memref<128x32xf32, #tpu.memory_space<vmem>>, vector<128x8xf32>
    tpu.vector_store %arg8[%c0_13, %c0_14], %30 {strides = array<i32>} : memref<128x32xf32, #tpu.memory_space<vmem>>, vector<128x8xf32>,
    %32 = vector.extract_strided_slice %6 {offsets = [0, 8], sizes = [128, 8], strides = [1, 1]} : vector<128x96xf32> to vector<128x8xf32>
    %33 = vector.shape_cast %32 : vector<128x8xf32> to vector<8x16x8xf32>
    %34 = vector.extract_strided_slice %6 {offsets = [0, 40], sizes = [128, 8], strides = [1, 1]} : vector<128x96xf32> to vector<128x8xf32>
    %35 = vector.shape_cast %34 : vector<128x8xf32> to vector<8x16x8xf32>
    %36 = vector.extract_strided_slice %6 {offsets = [0, 72], sizes = [128, 8], strides = [1, 1]} : vector<128x96xf32> to vector<128x8xf32>
    %37 = vector.shape_cast %36 : vector<128x8xf32> to vector<8x16x8xf32>
    "tpu.trace_start"() <{level = 10 : i32, message = "bnd,bmd->bnm"}> : () -> ()
    %cst_15 = arith.constant dense<0.000000e+00> : vector<8x16x16xf32>
    %38 = tpu.matmul %33, %35, %cst_15 {dimension_numbers = #tpu.dot_dimension_numbers<[2], [2], [1], [1], [0, 0, 0, 1, 1, 1], [0], [0]>} : vector<8x16x8xf32>, vector<8x16x8xf32>, vector<8x16x16xf32> -> vector<8x16x16xf32>
    "tpu.trace_stop"() : () -> ()
    %c1 = arith.constant 1 : index
    %c0_16 = arith.constant 0 : index
    %c0_17 = arith.constant 0 : index
    %39 = vector.load %arg6[%c1, %c0_16, %c0_17] : memref<4x16x16xf32, #tpu.memory_space<vmem>>, vector<1x16x16xf32>
    %40 = vector.shape_cast %39 : vector<1x16x16xf32> to vector<16x16xf32>
    %41 = vector.shape_cast %40 : vector<16x16xf32> to vector<1x16x16xf32>
    %42 = vector.broadcast %41 : vector<1x16x16xf32> to vector<8x16x16xf32>
    %43 = arith.addf %38, %42 : vector<8x16x16xf32>
    %cst_18 = arith.constant dense<0xFF800000> : vector<8x16xf32>
    %44 = vector.multi_reduction <maximumf>, %43, %cst_18 [2] : vector<8x16x16xf32> to vector<8x16xf32>
    %45 = vector.shape_cast %44 : vector<8x16xf32> to vector<8x16x1xf32>
    %46 = vector.broadcast %45 : vector<8x16x1xf32> to vector<8x16x16xf32>
    %47 = arith.subf %43, %46 : vector<8x16x16xf32>
    %48 = math.exp %47 : vector<8x16x16xf32>
    %cst_19 = arith.constant dense<0.000000e+00> : vector<8x16xf32>
    %49 = vector.multi_reduction <add>, %48, %cst_19 [2] : vector<8x16x16xf32> to vector<8x16xf32>
    %50 = vector.shape_cast %49 : vector<8x16xf32> to vector<8x16x1xf32>
    %51 = tpu.reciprocal %50 {approx = true} : vector<8x16x1xf32> -> vector<8x16x1xf32>
    %52 = vector.broadcast %51 : vector<8x16x1xf32> to vector<8x16x16xf32>
    %53 = arith.mulf %48, %52 : vector<8x16x16xf32>
    "tpu.trace_start"() <{level = 10 : i32, message = "bnm,bmd->bnd"}> : () -> ()
    %cst_20 = arith.constant dense<0.000000e+00> : vector<8x16x8xf32>
    %54 = tpu.matmul %53, %37, %cst_20 {dimension_numbers = #tpu.dot_dimension_numbers<[2], [1], [1], [2], [0, 0, 0, 1, 1, 2], [0], [0]>} : vector<8x16x16xf32>, vector<8x16x8xf32>, vector<8x16x8xf32> -> vector<8x16x8xf32>
    "tpu.trace_stop"() : () -> ()
    %55 = vector.shape_cast %54 : vector<8x16x8xf32> to vector<128x8xf32>
    %c0_21 = arith.constant 0 : index
    %c8 = arith.constant 8 : index
    %56 = vector.load %arg8[%c0_21, %c8] : memref<128x32xf32, #tpu.memory_space<vmem>>, vector<128x8xf32>
    tpu.vector_store %arg8[%c0_21, %c8], %55 {strides = array<i32>} : memref<128x32xf32, #tpu.memory_space<vmem>>, vector<128x8xf32>,
    %57 = vector.extract_strided_slice %6 {offsets = [0, 16], sizes = [128, 8], strides = [1, 1]} : vector<128x96xf32> to vector<128x8xf32>
    %58 = vector.shape_cast %57 : vector<128x8xf32> to vector<8x16x8xf32>
    %59 = vector.extract_strided_slice %6 {offsets = [0, 48], sizes = [128, 8], strides = [1, 1]} : vector<128x96xf32> to vector<128x8xf32>
    %60 = vector.shape_cast %59 : vector<128x8xf32> to vector<8x16x8xf32>
    %61 = vector.extract_strided_slice %6 {offsets = [0, 80], sizes = [128, 8], strides = [1, 1]} : vector<128x96xf32> to vector<128x8xf32>
    %62 = vector.shape_cast %61 : vector<128x8xf32> to vector<8x16x8xf32>
    "tpu.trace_start"() <{level = 10 : i32, message = "bnd,bmd->bnm"}> : () -> ()
    %cst_22 = arith.constant dense<0.000000e+00> : vector<8x16x16xf32>
    %63 = tpu.matmul %58, %60, %cst_22 {dimension_numbers = #tpu.dot_dimension_numbers<[2], [2], [1], [1], [0, 0, 0, 1, 1, 1], [0], [0]>} : vector<8x16x8xf32>, vector<8x16x8xf32>, vector<8x16x16xf32> -> vector<8x16x16xf32>
    "tpu.trace_stop"() : () -> ()
    %c2 = arith.constant 2 : index
    %c0_23 = arith.constant 0 : index
    %c0_24 = arith.constant 0 : index
    %64 = vector.load %arg6[%c2, %c0_23, %c0_24] : memref<4x16x16xf32, #tpu.memory_space<vmem>>, vector<1x16x16xf32>
    %65 = vector.shape_cast %64 : vector<1x16x16xf32> to vector<16x16xf32>
    %66 = vector.shape_cast %65 : vector<16x16xf32> to vector<1x16x16xf32>
    %67 = vector.broadcast %66 : vector<1x16x16xf32> to vector<8x16x16xf32>
    %68 = arith.addf %63, %67 : vector<8x16x16xf32>
    %cst_25 = arith.constant dense<0xFF800000> : vector<8x16xf32>
    %69 = vector.multi_reduction <maximumf>, %68, %cst_25 [2] : vector<8x16x16xf32> to vector<8x16xf32>
    %70 = vector.shape_cast %69 : vector<8x16xf32> to vector<8x16x1xf32>
    %71 = vector.broadcast %70 : vector<8x16x1xf32> to vector<8x16x16xf32>
    %72 = arith.subf %68, %71 : vector<8x16x16xf32>
    %73 = math.exp %72 : vector<8x16x16xf32>
    %cst_26 = arith.constant dense<0.000000e+00> : vector<8x16xf32>
    %74 = vector.multi_reduction <add>, %73, %cst_26 [2] : vector<8x16x16xf32> to vector<8x16xf32>
    %75 = vector.shape_cast %74 : vector<8x16xf32> to vector<8x16x1xf32>
    %76 = tpu.reciprocal %75 {approx = true} : vector<8x16x1xf32> -> vector<8x16x1xf32>
    %77 = vector.broadcast %76 : vector<8x16x1xf32> to vector<8x16x16xf32>
    %78 = arith.mulf %73, %77 : vector<8x16x16xf32>
    "tpu.trace_start"() <{level = 10 : i32, message = "bnm,bmd->bnd"}> : () -> ()
    %cst_27 = arith.constant dense<0.000000e+00> : vector<8x16x8xf32>
    %79 = tpu.matmul %78, %62, %cst_27 {dimension_numbers = #tpu.dot_dimension_numbers<[2], [1], [1], [2], [0, 0, 0, 1, 1, 2], [0], [0]>} : vector<8x16x16xf32>, vector<8x16x8xf32>, vector<8x16x8xf32> -> vector<8x16x8xf32>
    "tpu.trace_stop"() : () -> ()
    %80 = vector.shape_cast %79 : vector<8x16x8xf32> to vector<128x8xf32>
    %c0_28 = arith.constant 0 : index
    %c16 = arith.constant 16 : index
    %81 = vector.load %arg8[%c0_28, %c16] : memref<128x32xf32, #tpu.memory_space<vmem>>, vector<128x8xf32>
    tpu.vector_store %arg8[%c0_28, %c16], %80 {strides = array<i32>} : memref<128x32xf32, #tpu.memory_space<vmem>>, vector<128x8xf32>,
    %82 = vector.extract_strided_slice %6 {offsets = [0, 24], sizes = [128, 8], strides = [1, 1]} : vector<128x96xf32> to vector<128x8xf32>
    %83 = vector.shape_cast %82 : vector<128x8xf32> to vector<8x16x8xf32>
    %84 = vector.extract_strided_slice %6 {offsets = [0, 56], sizes = [128, 8], strides = [1, 1]} : vector<128x96xf32> to vector<128x8xf32>
    %85 = vector.shape_cast %84 : vector<128x8xf32> to vector<8x16x8xf32>
    %86 = vector.extract_strided_slice %6 {offsets = [0, 88], sizes = [128, 8], strides = [1, 1]} : vector<128x96xf32> to vector<128x8xf32>
    %87 = vector.shape_cast %86 : vector<128x8xf32> to vector<8x16x8xf32>
    "tpu.trace_start"() <{level = 10 : i32, message = "bnd,bmd->bnm"}> : () -> ()
    %cst_29 = arith.constant dense<0.000000e+00> : vector<8x16x16xf32>
    %88 = tpu.matmul %83, %85, %cst_29 {dimension_numbers = #tpu.dot_dimension_numbers<[2], [2], [1], [1], [0, 0, 0, 1, 1, 1], [0], [0]>} : vector<8x16x8xf32>, vector<8x16x8xf32>, vector<8x16x16xf32> -> vector<8x16x16xf32>
    "tpu.trace_stop"() : () -> ()
    %c3 = arith.constant 3 : index
    %c0_30 = arith.constant 0 : index
    %c0_31 = arith.constant 0 : index
    %89 = vector.load %arg6[%c3, %c0_30, %c0_31] : memref<4x16x16xf32, #tpu.memory_space<vmem>>, vector<1x16x16xf32>
    %90 = vector.shape_cast %89 : vector<1x16x16xf32> to vector<16x16xf32>
    %91 = vector.shape_cast %90 : vector<16x16xf32> to vector<1x16x16xf32>
    %92 = vector.broadcast %91 : vector<1x16x16xf32> to vector<8x16x16xf32>
    %93 = arith.addf %88, %92 : vector<8x16x16xf32>
    %cst_32 = arith.constant dense<0xFF800000> : vector<8x16xf32>
    %94 = vector.multi_reduction <maximumf>, %93, %cst_32 [2] : vector<8x16x16xf32> to vector<8x16xf32>
    %95 = vector.shape_cast %94 : vector<8x16xf32> to vector<8x16x1xf32>
    %96 = vector.broadcast %95 : vector<8x16x1xf32> to vector<8x16x16xf32>
    %97 = arith.subf %93, %96 : vector<8x16x16xf32>
    %98 = math.exp %97 : vector<8x16x16xf32>
    %cst_33 = arith.constant dense<0.000000e+00> : vector<8x16xf32>
    %99 = vector.multi_reduction <add>, %98, %cst_33 [2] : vector<8x16x16xf32> to vector<8x16xf32>
    %100 = vector.shape_cast %99 : vector<8x16xf32> to vector<8x16x1xf32>
    %101 = tpu.reciprocal %100 {approx = true} : vector<8x16x1xf32> -> vector<8x16x1xf32>
    %102 = vector.broadcast %101 : vector<8x16x1xf32> to vector<8x16x16xf32>
    %103 = arith.mulf %98, %102 : vector<8x16x16xf32>
    "tpu.trace_start"() <{level = 10 : i32, message = "bnm,bmd->bnd"}> : () -> ()
    %cst_34 = arith.constant dense<0.000000e+00> : vector<8x16x8xf32>
    %104 = tpu.matmul %103, %87, %cst_34 {dimension_numbers = #tpu.dot_dimension_numbers<[2], [1], [1], [2], [0, 0, 0, 1, 1, 2], [0], [0]>} : vector<8x16x16xf32>, vector<8x16x8xf32>, vector<8x16x8xf32> -> vector<8x16x8xf32>
    "tpu.trace_stop"() : () -> ()
    %105 = vector.shape_cast %104 : vector<8x16x8xf32> to vector<128x8xf32>
    %c0_35 = arith.constant 0 : index
    %c24 = arith.constant 24 : index
    %106 = vector.load %arg8[%c0_35, %c24] : memref<128x32xf32, #tpu.memory_space<vmem>>, vector<128x8xf32>
    tpu.vector_store %arg8[%c0_35, %c24], %105 {strides = array<i32>} : memref<128x32xf32, #tpu.memory_space<vmem>>, vector<128x8xf32>,
    %c0_36 = arith.constant 0 : index
    %c0_37 = arith.constant 0 : index
    %107 = vector.load %arg8[%c0_36, %c0_37] : memref<128x32xf32, #tpu.memory_space<vmem>>, vector<128x32xf32>
    %c0_38 = arith.constant 0 : index
    %c0_39 = arith.constant 0 : index
    %108 = vector.load %arg4[%c0_38, %c0_39] : memref<32x32xf32, #tpu.memory_space<vmem>>, vector<32x32xf32>
    %cst_40 = arith.constant dense<0.000000e+00> : vector<128x32xf32>
    %109 = tpu.matmul %107, %108, %cst_40 {dimension_numbers = #tpu.dot_dimension_numbers<[1], [0], [0], [1], [0, 0, 1, 1], [], []>} : vector<128x32xf32>, vector<32x32xf32>, vector<128x32xf32> -> vector<128x32xf32>
    %c0_41 = arith.constant 0 : index
    %c0_42 = arith.constant 0 : index
    %110 = vector.load %arg5[%c0_41, %c0_42] : memref<1x32xf32, #tpu.memory_space<vmem>>, vector<1x32xf32>
    %111 = vector.broadcast %110 : vector<1x32xf32> to vector<128x32xf32>
    %112 = arith.addf %109, %111 : vector<128x32xf32>
    %113 = vector.shape_cast %112 : vector<128x32xf32> to vector<8x512xf32>
    %c0_43 = arith.constant 0 : index
    %c0_44 = arith.constant 0 : index
    %114 = vector.load %arg7[%c0_43, %c0_44] : memref<8x512xf32, #tpu.memory_space<vmem>>, vector<8x512xf32>
    tpu.vector_store %arg7[%c0_43, %c0_44], %113 {strides = array<i32>} : memref<8x512xf32, #tpu.memory_space<vmem>>, vector<8x512xf32>,
    return
  }
  func.func @transform_0(%arg0: i32) -> (i32, i32, i32) {
    %c0_i32 = arith.constant 0 : i32
    %c0_i32_0 = arith.constant 0 : i32
    %c0_i32_1 = arith.constant 0 : i32
    return %arg0, %c0_i32, %c0_i32_0 : i32, i32, i32
  }
  func.func @transform_1(%arg0: i32) -> (i32, i32) {
    %c0_i32 = arith.constant 0 : i32
    %c0_i32_0 = arith.constant 0 : i32
    %c0_i32_1 = arith.constant 0 : i32
    return %c0_i32, %c0_i32_0 : i32, i32
  }
  func.func @transform_2(%arg0: i32) -> (i32, i32) {
    %c0_i32 = arith.constant 0 : i32
    %c0_i32_0 = arith.constant 0 : i32
    %c0_i32_1 = arith.constant 0 : i32
    return %c0_i32, %c0_i32_0 : i32, i32
  }
  func.func @transform_3(%arg0: i32) -> (i32, i32) {
    %c0_i32 = arith.constant 0 : i32
    %c0_i32_0 = arith.constant 0 : i32
    %c0_i32_1 = arith.constant 0 : i32
    return %c0_i32, %c0_i32_0 : i32, i32
  }
  func.func @transform_4(%arg0: i32) -> (i32, i32) {
    %c0_i32 = arith.constant 0 : i32
    %c0_i32_0 = arith.constant 0 : i32
    %c0_i32_1 = arith.constant 0 : i32
    return %c0_i32, %c0_i32_0 : i32, i32
  }
  func.func @transform_5(%arg0: i32) -> (i32, i32, i32) {
    %c0_i32 = arith.constant 0 : i32
    %c0_i32_0 = arith.constant 0 : i32
    %c0_i32_1 = arith.constant 0 : i32
    %c0_i32_2 = arith.constant 0 : i32
    return %c0_i32, %c0_i32_0, %c0_i32_1 : i32, i32, i32
  }
  func.func @transform_6(%arg0: i32) -> (i32, i32) {
    %c0_i32 = arith.constant 0 : i32
    %c0_i32_0 = arith.constant 0 : i32
    return %arg0, %c0_i32 : i32, i32
  }
}

module attributes {stable_mosaic.version = 11 : i64} {
  func.func @_attention_kernel(%arg0: i32, %arg1: memref<8x16x32xf32, #tpu.memory_space<vmem>>, %arg2: memref<32x96xf32, #tpu.memory_space<vmem>>, %arg3: memref<1x96xf32, #tpu.memory_space<vmem>>, %arg4: memref<32x32xf32, #tpu.memory_space<vmem>>, %arg5: memref<1x32xf32, #tpu.memory_space<vmem>>, %arg6: memref<4x16x16xf32, #tpu.memory_space<vmem>>, %arg7: memref<8x512xf32, #tpu.memory_space<vmem>>, %arg8: memref<128x32xf32, #tpu.memory_space<vmem>>) attributes {dimension_semantics = [#tpu.dimension_semantics<parallel>], iteration_bounds = array<i64: 2>, scalar_prefetch = 0 : i64, scratch_operands = 1 : i64, tpu.core_type = #tpu.core_type<tc>, window_params = [{transform_indices = @transform_0, window_bounds = array<i64: 8, 16, 32>}, {pipeline_mode = #tpu.pipeline_mode<synchronous>, transform_indices = @transform_1, window_bounds = array<i64: 32, 96>}, {pipeline_mode = #tpu.pipeline_mode<synchronous>, transform_indices = @transform_2, window_bounds = array<i64: 1, 96>}, {pipeline_mode = #tpu.pipeline_mode<synchronous>, transform_indices = @transform_3, window_bounds = array<i64: 32, 32>}, {pipeline_mode = #tpu.pipeline_mode<synchronous>, transform_indices = @transform_4, window_bounds = array<i64: 1, 32>}, {pipeline_mode = #tpu.pipeline_mode<synchronous>, transform_indices = @transform_5, window_bounds = array<i64: 4, 16, 16>}, {transform_indices = @transform_6, window_bounds = array<i64: 8, 512>}]} {
    %c0 = arith.constant 0 : index
    %c0_0 = arith.constant 0 : index
    %c0_1 = arith.constant 0 : index
    %0 = vector.load %arg1[%c0, %c0_0, %c0_1] : memref<8x16x32xf32, #tpu.memory_space<vmem>>, vector<8x16x32xf32>
    %1 = vector.shape_cast %0 : vector<8x16x32xf32> to vector<128x32xf32>
    %c0_2 = arith.constant 0 : index
    %c0_3 = arith.constant 0 : index
    %2 = vector.load %arg2[%c0_2, %c0_3] : memref<32x96xf32, #tpu.memory_space<vmem>>, vector<32x96xf32>
    %cst = arith.constant dense<0.000000e+00> : vector<128x96xf32>
    %3 = tpu.matmul %1, %2, %cst {dimension_numbers = #tpu.dot_dimension_numbers<[1], [0], [0], [1], [0, 0, 1, 1], [], []>} : vector<128x32xf32>, vector<32x96xf32>, vector<128x96xf32> -> vector<128x96xf32>
    %c0_4 = arith.constant 0 : index
    %c0_5 = arith.constant 0 : index
    %4 = vector.load %arg3[%c0_4, %c0_5] : memref<1x96xf32, #tpu.memory_space<vmem>>, vector<1x96xf32>
    %5 = vector.broadcast %4 : vector<1x96xf32> to vector<128x96xf32>
    %6 = arith.addf %3, %5 : vector<128x96xf32>
    %7 = vector.extract_strided_slice %6 {offsets = [0, 0], sizes = [128, 8], strides = [1, 1]} : vector<128x96xf32> to vector<128x8xf32>
    %8 = vector.shape_cast %7 : vector<128x8xf32> to vector<8x16x8xf32>
    %9 = vector.extract_strided_slice %6 {offsets = [0, 32], sizes = [128, 8], strides = [1, 1]} : vector<128x96xf32> to vector<128x8xf32>
    %10 = vector.shape_cast %9 : vector<128x8xf32> to vector<8x16x8xf32>
    %11 = vector.extract_strided_slice %6 {offsets = [0, 64], sizes = [128, 8], strides = [1, 1]} : vector<128x96xf32> to vector<128x8xf32>
    %12 = vector.shape_cast %11 : vector<128x8xf32> to vector<8x16x8xf32>
    "tpu.trace_start"() <{level = 10 : i32, message = "bnd,bmd->bnm"}> : () -> ()
    %cst_6 = arith.constant dense<0.000000e+00> : vector<8x16x16xf32>
    %13 = tpu.matmul %8, %10, %cst_6 {dimension_numbers = #tpu.dot_dimension_numbers<[2], [2], [1], [1], [0, 0, 0, 1, 1, 1], [0], [0]>} : vector<8x16x8xf32>, vector<8x16x8xf32>, vector<8x16x16xf32> -> vector<8x16x16xf32>
    "tpu.trace_stop"() : () -> ()
    %c0_7 = arith.constant 0 : index
    %c0_8 = arith.constant 0 : index
    %c0_9 = arith.constant 0 : index
    %14 = vector.load %arg6[%c0_7, %c0_8, %c0_9] : memref<4x16x16xf32, #tpu.memory_space<vmem>>, vector<1x16x16xf32>
    %15 = vector.shape_cast %14 : vector<1x16x16xf32> to vector<16x16xf32>
    %16 = vector.shape_cast %15 : vector<16x16xf32> to vector<1x16x16xf32>
    %17 = vector.broadcast %16 : vector<1x16x16xf32> to vector<8x16x16xf32>
    %18 = arith.addf %13, %17 : vector<8x16x16xf32>
    %cst_10 = arith.constant dense<0xFF800000> : vector<8x16xf32>
    %19 = vector.multi_reduction <maximumf>, %18, %cst_10 [2] : vector<8x16x16xf32> to vector<8x16xf32>
    %20 = vector.shape_cast %19 : vector<8x16xf32> to vector<8x16x1xf32>
    %21 = vector.broadcast %20 : vector<8x16x1xf32> to vector<8x16x16xf32>
    %22 = arith.subf %18, %21 : vector<8x16x16xf32>
    %23 = math.exp %22 : vector<8x16x16xf32>
    %cst_11 = arith.constant dense<0.000000e+00> : vector<8x16xf32>
    %24 = vector.multi_reduction <add>, %23, %cst_11 [2] : vector<8x16x16xf32> to vector<8x16xf32>
    %25 = vector.shape_cast %24 : vector<8x16xf32> to vector<8x16x1xf32>
    %26 = tpu.reciprocal %25 {approx = true} : vector<8x16x1xf32> -> vector<8x16x1xf32>
    %27 = vector.broadcast %26 : vector<8x16x1xf32> to vector<8x16x16xf32>
    %28 = arith.mulf %23, %27 : vector<8x16x16xf32>
    "tpu.trace_start"() <{level = 10 : i32, message = "bnm,bmd->bnd"}> : () -> ()
    %cst_12 = arith.constant dense<0.000000e+00> : vector<8x16x8xf32>
    %29 = tpu.matmul %28, %12, %cst_12 {dimension_numbers = #tpu.dot_dimension_numbers<[2], [1], [1], [2], [0, 0, 0, 1, 1, 2], [0], [0]>} : vector<8x16x16xf32>, vector<8x16x8xf32>, vector<8x16x8xf32> -> vector<8x16x8xf32>
    "tpu.trace_stop"() : () -> ()
    %30 = vector.shape_cast %29 : vector<8x16x8xf32> to vector<128x8xf32>
    %c0_13 = arith.constant 0 : index
    %c0_14 = arith.constant 0 : index
    %31 = vector.load %arg8[%c0_13, %c0_14] : memref<128x32xf32, #tpu.memory_space<vmem>>, vector<128x8xf32>
    tpu.vector_store %arg8[%c0_13, %c0_14], %30 {strides = array<i32>} : memref<128x32xf32, #tpu.memory_space<vmem>>, vector<128x8xf32>,
    %32 = vector.extract_strided_slice %6 {offsets = [0, 8], sizes = [128, 8], strides = [1, 1]} : vector<128x96xf32> to vector<128x8xf32>
    %33 = vector.shape_cast %32 : vector<128x8xf32> to vector<8x16x8xf32>
    %34 = vector.extract_strided_slice %6 {offsets = [0, 40], sizes = [128, 8], strides = [1, 1]} : vector<128x96xf32> to vector<128x8xf32>
    %35 = vector.shape_cast %34 : vector<128x8xf32> to vector<8x16x8xf32>
    %36 = vector.extract_strided_slice %6 {offsets = [0, 72], sizes = [128, 8], strides = [1, 1]} : vector<128x96xf32> to vector<128x8xf32>
    %37 = vector.shape_cast %36 : vector<128x8xf32> to vector<8x16x8xf32>
    "tpu.trace_start"() <{level = 10 : i32, message = "bnd,bmd->bnm"}> : () -> ()
    %cst_15 = arith.constant dense<0.000000e+00> : vector<8x16x16xf32>
    %38 = tpu.matmul %33, %35, %cst_15 {dimension_numbers = #tpu.dot_dimension_numbers<[2], [2], [1], [1], [0, 0, 0, 1, 1, 1], [0], [0]>} : vector<8x16x8xf32>, vector<8x16x8xf32>, vector<8x16x16xf32> -> vector<8x16x16xf32>
    "tpu.trace_stop"() : () -> ()
    %c1 = arith.constant 1 : index
    %c0_16 = arith.constant 0 : index
    %c0_17 = arith.constant 0 : index
    %39 = vector.load %arg6[%c1, %c0_16, %c0_17] : memref<4x16x16xf32, #tpu.memory_space<vmem>>, vector<1x16x16xf32>
    %40 = vector.shape_cast %39 : vector<1x16x16xf32> to vector<16x16xf32>
    %41 = vector.shape_cast %40 : vector<16x16xf32> to vector<1x16x16xf32>
    %42 = vector.broadcast %41 : vector<1x16x16xf32> to vector<8x16x16xf32>
    %43 = arith.addf %38, %42 : vector<8x16x16xf32>
    %cst_18 = arith.constant dense<0xFF800000> : vector<8x16xf32>
    %44 = vector.multi_reduction <maximumf>, %43, %cst_18 [2] : vector<8x16x16xf32> to vector<8x16xf32>
    %45 = vector.shape_cast %44 : vector<8x16xf32> to vector<8x16x1xf32>
    %46 = vector.broadcast %45 : vector<8x16x1xf32> to vector<8x16x16xf32>
    %47 = arith.subf %43, %46 : vector<8x16x16xf32>
    %48 = math.exp %47 : vector<8x16x16xf32>
    %cst_19 = arith.constant dense<0.000000e+00> : vector<8x16xf32>
    %49 = vector.multi_reduction <add>, %48, %cst_19 [2] : vector<8x16x16xf32> to vector<8x16xf32>
    %50 = vector.shape_cast %49 : vector<8x16xf32> to vector<8x16x1xf32>
    %51 = tpu.reciprocal %50 {approx = true} : vector<8x16x1xf32> -> vector<8x16x1xf32>
    %52 = vector.broadcast %51 : vector<8x16x1xf32> to vector<8x16x16xf32>
    %53 = arith.mulf %48, %52 : vector<8x16x16xf32>
    "tpu.trace_start"() <{level = 10 : i32, message = "bnm,bmd->bnd"}> : () -> ()
    %cst_20 = arith.constant dense<0.000000e+00> : vector<8x16x8xf32>
    %54 = tpu.matmul %53, %37, %cst_20 {dimension_numbers = #tpu.dot_dimension_numbers<[2], [1], [1], [2], [0, 0, 0, 1, 1, 2], [0], [0]>} : vector<8x16x16xf32>, vector<8x16x8xf32>, vector<8x16x8xf32> -> vector<8x16x8xf32>
    "tpu.trace_stop"() : () -> ()
    %55 = vector.shape_cast %54 : vector<8x16x8xf32> to vector<128x8xf32>
    %c0_21 = arith.constant 0 : index
    %c8 = arith.constant 8 : index
    %56 = vector.load %arg8[%c0_21, %c8] : memref<128x32xf32, #tpu.memory_space<vmem>>, vector<128x8xf32>
    tpu.vector_store %arg8[%c0_21, %c8], %55 {strides = array<i32>} : memref<128x32xf32, #tpu.memory_space<vmem>>, vector<128x8xf32>,
    %57 = vector.extract_strided_slice %6 {offsets = [0, 16], sizes = [128, 8], strides = [1, 1]} : vector<128x96xf32> to vector<128x8xf32>
    %58 = vector.shape_cast %57 : vector<128x8xf32> to vector<8x16x8xf32>
    %59 = vector.extract_strided_slice %6 {offsets = [0, 48], sizes = [128, 8], strides = [1, 1]} : vector<128x96xf32> to vector<128x8xf32>
    %60 = vector.shape_cast %59 : vector<128x8xf32> to vector<8x16x8xf32>
    %61 = vector.extract_strided_slice %6 {offsets = [0, 80], sizes = [128, 8], strides = [1, 1]} : vector<128x96xf32> to vector<128x8xf32>
    %62 = vector.shape_cast %61 : vector<128x8xf32> to vector<8x16x8xf32>
    "tpu.trace_start"() <{level = 10 : i32, message = "bnd,bmd->bnm"}> : () -> ()
    %cst_22 = arith.constant dense<0.000000e+00> : vector<8x16x16xf32>
    %63 = tpu.matmul %58, %60, %cst_22 {dimension_numbers = #tpu.dot_dimension_numbers<[2], [2], [1], [1], [0, 0, 0, 1, 1, 1], [0], [0]>} : vector<8x16x8xf32>, vector<8x16x8xf32>, vector<8x16x16xf32> -> vector<8x16x16xf32>
    "tpu.trace_stop"() : () -> ()
    %c2 = arith.constant 2 : index
    %c0_23 = arith.constant 0 : index
    %c0_24 = arith.constant 0 : index
    %64 = vector.load %arg6[%c2, %c0_23, %c0_24] : memref<4x16x16xf32, #tpu.memory_space<vmem>>, vector<1x16x16xf32>
    %65 = vector.shape_cast %64 : vector<1x16x16xf32> to vector<16x16xf32>
    %66 = vector.shape_cast %65 : vector<16x16xf32> to vector<1x16x16xf32>
    %67 = vector.broadcast %66 : vector<1x16x16xf32> to vector<8x16x16xf32>
    %68 = arith.addf %63, %67 : vector<8x16x16xf32>
    %cst_25 = arith.constant dense<0xFF800000> : vector<8x16xf32>
    %69 = vector.multi_reduction <maximumf>, %68, %cst_25 [2] : vector<8x16x16xf32> to vector<8x16xf32>
    %70 = vector.shape_cast %69 : vector<8x16xf32> to vector<8x16x1xf32>
    %71 = vector.broadcast %70 : vector<8x16x1xf32> to vector<8x16x16xf32>
    %72 = arith.subf %68, %71 : vector<8x16x16xf32>
    %73 = math.exp %72 : vector<8x16x16xf32>
    %cst_26 = arith.constant dense<0.000000e+00> : vector<8x16xf32>
    %74 = vector.multi_reduction <add>, %73, %cst_26 [2] : vector<8x16x16xf32> to vector<8x16xf32>
    %75 = vector.shape_cast %74 : vector<8x16xf32> to vector<8x16x1xf32>
    %76 = tpu.reciprocal %75 {approx = true} : vector<8x16x1xf32> -> vector<8x16x1xf32>
    %77 = vector.broadcast %76 : vector<8x16x1xf32> to vector<8x16x16xf32>
    %78 = arith.mulf %73, %77 : vector<8x16x16xf32>
    "tpu.trace_start"() <{level = 10 : i32, message = "bnm,bmd->bnd"}> : () -> ()
    %cst_27 = arith.constant dense<0.000000e+00> : vector<8x16x8xf32>
    %79 = tpu.matmul %78, %62, %cst_27 {dimension_numbers = #tpu.dot_dimension_numbers<[2], [1], [1], [2], [0, 0, 0, 1, 1, 2], [0], [0]>} : vector<8x16x16xf32>, vector<8x16x8xf32>, vector<8x16x8xf32> -> vector<8x16x8xf32>
    "tpu.trace_stop"() : () -> ()
    %80 = vector.shape_cast %79 : vector<8x16x8xf32> to vector<128x8xf32>
    %c0_28 = arith.constant 0 : index
    %c16 = arith.constant 16 : index
    %81 = vector.load %arg8[%c0_28, %c16] : memref<128x32xf32, #tpu.memory_space<vmem>>, vector<128x8xf32>
    tpu.vector_store %arg8[%c0_28, %c16], %80 {strides = array<i32>} : memref<128x32xf32, #tpu.memory_space<vmem>>, vector<128x8xf32>,
    %82 = vector.extract_strided_slice %6 {offsets = [0, 24], sizes = [128, 8], strides = [1, 1]} : vector<128x96xf32> to vector<128x8xf32>
    %83 = vector.shape_cast %82 : vector<128x8xf32> to vector<8x16x8xf32>
    %84 = vector.extract_strided_slice %6 {offsets = [0, 56], sizes = [128, 8], strides = [1, 1]} : vector<128x96xf32> to vector<128x8xf32>
    %85 = vector.shape_cast %84 : vector<128x8xf32> to vector<8x16x8xf32>
    %86 = vector.extract_strided_slice %6 {offsets = [0, 88], sizes = [128, 8], strides = [1, 1]} : vector<128x96xf32> to vector<128x8xf32>
    %87 = vector.shape_cast %86 : vector<128x8xf32> to vector<8x16x8xf32>
    "tpu.trace_start"() <{level = 10 : i32, message = "bnd,bmd->bnm"}> : () -> ()
    %cst_29 = arith.constant dense<0.000000e+00> : vector<8x16x16xf32>
    %88 = tpu.matmul %83, %85, %cst_29 {dimension_numbers = #tpu.dot_dimension_numbers<[2], [2], [1], [1], [0, 0, 0, 1, 1, 1], [0], [0]>} : vector<8x16x8xf32>, vector<8x16x8xf32>, vector<8x16x16xf32> -> vector<8x16x16xf32>
    "tpu.trace_stop"() : () -> ()
    %c3 = arith.constant 3 : index
    %c0_30 = arith.constant 0 : index
    %c0_31 = arith.constant 0 : index
    %89 = vector.load %arg6[%c3, %c0_30, %c0_31] : memref<4x16x16xf32, #tpu.memory_space<vmem>>, vector<1x16x16xf32>
    %90 = vector.shape_cast %89 : vector<1x16x16xf32> to vector<16x16xf32>
    %91 = vector.shape_cast %90 : vector<16x16xf32> to vector<1x16x16xf32>
    %92 = vector.broadcast %91 : vector<1x16x16xf32> to vector<8x16x16xf32>
    %93 = arith.addf %88, %92 : vector<8x16x16xf32>
    %cst_32 = arith.constant dense<0xFF800000> : vector<8x16xf32>
    %94 = vector.multi_reduction <maximumf>, %93, %cst_32 [2] : vector<8x16x16xf32> to vector<8x16xf32>
    %95 = vector.shape_cast %94 : vector<8x16xf32> to vector<8x16x1xf32>
    %96 = vector.broadcast %95 : vector<8x16x1xf32> to vector<8x16x16xf32>
    %97 = arith.subf %93, %96 : vector<8x16x16xf32>
    %98 = math.exp %97 : vector<8x16x16xf32>
    %cst_33 = arith.constant dense<0.000000e+00> : vector<8x16xf32>
    %99 = vector.multi_reduction <add>, %98, %cst_33 [2] : vector<8x16x16xf32> to vector<8x16xf32>
    %100 = vector.shape_cast %99 : vector<8x16xf32> to vector<8x16x1xf32>
    %101 = tpu.reciprocal %100 {approx = true} : vector<8x16x1xf32> -> vector<8x16x1xf32>
    %102 = vector.broadcast %101 : vector<8x16x1xf32> to vector<8x16x16xf32>
    %103 = arith.mulf %98, %102 : vector<8x16x16xf32>
    "tpu.trace_start"() <{level = 10 : i32, message = "bnm,bmd->bnd"}> : () -> ()
    %cst_34 = arith.constant dense<0.000000e+00> : vector<8x16x8xf32>
    %104 = tpu.matmul %103, %87, %cst_34 {dimension_numbers = #tpu.dot_dimension_numbers<[2], [1], [1], [2], [0, 0, 0, 1, 1, 2], [0], [0]>} : vector<8x16x16xf32>, vector<8x16x8xf32>, vector<8x16x8xf32> -> vector<8x16x8xf32>
    "tpu.trace_stop"() : () -> ()
    %105 = vector.shape_cast %104 : vector<8x16x8xf32> to vector<128x8xf32>
    %c0_35 = arith.constant 0 : index
    %c24 = arith.constant 24 : index
    %106 = vector.load %arg8[%c0_35, %c24] : memref<128x32xf32, #tpu.memory_space<vmem>>, vector<128x8xf32>
    tpu.vector_store %arg8[%c0_35, %c24], %105 {strides = array<i32>} : memref<128x32xf32, #tpu.memory_space<vmem>>, vector<128x8xf32>,
    %c0_36 = arith.constant 0 : index
    %c0_37 = arith.constant 0 : index
    %107 = vector.load %arg8[%c0_36, %c0_37] : memref<128x32xf32, #tpu.memory_space<vmem>>, vector<128x32xf32>
    %c0_38 = arith.constant 0 : index
    %c0_39 = arith.constant 0 : index
    %108 = vector.load %arg4[%c0_38, %c0_39] : memref<32x32xf32, #tpu.memory_space<vmem>>, vector<32x32xf32>
    %cst_40 = arith.constant dense<0.000000e+00> : vector<128x32xf32>
    %109 = tpu.matmul %107, %108, %cst_40 {dimension_numbers = #tpu.dot_dimension_numbers<[1], [0], [0], [1], [0, 0, 1, 1], [], []>} : vector<128x32xf32>, vector<32x32xf32>, vector<128x32xf32> -> vector<128x32xf32>
    %c0_41 = arith.constant 0 : index
    %c0_42 = arith.constant 0 : index
    %110 = vector.load %arg5[%c0_41, %c0_42] : memref<1x32xf32, #tpu.memory_space<vmem>>, vector<1x32xf32>
    %111 = vector.broadcast %110 : vector<1x32xf32> to vector<128x32xf32>
    %112 = arith.addf %109, %111 : vector<128x32xf32>
    %113 = vector.shape_cast %112 : vector<128x32xf32> to vector<8x512xf32>
    %c0_43 = arith.constant 0 : index
    %c0_44 = arith.constant 0 : index
    %114 = vector.load %arg7[%c0_43, %c0_44] : memref<8x512xf32, #tpu.memory_space<vmem>>, vector<8x512xf32>
    tpu.vector_store %arg7[%c0_43, %c0_44], %113 {strides = array<i32>} : memref<8x512xf32, #tpu.memory_space<vmem>>, vector<8x512xf32>,
    return
  }
  func.func @transform_0(%arg0: i32) -> (i32, i32, i32) {
    %c0_i32 = arith.constant 0 : i32
    %c0_i32_0 = arith.constant 0 : i32
    %c0_i32_1 = arith.constant 0 : i32
    return %arg0, %c0_i32, %c0_i32_0 : i32, i32, i32
  }
  func.func @transform_1(%arg0: i32) -> (i32, i32) {
    %c0_i32 = arith.constant 0 : i32
    %c0_i32_0 = arith.constant 0 : i32
    %c0_i32_1 = arith.constant 0 : i32
    return %c0_i32, %c0_i32_0 : i32, i32
  }
  func.func @transform_2(%arg0: i32) -> (i32, i32) {
    %c0_i32 = arith.constant 0 : i32
    %c0_i32_0 = arith.constant 0 : i32
    %c0_i32_1 = arith.constant 0 : i32
    return %c0_i32, %c0_i32_0 : i32, i32
  }
  func.func @transform_3(%arg0: i32) -> (i32, i32) {
    %c0_i32 = arith.constant 0 : i32
    %c0_i32_0 = arith.constant 0 : i32
    %c0_i32_1 = arith.constant 0 : i32
    return %c0_i32, %c0_i32_0 : i32, i32
  }
  func.func @transform_4(%arg0: i32) -> (i32, i32) {
    %c0_i32 = arith.constant 0 : i32
    %c0_i32_0 = arith.constant 0 : i32
    %c0_i32_1 = arith.constant 0 : i32
    return %c0_i32, %c0_i32_0 : i32, i32
  }
  func.func @transform_5(%arg0: i32) -> (i32, i32, i32) {
    %c0_i32 = arith.constant 0 : i32
    %c0_i32_0 = arith.constant 0 : i32
    %c0_i32_1 = arith.constant 0 : i32
    %c0_i32_2 = arith.constant 0 : i32
    return %c0_i32, %c0_i32_0, %c0_i32_1 : i32, i32, i32
  }
  func.func @transform_6(%arg0: i32) -> (i32, i32) {
    %c0_i32 = arith.constant 0 : i32
    %c0_i32_0 = arith.constant 0 : i32
    return %arg0, %c0_i32 : i32, i32
  }
}

module attributes {stable_mosaic.version = 11 : i64} {
  func.func @_attention_kernel(%arg0: i32, %arg1: memref<8x16x32xf32, #tpu.memory_space<vmem>>, %arg2: memref<32x96xf32, #tpu.memory_space<vmem>>, %arg3: memref<1x96xf32, #tpu.memory_space<vmem>>, %arg4: memref<32x32xf32, #tpu.memory_space<vmem>>, %arg5: memref<1x32xf32, #tpu.memory_space<vmem>>, %arg6: memref<4x16x16xf32, #tpu.memory_space<vmem>>, %arg7: memref<8x16x32xf32, #tpu.memory_space<vmem>>, %arg8: memref<128x32xf32, #tpu.memory_space<vmem>>) attributes {dimension_semantics = [#tpu.dimension_semantics<parallel>], iteration_bounds = array<i64: 2>, scalar_prefetch = 0 : i64, scratch_operands = 1 : i64, tpu.core_type = #tpu.core_type<tc>, window_params = [{transform_indices = @transform_0, window_bounds = array<i64: 8, 16, 32>}, {pipeline_mode = #tpu.pipeline_mode<synchronous>, transform_indices = @transform_1, window_bounds = array<i64: 32, 96>}, {pipeline_mode = #tpu.pipeline_mode<synchronous>, transform_indices = @transform_2, window_bounds = array<i64: 1, 96>}, {pipeline_mode = #tpu.pipeline_mode<synchronous>, transform_indices = @transform_3, window_bounds = array<i64: 32, 32>}, {pipeline_mode = #tpu.pipeline_mode<synchronous>, transform_indices = @transform_4, window_bounds = array<i64: 1, 32>}, {pipeline_mode = #tpu.pipeline_mode<synchronous>, transform_indices = @transform_5, window_bounds = array<i64: 4, 16, 16>}, {transform_indices = @transform_6, window_bounds = array<i64: 8, 16, 32>}]} {
    %c0 = arith.constant 0 : index
    %c0_0 = arith.constant 0 : index
    %c0_1 = arith.constant 0 : index
    %0 = vector.load %arg1[%c0, %c0_0, %c0_1] : memref<8x16x32xf32, #tpu.memory_space<vmem>>, vector<8x16x32xf32>
    %1 = vector.shape_cast %0 : vector<8x16x32xf32> to vector<128x32xf32>
    %c0_2 = arith.constant 0 : index
    %c0_3 = arith.constant 0 : index
    %2 = vector.load %arg2[%c0_2, %c0_3] : memref<32x96xf32, #tpu.memory_space<vmem>>, vector<32x96xf32>
    %cst = arith.constant dense<0.000000e+00> : vector<128x96xf32>
    %3 = tpu.matmul %1, %2, %cst {dimension_numbers = #tpu.dot_dimension_numbers<[1], [0], [0], [1], [0, 0, 1, 1], [], []>} : vector<128x32xf32>, vector<32x96xf32>, vector<128x96xf32> -> vector<128x96xf32>
    %c0_4 = arith.constant 0 : index
    %c0_5 = arith.constant 0 : index
    %4 = vector.load %arg3[%c0_4, %c0_5] : memref<1x96xf32, #tpu.memory_space<vmem>>, vector<1x96xf32>
    %5 = vector.broadcast %4 : vector<1x96xf32> to vector<128x96xf32>
    %6 = arith.addf %3, %5 : vector<128x96xf32>
    %7 = vector.extract_strided_slice %6 {offsets = [0, 0], sizes = [128, 8], strides = [1, 1]} : vector<128x96xf32> to vector<128x8xf32>
    %8 = vector.shape_cast %7 : vector<128x8xf32> to vector<8x16x8xf32>
    %9 = vector.extract_strided_slice %6 {offsets = [0, 32], sizes = [128, 8], strides = [1, 1]} : vector<128x96xf32> to vector<128x8xf32>
    %10 = vector.shape_cast %9 : vector<128x8xf32> to vector<8x16x8xf32>
    %11 = vector.extract_strided_slice %6 {offsets = [0, 64], sizes = [128, 8], strides = [1, 1]} : vector<128x96xf32> to vector<128x8xf32>
    %12 = vector.shape_cast %11 : vector<128x8xf32> to vector<8x16x8xf32>
    "tpu.trace_start"() <{level = 10 : i32, message = "bnd,bmd->bnm"}> : () -> ()
    %cst_6 = arith.constant dense<0.000000e+00> : vector<8x16x16xf32>
    %13 = tpu.matmul %8, %10, %cst_6 {dimension_numbers = #tpu.dot_dimension_numbers<[2], [2], [1], [1], [0, 0, 0, 1, 1, 1], [0], [0]>} : vector<8x16x8xf32>, vector<8x16x8xf32>, vector<8x16x16xf32> -> vector<8x16x16xf32>
    "tpu.trace_stop"() : () -> ()
    %c0_7 = arith.constant 0 : index
    %c0_8 = arith.constant 0 : index
    %c0_9 = arith.constant 0 : index
    %14 = vector.load %arg6[%c0_7, %c0_8, %c0_9] : memref<4x16x16xf32, #tpu.memory_space<vmem>>, vector<1x16x16xf32>
    %15 = vector.shape_cast %14 : vector<1x16x16xf32> to vector<16x16xf32>
    %16 = vector.shape_cast %15 : vector<16x16xf32> to vector<1x16x16xf32>
    %17 = vector.broadcast %16 : vector<1x16x16xf32> to vector<8x16x16xf32>
    %18 = arith.addf %13, %17 : vector<8x16x16xf32>
    %cst_10 = arith.constant dense<0xFF800000> : vector<8x16xf32>
    %19 = vector.multi_reduction <maximumf>, %18, %cst_10 [2] : vector<8x16x16xf32> to vector<8x16xf32>
    %20 = vector.shape_cast %19 : vector<8x16xf32> to vector<8x16x1xf32>
    %21 = vector.broadcast %20 : vector<8x16x1xf32> to vector<8x16x16xf32>
    %22 = arith.subf %18, %21 : vector<8x16x16xf32>
    %23 = math.exp %22 : vector<8x16x16xf32>
    %cst_11 = arith.constant dense<0.000000e+00> : vector<8x16xf32>
    %24 = vector.multi_reduction <add>, %23, %cst_11 [2] : vector<8x16x16xf32> to vector<8x16xf32>
    %25 = vector.shape_cast %24 : vector<8x16xf32> to vector<8x16x1xf32>
    %26 = tpu.reciprocal %25 {approx = true} : vector<8x16x1xf32> -> vector<8x16x1xf32>
    %27 = vector.broadcast %26 : vector<8x16x1xf32> to vector<8x16x16xf32>
    %28 = arith.mulf %23, %27 : vector<8x16x16xf32>
    "tpu.trace_start"() <{level = 10 : i32, message = "bnm,bmd->bnd"}> : () -> ()
    %cst_12 = arith.constant dense<0.000000e+00> : vector<8x16x8xf32>
    %29 = tpu.matmul %28, %12, %cst_12 {dimension_numbers = #tpu.dot_dimension_numbers<[2], [1], [1], [2], [0, 0, 0, 1, 1, 2], [0], [0]>} : vector<8x16x16xf32>, vector<8x16x8xf32>, vector<8x16x8xf32> -> vector<8x16x8xf32>
    "tpu.trace_stop"() : () -> ()
    %30 = vector.shape_cast %29 : vector<8x16x8xf32> to vector<128x8xf32>
    %c0_13 = arith.constant 0 : index
    %c0_14 = arith.constant 0 : index
    %31 = vector.load %arg8[%c0_13, %c0_14] : memref<128x32xf32, #tpu.memory_space<vmem>>, vector<128x8xf32>
    tpu.vector_store %arg8[%c0_13, %c0_14], %30 {strides = array<i32>} : memref<128x32xf32, #tpu.memory_space<vmem>>, vector<128x8xf32>,
    %32 = vector.extract_strided_slice %6 {offsets = [0, 8], sizes = [128, 8], strides = [1, 1]} : vector<128x96xf32> to vector<128x8xf32>
    %33 = vector.shape_cast %32 : vector<128x8xf32> to vector<8x16x8xf32>
    %34 = vector.extract_strided_slice %6 {offsets = [0, 40], sizes = [128, 8], strides = [1, 1]} : vector<128x96xf32> to vector<128x8xf32>
    %35 = vector.shape_cast %34 : vector<128x8xf32> to vector<8x16x8xf32>
    %36 = vector.extract_strided_slice %6 {offsets = [0, 72], sizes = [128, 8], strides = [1, 1]} : vector<128x96xf32> to vector<128x8xf32>
    %37 = vector.shape_cast %36 : vector<128x8xf32> to vector<8x16x8xf32>
    "tpu.trace_start"() <{level = 10 : i32, message = "bnd,bmd->bnm"}> : () -> ()
    %cst_15 = arith.constant dense<0.000000e+00> : vector<8x16x16xf32>
    %38 = tpu.matmul %33, %35, %cst_15 {dimension_numbers = #tpu.dot_dimension_numbers<[2], [2], [1], [1], [0, 0, 0, 1, 1, 1], [0], [0]>} : vector<8x16x8xf32>, vector<8x16x8xf32>, vector<8x16x16xf32> -> vector<8x16x16xf32>
    "tpu.trace_stop"() : () -> ()
    %c1 = arith.constant 1 : index
    %c0_16 = arith.constant 0 : index
    %c0_17 = arith.constant 0 : index
    %39 = vector.load %arg6[%c1, %c0_16, %c0_17] : memref<4x16x16xf32, #tpu.memory_space<vmem>>, vector<1x16x16xf32>
    %40 = vector.shape_cast %39 : vector<1x16x16xf32> to vector<16x16xf32>
    %41 = vector.shape_cast %40 : vector<16x16xf32> to vector<1x16x16xf32>
    %42 = vector.broadcast %41 : vector<1x16x16xf32> to vector<8x16x16xf32>
    %43 = arith.addf %38, %42 : vector<8x16x16xf32>
    %cst_18 = arith.constant dense<0xFF800000> : vector<8x16xf32>
    %44 = vector.multi_reduction <maximumf>, %43, %cst_18 [2] : vector<8x16x16xf32> to vector<8x16xf32>
    %45 = vector.shape_cast %44 : vector<8x16xf32> to vector<8x16x1xf32>
    %46 = vector.broadcast %45 : vector<8x16x1xf32> to vector<8x16x16xf32>
    %47 = arith.subf %43, %46 : vector<8x16x16xf32>
    %48 = math.exp %47 : vector<8x16x16xf32>
    %cst_19 = arith.constant dense<0.000000e+00> : vector<8x16xf32>
    %49 = vector.multi_reduction <add>, %48, %cst_19 [2] : vector<8x16x16xf32> to vector<8x16xf32>
    %50 = vector.shape_cast %49 : vector<8x16xf32> to vector<8x16x1xf32>
    %51 = tpu.reciprocal %50 {approx = true} : vector<8x16x1xf32> -> vector<8x16x1xf32>
    %52 = vector.broadcast %51 : vector<8x16x1xf32> to vector<8x16x16xf32>
    %53 = arith.mulf %48, %52 : vector<8x16x16xf32>
    "tpu.trace_start"() <{level = 10 : i32, message = "bnm,bmd->bnd"}> : () -> ()
    %cst_20 = arith.constant dense<0.000000e+00> : vector<8x16x8xf32>
    %54 = tpu.matmul %53, %37, %cst_20 {dimension_numbers = #tpu.dot_dimension_numbers<[2], [1], [1], [2], [0, 0, 0, 1, 1, 2], [0], [0]>} : vector<8x16x16xf32>, vector<8x16x8xf32>, vector<8x16x8xf32> -> vector<8x16x8xf32>
    "tpu.trace_stop"() : () -> ()
    %55 = vector.shape_cast %54 : vector<8x16x8xf32> to vector<128x8xf32>
    %c0_21 = arith.constant 0 : index
    %c8 = arith.constant 8 : index
    %56 = vector.load %arg8[%c0_21, %c8] : memref<128x32xf32, #tpu.memory_space<vmem>>, vector<128x8xf32>
    tpu.vector_store %arg8[%c0_21, %c8], %55 {strides = array<i32>} : memref<128x32xf32, #tpu.memory_space<vmem>>, vector<128x8xf32>,
    %57 = vector.extract_strided_slice %6 {offsets = [0, 16], sizes = [128, 8], strides = [1, 1]} : vector<128x96xf32> to vector<128x8xf32>
    %58 = vector.shape_cast %57 : vector<128x8xf32> to vector<8x16x8xf32>
    %59 = vector.extract_strided_slice %6 {offsets = [0, 48], sizes = [128, 8], strides = [1, 1]} : vector<128x96xf32> to vector<128x8xf32>
    %60 = vector.shape_cast %59 : vector<128x8xf32> to vector<8x16x8xf32>
    %61 = vector.extract_strided_slice %6 {offsets = [0, 80], sizes = [128, 8], strides = [1, 1]} : vector<128x96xf32> to vector<128x8xf32>
    %62 = vector.shape_cast %61 : vector<128x8xf32> to vector<8x16x8xf32>
    "tpu.trace_start"() <{level = 10 : i32, message = "bnd,bmd->bnm"}> : () -> ()
    %cst_22 = arith.constant dense<0.000000e+00> : vector<8x16x16xf32>
    %63 = tpu.matmul %58, %60, %cst_22 {dimension_numbers = #tpu.dot_dimension_numbers<[2], [2], [1], [1], [0, 0, 0, 1, 1, 1], [0], [0]>} : vector<8x16x8xf32>, vector<8x16x8xf32>, vector<8x16x16xf32> -> vector<8x16x16xf32>
    "tpu.trace_stop"() : () -> ()
    %c2 = arith.constant 2 : index
    %c0_23 = arith.constant 0 : index
    %c0_24 = arith.constant 0 : index
    %64 = vector.load %arg6[%c2, %c0_23, %c0_24] : memref<4x16x16xf32, #tpu.memory_space<vmem>>, vector<1x16x16xf32>
    %65 = vector.shape_cast %64 : vector<1x16x16xf32> to vector<16x16xf32>
    %66 = vector.shape_cast %65 : vector<16x16xf32> to vector<1x16x16xf32>
    %67 = vector.broadcast %66 : vector<1x16x16xf32> to vector<8x16x16xf32>
    %68 = arith.addf %63, %67 : vector<8x16x16xf32>
    %cst_25 = arith.constant dense<0xFF800000> : vector<8x16xf32>
    %69 = vector.multi_reduction <maximumf>, %68, %cst_25 [2] : vector<8x16x16xf32> to vector<8x16xf32>
    %70 = vector.shape_cast %69 : vector<8x16xf32> to vector<8x16x1xf32>
    %71 = vector.broadcast %70 : vector<8x16x1xf32> to vector<8x16x16xf32>
    %72 = arith.subf %68, %71 : vector<8x16x16xf32>
    %73 = math.exp %72 : vector<8x16x16xf32>
    %cst_26 = arith.constant dense<0.000000e+00> : vector<8x16xf32>
    %74 = vector.multi_reduction <add>, %73, %cst_26 [2] : vector<8x16x16xf32> to vector<8x16xf32>
    %75 = vector.shape_cast %74 : vector<8x16xf32> to vector<8x16x1xf32>
    %76 = tpu.reciprocal %75 {approx = true} : vector<8x16x1xf32> -> vector<8x16x1xf32>
    %77 = vector.broadcast %76 : vector<8x16x1xf32> to vector<8x16x16xf32>
    %78 = arith.mulf %73, %77 : vector<8x16x16xf32>
    "tpu.trace_start"() <{level = 10 : i32, message = "bnm,bmd->bnd"}> : () -> ()
    %cst_27 = arith.constant dense<0.000000e+00> : vector<8x16x8xf32>
    %79 = tpu.matmul %78, %62, %cst_27 {dimension_numbers = #tpu.dot_dimension_numbers<[2], [1], [1], [2], [0, 0, 0, 1, 1, 2], [0], [0]>} : vector<8x16x16xf32>, vector<8x16x8xf32>, vector<8x16x8xf32> -> vector<8x16x8xf32>
    "tpu.trace_stop"() : () -> ()
    %80 = vector.shape_cast %79 : vector<8x16x8xf32> to vector<128x8xf32>
    %c0_28 = arith.constant 0 : index
    %c16 = arith.constant 16 : index
    %81 = vector.load %arg8[%c0_28, %c16] : memref<128x32xf32, #tpu.memory_space<vmem>>, vector<128x8xf32>
    tpu.vector_store %arg8[%c0_28, %c16], %80 {strides = array<i32>} : memref<128x32xf32, #tpu.memory_space<vmem>>, vector<128x8xf32>,
    %82 = vector.extract_strided_slice %6 {offsets = [0, 24], sizes = [128, 8], strides = [1, 1]} : vector<128x96xf32> to vector<128x8xf32>
    %83 = vector.shape_cast %82 : vector<128x8xf32> to vector<8x16x8xf32>
    %84 = vector.extract_strided_slice %6 {offsets = [0, 56], sizes = [128, 8], strides = [1, 1]} : vector<128x96xf32> to vector<128x8xf32>
    %85 = vector.shape_cast %84 : vector<128x8xf32> to vector<8x16x8xf32>
    %86 = vector.extract_strided_slice %6 {offsets = [0, 88], sizes = [128, 8], strides = [1, 1]} : vector<128x96xf32> to vector<128x8xf32>
    %87 = vector.shape_cast %86 : vector<128x8xf32> to vector<8x16x8xf32>
    "tpu.trace_start"() <{level = 10 : i32, message = "bnd,bmd->bnm"}> : () -> ()
    %cst_29 = arith.constant dense<0.000000e+00> : vector<8x16x16xf32>
    %88 = tpu.matmul %83, %85, %cst_29 {dimension_numbers = #tpu.dot_dimension_numbers<[2], [2], [1], [1], [0, 0, 0, 1, 1, 1], [0], [0]>} : vector<8x16x8xf32>, vector<8x16x8xf32>, vector<8x16x16xf32> -> vector<8x16x16xf32>
    "tpu.trace_stop"() : () -> ()
    %c3 = arith.constant 3 : index
    %c0_30 = arith.constant 0 : index
    %c0_31 = arith.constant 0 : index
    %89 = vector.load %arg6[%c3, %c0_30, %c0_31] : memref<4x16x16xf32, #tpu.memory_space<vmem>>, vector<1x16x16xf32>
    %90 = vector.shape_cast %89 : vector<1x16x16xf32> to vector<16x16xf32>
    %91 = vector.shape_cast %90 : vector<16x16xf32> to vector<1x16x16xf32>
    %92 = vector.broadcast %91 : vector<1x16x16xf32> to vector<8x16x16xf32>
    %93 = arith.addf %88, %92 : vector<8x16x16xf32>
    %cst_32 = arith.constant dense<0xFF800000> : vector<8x16xf32>
    %94 = vector.multi_reduction <maximumf>, %93, %cst_32 [2] : vector<8x16x16xf32> to vector<8x16xf32>
    %95 = vector.shape_cast %94 : vector<8x16xf32> to vector<8x16x1xf32>
    %96 = vector.broadcast %95 : vector<8x16x1xf32> to vector<8x16x16xf32>
    %97 = arith.subf %93, %96 : vector<8x16x16xf32>
    %98 = math.exp %97 : vector<8x16x16xf32>
    %cst_33 = arith.constant dense<0.000000e+00> : vector<8x16xf32>
    %99 = vector.multi_reduction <add>, %98, %cst_33 [2] : vector<8x16x16xf32> to vector<8x16xf32>
    %100 = vector.shape_cast %99 : vector<8x16xf32> to vector<8x16x1xf32>
    %101 = tpu.reciprocal %100 {approx = true} : vector<8x16x1xf32> -> vector<8x16x1xf32>
    %102 = vector.broadcast %101 : vector<8x16x1xf32> to vector<8x16x16xf32>
    %103 = arith.mulf %98, %102 : vector<8x16x16xf32>
    "tpu.trace_start"() <{level = 10 : i32, message = "bnm,bmd->bnd"}> : () -> ()
    %cst_34 = arith.constant dense<0.000000e+00> : vector<8x16x8xf32>
    %104 = tpu.matmul %103, %87, %cst_34 {dimension_numbers = #tpu.dot_dimension_numbers<[2], [1], [1], [2], [0, 0, 0, 1, 1, 2], [0], [0]>} : vector<8x16x16xf32>, vector<8x16x8xf32>, vector<8x16x8xf32> -> vector<8x16x8xf32>
    "tpu.trace_stop"() : () -> ()
    %105 = vector.shape_cast %104 : vector<8x16x8xf32> to vector<128x8xf32>
    %c0_35 = arith.constant 0 : index
    %c24 = arith.constant 24 : index
    %106 = vector.load %arg8[%c0_35, %c24] : memref<128x32xf32, #tpu.memory_space<vmem>>, vector<128x8xf32>
    tpu.vector_store %arg8[%c0_35, %c24], %105 {strides = array<i32>} : memref<128x32xf32, #tpu.memory_space<vmem>>, vector<128x8xf32>,
    %c0_36 = arith.constant 0 : index
    %c0_37 = arith.constant 0 : index
    %107 = vector.load %arg8[%c0_36, %c0_37] : memref<128x32xf32, #tpu.memory_space<vmem>>, vector<128x32xf32>
    %c0_38 = arith.constant 0 : index
    %c0_39 = arith.constant 0 : index
    %108 = vector.load %arg4[%c0_38, %c0_39] : memref<32x32xf32, #tpu.memory_space<vmem>>, vector<32x32xf32>
    %cst_40 = arith.constant dense<0.000000e+00> : vector<128x32xf32>
    %109 = tpu.matmul %107, %108, %cst_40 {dimension_numbers = #tpu.dot_dimension_numbers<[1], [0], [0], [1], [0, 0, 1, 1], [], []>} : vector<128x32xf32>, vector<32x32xf32>, vector<128x32xf32> -> vector<128x32xf32>
    %c0_41 = arith.constant 0 : index
    %c0_42 = arith.constant 0 : index
    %110 = vector.load %arg5[%c0_41, %c0_42] : memref<1x32xf32, #tpu.memory_space<vmem>>, vector<1x32xf32>
    %111 = vector.broadcast %110 : vector<1x32xf32> to vector<128x32xf32>
    %112 = arith.addf %109, %111 : vector<128x32xf32>
    %113 = vector.shape_cast %112 : vector<128x32xf32> to vector<8x16x32xf32>
    %c0_43 = arith.constant 0 : index
    %c0_44 = arith.constant 0 : index
    %c0_45 = arith.constant 0 : index
    %114 = vector.load %arg7[%c0_43, %c0_44, %c0_45] : memref<8x16x32xf32, #tpu.memory_space<vmem>>, vector<8x16x32xf32>
    tpu.vector_store %arg7[%c0_43, %c0_44, %c0_45], %113 {strides = array<i32>} : memref<8x16x32xf32, #tpu.memory_space<vmem>>, vector<8x16x32xf32>,
    return
  }
  func.func @transform_0(%arg0: i32) -> (i32, i32, i32) {
    %c0_i32 = arith.constant 0 : i32
    %c0_i32_0 = arith.constant 0 : i32
    %c0_i32_1 = arith.constant 0 : i32
    return %arg0, %c0_i32, %c0_i32_0 : i32, i32, i32
  }
  func.func @transform_1(%arg0: i32) -> (i32, i32) {
    %c0_i32 = arith.constant 0 : i32
    %c0_i32_0 = arith.constant 0 : i32
    %c0_i32_1 = arith.constant 0 : i32
    return %c0_i32, %c0_i32_0 : i32, i32
  }
  func.func @transform_2(%arg0: i32) -> (i32, i32) {
    %c0_i32 = arith.constant 0 : i32
    %c0_i32_0 = arith.constant 0 : i32
    %c0_i32_1 = arith.constant 0 : i32
    return %c0_i32, %c0_i32_0 : i32, i32
  }
  func.func @transform_3(%arg0: i32) -> (i32, i32) {
    %c0_i32 = arith.constant 0 : i32
    %c0_i32_0 = arith.constant 0 : i32
    %c0_i32_1 = arith.constant 0 : i32
    return %c0_i32, %c0_i32_0 : i32, i32
  }
  func.func @transform_4(%arg0: i32) -> (i32, i32) {
    %c0_i32 = arith.constant 0 : i32
    %c0_i32_0 = arith.constant 0 : i32
    %c0_i32_1 = arith.constant 0 : i32
    return %c0_i32, %c0_i32_0 : i32, i32
  }
  func.func @transform_5(%arg0: i32) -> (i32, i32, i32) {
    %c0_i32 = arith.constant 0 : i32
    %c0_i32_0 = arith.constant 0 : i32
    %c0_i32_1 = arith.constant 0 : i32
    %c0_i32_2 = arith.constant 0 : i32
    return %c0_i32, %c0_i32_0, %c0_i32_1 : i32, i32, i32
  }
  func.func @transform_6(%arg0: i32) -> (i32, i32, i32) {
    %c0_i32 = arith.constant 0 : i32
    %c0_i32_0 = arith.constant 0 : i32
    %c0_i32_1 = arith.constant 0 : i32
    return %arg0, %c0_i32, %c0_i32_0 : i32, i32, i32
  }
}

</mosaic_0001>

<llo_original>
// kernel: tpu_custom_call.1
$region0: #{tpu_custom_call.1}
  #allocation0 [shape = 'u32[]', space=smem, size = 0x4, offset = 0x4, fixed_abs, tag = 'smem constant byte address 0x4 - core index']
  #allocation1 [shape = 'u32[72,128]{1,0:T(1,128)}', space=vmem, size = 0x9000, scoped, tag = 'internal scratch']
  #allocation2 [shape = 'f32[128,32]{1,0:T(8,128)}', space=vmem, size = 0x10000, scoped, tag = 'scratch operand']
  %s0 = inlined_call_operand.hbm [shape: f32[16,16,32], index: 0, kind: input, shape index: {}]
  %s1 = inlined_call_operand.hbm [shape: f32[32,96], index: 1, kind: input, shape index: {}]
  %s2 = inlined_call_operand.vmem [shape: f32[1,96], index: 2, kind: input, shape index: {}]
  %s3 = inlined_call_operand.hbm [shape: f32[32,32], index: 3, kind: input, shape index: {}]
  %s4 = inlined_call_operand.vmem [shape: f32[1,32], index: 4, kind: input, shape index: {}]
  %s5 = inlined_call_operand.hbm [shape: f32[4,16,16], index: 5, kind: input, shape index: {}]
  %s6 = inlined_call_operand.hbm [shape: f32[16,16,32], index: 6, kind: output, shape index: {}]
  %s7 = sld [smem:[#allocation0]]
  $region73: #{tpu_custom_call.1} parent=0
    _
  %s9 = ssub.s32 1, %s7
  %s10 = scalar_select 0, %s9, %s7
  $region1: #{tpu_custom_call.1} parent=0
    #allocation3 [shape = 'u8[131072]{0}', space=vmem, size = 0x20000, scoped, tag = 'input window, operand 0']
    #allocation4 [shape = 's32[2]{0}', space=sflag, size = 0x8, scoped, tag = 'scoped memory for tpu_custom_call.1']
    #allocation5 [shape = 's32[2]{0}', space=sflag, size = 0x8, scoped, tag = 'scoped memory for tpu_custom_call.1']
    #allocation6 [shape = 'u8[16384]{0}', space=vmem, size = 0x4000, scoped, tag = 'input window, operand 1, single buffered']
    #allocation7 [shape = 's32[1]{0}', space=sflag, size = 0x4, scoped, tag = 'scoped memory for tpu_custom_call.1']
    #allocation8 [shape = 'u8[16384]{0}', space=vmem, size = 0x4000, scoped, tag = 'input window, operand 3, single buffered']
    #allocation9 [shape = 'u8[32768]{0}', space=vmem, size = 0x8000, scoped, tag = 'input window, operand 5, single buffered']
    #allocation10 [shape = 's32[1]{0}', space=sflag, size = 0x4, scoped, tag = 'scoped memory for tpu_custom_call.1']
    #allocation11 [shape = 'u8[131072]{0}', space=vmem, size = 0x20000, scoped, tag = 'output window, operand 0']
    %11 = vsyncpa [#allocation4], 0
    %s12 = scalar_lea.sflag [#allocation4], 1
    %13 = vsyncpa %s12, 0
    %14 = vsyncpa [#allocation7], 0
    %15 = vsyncpa [#allocation10], 0
    %16 = vsyncpa [#allocation5], 0
    %s17 = scalar_lea.sflag [#allocation5], 1
    %18 = vsyncpa %s17, 0
    loop: start=0, step=1, limit=4
    $region2: #{tpu_custom_call.1} parent=1 // loop_pre_header
      _
    $region3: #{tpu_custom_call.1} parent=1 // loop_header
      %s20 = sphi 0, %s24
      %p21 = scmp.ge.s32.totalorder %s20, 4
      %s30 = sphi 0, %s32
      %s33 = sphi 0, %s30
      %s34 = sphi 0, %s33
      %s50 = sphi 0, %s34
      %s54 = sphi 0, %s54
      %s56 = sphi 0, %s54
      %s57 = sphi 0, %s56
      %s71 = sphi 0, %s57
      %s75 = sphi 0, %s75
      %s77 = sphi 0, %s75
      %s78 = sphi 0, %s77
      %s92 = sphi 0, %s78
      %s96 = sphi 0, %s96
      %s98 = sphi 0, %s96
      %s99 = sphi 0, %s98
      %s113 = sphi 0, %s99
      %s117 = sphi 0, %s117
      %s119 = sphi 0, %s117
      %s120 = sphi 0, %s119
      %s134 = sphi 0, %s120
      %s138 = sphi 0, %s138
      %s140 = sphi 0, %s138
      %s141 = sphi 0, %s140
      %s155 = sphi 0, %s141
      %s161 = sphi 0, %s163
      %s164 = sphi 0, %s161
      %s165 = sphi 0, %s164
      %s181 = sphi 0, %s165
    $region4: #{tpu_custom_call.1} parent=1 // loop_header_branch
      %23 = sbr.rel (%p21) target = $region8
    $region5: #{tpu_custom_call.1} parent=1 // loop_body
      %s25 = ssub.s32 %s20, 1
      %s26 = ssub.s32 %s20, 2
      %s27 = sadd.s32 %s20, 1
      %s28 = ssub.s32 %s20, %s27
      %p29 = scmp.eq.s32.totalorder %s28, 0
      %s31 = sadd.s32 %s30, 1
      %s32 = scalar_select %p29, %s30, %s31
      %p35 = pneg %p29
      %p36 = scmp.eq.s32.totalorder %s20, 1
      %p37 = por %p35, %p36
      %p38 = scmp.ne.s32.totalorder %s30, %s33
      %p39 = scmp.eq.s32.totalorder %s20, 0
      %p40 = por %p38, %p39
      %p41 = scmp.ne.s32.totalorder %s30, %s33
      %p42 = scmp.eq.s32.totalorder %s25, 1
      %p43 = por %p41, %p42
      %p44 = scmp.ne.s32.totalorder %s33, %s34
      %p45 = scmp.eq.s32.totalorder %s25, 0
      %p46 = por %p44, %p45
      %p47 = scmp.ne.s32.totalorder %s33, %s34
      %p48 = scmp.eq.s32.totalorder %s26, 1
      %p49 = por %p47, %p48
      %p51 = scmp.ne.s32.totalorder %s34, %s50
      %p52 = scmp.eq.s32.totalorder %s26, 0
      %p53 = por %p51, %p52
      %s55 = sadd.s32 %s54, 1
      %p58 = scmp.eq.s32.totalorder %s20, 1
      %p59 = scmp.ne.s32.totalorder %s54, %s56
      %p60 = scmp.eq.s32.totalorder %s20, 0
      %p61 = por %p59, %p60
      %p62 = scmp.ne.s32.totalorder %s54, %s56
      %p63 = scmp.eq.s32.totalorder %s25, 1
      %p64 = por %p62, %p63
      %p65 = scmp.ne.s32.totalorder %s56, %s57
      %p66 = scmp.eq.s32.totalorder %s25, 0
      %p67 = por %p65, %p66
      %p68 = scmp.ne.s32.totalorder %s56, %s57
      %p69 = scmp.eq.s32.totalorder %s26, 1
      %p70 = por %p68, %p69
      %p72 = scmp.ne.s32.totalorder %s57, %s71
      %p73 = scmp.eq.s32.totalorder %s26, 0
      %p74 = por %p72, %p73
      %s76 = sadd.s32 %s75, 1
      %p79 = scmp.eq.s32.totalorder %s20, 1
      %p80 = scmp.ne.s32.totalorder %s75, %s77
      %p81 = scmp.eq.s32.totalorder %s20, 0
      %p82 = por %p80, %p81
      %p83 = scmp.ne.s32.totalorder %s75, %s77
      %p84 = scmp.eq.s32.totalorder %s25, 1
      %p85 = por %p83, %p84
      %p86 = scmp.ne.s32.totalorder %s77, %s78
      %p87 = scmp.eq.s32.totalorder %s25, 0
      %p88 = por %p86, %p87
      %p89 = scmp.ne.s32.totalorder %s77, %s78
      %p90 = scmp.eq.s32.totalorder %s26, 1
      %p91 = por %p89, %p90
      %p93 = scmp.ne.s32.totalorder %s78, %s92
      %p94 = scmp.eq.s32.totalorder %s26, 0
      %p95 = por %p93, %p94
      %s97 = sadd.s32 %s96, 1
      %p100 = scmp.eq.s32.totalorder %s20, 1
      %p101 = scmp.ne.s32.totalorder %s96, %s98
      %p102 = scmp.eq.s32.totalorder %s20, 0
      %p103 = por %p101, %p102
      %p104 = scmp.ne.s32.totalorder %s96, %s98
      %p105 = scmp.eq.s32.totalorder %s25, 1
      %p106 = por %p104, %p105
      %p107 = scmp.ne.s32.totalorder %s98, %s99
      %p108 = scmp.eq.s32.totalorder %s25, 0
      %p109 = por %p107, %p108
      %p110 = scmp.ne.s32.totalorder %s98, %s99
      %p111 = scmp.eq.s32.totalorder %s26, 1
      %p112 = por %p110, %p111
      %p114 = scmp.ne.s32.totalorder %s99, %s113
      %p115 = scmp.eq.s32.totalorder %s26, 0
      %p116 = por %p114, %p115
      %s118 = sadd.s32 %s117, 1
      %p121 = scmp.eq.s32.totalorder %s20, 1
      %p122 = scmp.ne.s32.totalorder %s117, %s119
      %p123 = scmp.eq.s32.totalorder %s20, 0
      %p124 = por %p122, %p123
      %p125 = scmp.ne.s32.totalorder %s117, %s119
      %p126 = scmp.eq.s32.totalorder %s25, 1
      %p127 = por %p125, %p126
      %p128 = scmp.ne.s32.totalorder %s119, %s120
      %p129 = scmp.eq.s32.totalorder %s25, 0
      %p130 = por %p128, %p129
      %p131 = scmp.ne.s32.totalorder %s119, %s120
      %p132 = scmp.eq.s32.totalorder %s26, 1
      %p133 = por %p131, %p132
      %p135 = scmp.ne.s32.totalorder %s120, %s134
      %p136 = scmp.eq.s32.totalorder %s26, 0
      %p137 = por %p135, %p136
      %s139 = sadd.s32 %s138, 1
      %p142 = scmp.eq.s32.totalorder %s20, 1
      %p143 = scmp.ne.s32.totalorder %s138, %s140
      %p144 = scmp.eq.s32.totalorder %s20, 0
      %p145 = por %p143, %p144
      %p146 = scmp.ne.s32.totalorder %s138, %s140
      %p147 = scmp.eq.s32.totalorder %s25, 1
      %p148 = por %p146, %p147
      %p149 = scmp.ne.s32.totalorder %s140, %s141
      %p150 = scmp.eq.s32.totalorder %s25, 0
      %p151 = por %p149, %p150
      %p152 = scmp.ne.s32.totalorder %s140, %s141
      %p153 = scmp.eq.s32.totalorder %s26, 1
      %p154 = por %p152, %p153
      %p156 = scmp.ne.s32.totalorder %s141, %s155
      %p157 = scmp.eq.s32.totalorder %s26, 0
      %p158 = por %p156, %p157
      %s159 = ssub.s32 %s20, %s27
      %p160 = scmp.eq.s32.totalorder %s159, 0
      %s162 = sadd.s32 %s161, 1
      %s163 = scalar_select %p160, %s161, %s162
      %p166 = pneg %p160
      %p167 = scmp.eq.s32.totalorder %s20, 1
      %p168 = por %p166, %p167
      %p169 = scmp.ne.s32.totalorder %s161, %s164
      %p170 = scmp.eq.s32.totalorder %s20, 0
      %p171 = por %p169, %p170
      %p172 = scmp.ne.s32.totalorder %s161, %s164
      %p173 = scmp.eq.s32.totalorder %s25, 1
      %p174 = por %p172, %p173
      %p175 = scmp.ne.s32.totalorder %s164, %s165
      %p176 = scmp.eq.s32.totalorder %s25, 0
      %p177 = por %p175, %p176
      %p178 = scmp.ne.s32.totalorder %s164, %s165
      %p179 = scmp.eq.s32.totalorder %s26, 1
      %p180 = por %p178, %p179
      %p182 = scmp.ne.s32.totalorder %s165, %s181
      %p183 = scmp.eq.s32.totalorder %s26, 0
      %p184 = por %p182, %p183
      %p185 = scmp.le.s32.totalorder 1, %s20
      %p186 = scmp.lt.s32.totalorder %s20, 3
      %p187 = pnand %p185, %p186
      %p188 = pneg %p187
      // Predicated region
      $region9: #{tpu_custom_call.1} parent=5 // pred_check
        _
      $region10: #{tpu_custom_call.1} parent=5 // pred_check_branch
        %190 = sbr.rel (%p187) target = $region12
      $region11: #{tpu_custom_call.1} parent=5 // pred_region
        %s191 = ssub.s32 %s20, 1
        // Predicated region
        $region13: #{tpu_custom_call.1} parent=11 // pred_check
          %p192 = pneg %p67
        $region14: #{tpu_custom_call.1} parent=11 // pred_check_branch
          %194 = sbr.rel (%p192) target = $region16
        $region15: #{tpu_custom_call.1} parent=11 // pred_region
          %196 = vsyncadd [#allocation7], 0
          %s197 = sshll.u32 %s1, 4
          %s198 = int_to_ptr.hbm [resolvable:$true] %s197
          %s199 = sshll.u32 [#allocation6], 4
          %s200 = int_to_ptr.vmem [resolvable:$true] %s199
          %205 = dma.hbm_to_vmem [thread:$0]  %s198, 512, %s200, [#allocation7], 128, 128, 8
        $region16: #{tpu_custom_call.1} parent=11 // pred_fallthru
          _
        // Predicated region
        $region17: #{tpu_custom_call.1} parent=11 // pred_check
          %p206 = pneg %p88
        $region18: #{tpu_custom_call.1} parent=11 // pred_check_branch
          %208 = sbr.rel (%p206) target = $region20
        $region19: #{tpu_custom_call.1} parent=11 // pred_region
          _
        $region20: #{tpu_custom_call.1} parent=11 // pred_fallthru
          _
        // Predicated region
        $region21: #{tpu_custom_call.1} parent=11 // pred_check
          %p209 = pneg %p109
        $region22: #{tpu_custom_call.1} parent=11 // pred_check_branch
          %211 = sbr.rel (%p209) target = $region24
        $region23: #{tpu_custom_call.1} parent=11 // pred_region
          %213 = vsyncadd [#allocation7], 0
          %s214 = sshll.u32 %s3, 4
          %s215 = int_to_ptr.hbm [resolvable:$true] %s214
          %s216 = sshll.u32 [#allocation8], 4
          %s217 = int_to_ptr.vmem [resolvable:$true] %s216
          %222 = dma.hbm_to_vmem [thread:$0]  %s215, 512, %s217, [#allocation7], 128, 128, 8
        $region24: #{tpu_custom_call.1} parent=11 // pred_fallthru
          _
        // Predicated region
        $region25: #{tpu_custom_call.1} parent=11 // pred_check
          %p223 = pneg %p130
        $region26: #{tpu_custom_call.1} parent=11 // pred_check_branch
          %225 = sbr.rel (%p223) target = $region28
        $region27: #{tpu_custom_call.1} parent=11 // pred_region
          _
        $region28: #{tpu_custom_call.1} parent=11 // pred_fallthru
          _
        // Predicated region
        $region29: #{tpu_custom_call.1} parent=11 // pred_check
          %p226 = pneg %p151
        $region30: #{tpu_custom_call.1} parent=11 // pred_check_branch
          %228 = sbr.rel (%p226) target = $region32
        $region31: #{tpu_custom_call.1} parent=11 // pred_region
          %230 = vsyncadd [#allocation10], 0
          %s231 = sshll.u32 %s5, 4
          %s232 = int_to_ptr.hbm [resolvable:$true] %s231
          %s233 = sshll.u32 [#allocation9], 4
          %s234 = int_to_ptr.vmem [resolvable:$true] %s233
          %239 = dma.hbm_to_vmem [thread:$0]  %s232, 1024, %s234, [#allocation10], 128, 128, 8
        $region32: #{tpu_custom_call.1} parent=11 // pred_fallthru
          _
      $region12: #{tpu_custom_call.1} parent=5 // pred_fallthru
        _
      %p240 = scmp.lt.s32.totalorder %s20, 2
      // Predicated region
      $region33: #{tpu_custom_call.1} parent=5 // pred_check
        %p241 = pneg %p240
      $region34: #{tpu_custom_call.1} parent=5 // pred_check_branch
        %243 = sbr.rel (%p241) target = $region36
      $region35: #{tpu_custom_call.1} parent=5 // pred_region
        // Predicated region
        $region37: #{tpu_custom_call.1} parent=35 // pred_check
          %p244 = pneg %p40
        $region38: #{tpu_custom_call.1} parent=35 // pred_check_branch
          %246 = sbr.rel (%p244) target = $region40
        $region39: #{tpu_custom_call.1} parent=35 // pred_region
          %s247 = sand.u32 %s30, 1
          %s248 = scalar_lea.sflag [#allocation4], %s247
          %s249 = sand.u32 %s30, 1
          %s250 = smul.addr %s249, 128
          %s251 = scalar_lea.vmem [#allocation3], %s250
          %s252 = smul.u32 8, %s20
          %254 = vsyncadd %s248, 0
          %s255 = smul.addr %s252, 2
          %s256 = smul.addr %s255, 8
          %s257 = scalar_lea.hbm %s0, %s256
          %s258 = sshll.u32 %s257, 4
          %s259 = int_to_ptr.hbm [resolvable:$true] %s258
          %s260 = sshll.u32 %s251, 4
          %s261 = int_to_ptr.vmem [resolvable:$true] %s260
          %266 = dma.hbm_to_vmem [thread:$0]  %s259, 2048, %s261, %s248, 128, 128, 8
        $region40: #{tpu_custom_call.1} parent=35 // pred_fallthru
          _
      $region36: #{tpu_custom_call.1} parent=5 // pred_fallthru
        _
      %p267 = scmp.le.s32.totalorder 1, %s20
      %p268 = scmp.lt.s32.totalorder %s20, 3
      %p269 = pnand %p267, %p268
      %p270 = pneg %p269
      // Predicated region
      $region41: #{tpu_custom_call.1} parent=5 // pred_check
        _
      $region42: #{tpu_custom_call.1} parent=5 // pred_check_branch
        %272 = sbr.rel (%p269) target = $region44
      $region43: #{tpu_custom_call.1} parent=5 // pred_region
        %s273 = ssub.s32 %s20, 1
        %s274 = sand.u32 %s33, 1
        %s275 = scalar_lea.sflag [#allocation4], %s274
        %s276 = sand.u32 %s33, 1
        %s277 = smul.addr %s276, 128
        %s278 = scalar_lea.vmem [#allocation3], %s277
        // Predicated region
        $region45: #{tpu_custom_call.1} parent=43 // pred_check
          %p279 = pneg %p46
        $region46: #{tpu_custom_call.1} parent=43 // pred_check_branch
          %281 = sbr.rel (%p279) target = $region48
        $region47: #{tpu_custom_call.1} parent=43 // pred_region
          %283 = dma.done %s275, 2048
        $region48: #{tpu_custom_call.1} parent=43 // pred_fallthru
          _
        // Predicated region
        $region49: #{tpu_custom_call.1} parent=43 // pred_check
          %p284 = pneg %p67
        $region50: #{tpu_custom_call.1} parent=43 // pred_check_branch
          %286 = sbr.rel (%p284) target = $region52
        $region51: #{tpu_custom_call.1} parent=43 // pred_region
          %288 = dma.done [#allocation7], 512
        $region52: #{tpu_custom_call.1} parent=43 // pred_fallthru
          _
        // Predicated region
        $region53: #{tpu_custom_call.1} parent=43 // pred_check
          %p289 = pneg %p109
        $region54: #{tpu_custom_call.1} parent=43 // pred_check_branch
          %291 = sbr.rel (%p289) target = $region56
        $region55: #{tpu_custom_call.1} parent=43 // pred_region
          %293 = dma.done [#allocation7], 512
        $region56: #{tpu_custom_call.1} parent=43 // pred_fallthru
          _
        // Predicated region
        $region57: #{tpu_custom_call.1} parent=43 // pred_check
          %p294 = pneg %p151
        $region58: #{tpu_custom_call.1} parent=43 // pred_check_branch
          %296 = sbr.rel (%p294) target = $region60
        $region59: #{tpu_custom_call.1} parent=43 // pred_region
          %298 = dma.done [#allocation10], 1024
        $region60: #{tpu_custom_call.1} parent=43 // pred_fallthru
          _
        %s299 = sand.u32 %s33, 1
        %s300 = scalar_lea.sflag [#allocation4], %s299
        %s301 = sand.u32 %s33, 1
        %s302 = smul.addr %s301, 128
        %s303 = scalar_lea.vmem [#allocation3], %s302
        %p304 = pneg %p46
        %p305 = pneg %p43
        %p306 = pneg %p67
        %p307 = pneg %p64
        %p308 = pneg %p88
        %p309 = pneg %p85
        %p310 = pneg %p109
        %p311 = pneg %p106
        %p312 = pneg %p130
        %p313 = pneg %p127
        %p314 = pneg %p151
        %p315 = pneg %p148
        %p316 = pneg %p177
        %p317 = pneg %p174
        %s318 = sand.u32 %s164, 1
        %s319 = scalar_lea.sflag [#allocation5], %s318
        %s320 = sand.u32 %s164, 1
        %s321 = smul.addr %s320, 128
        %s322 = scalar_lea.vmem [#allocation11], %s321
        %s323 = smul.u32 8, %s25
        %s324 = smul.u32 8, %s25
        %v325 = vld [vmem:[%s278] sm:$0xff]
        %v326 = vld [vmem:[%s278 + $0x8] sm:$0xff]
        %v327 = vld [vmem:[%s278 + $0x10] sm:$0xff]
        %v328 = vld [vmem:[%s278 + $0x18] sm:$0xff]
        %v329 = vld [vmem:[%s278 + $0x20] sm:$0xff]
        %v330 = vld [vmem:[%s278 + $0x28] sm:$0xff]
        %v331 = vld [vmem:[%s278 + $0x30] sm:$0xff]
        %v332 = vld [vmem:[%s278 + $0x38] sm:$0xff]
        %v333 = vld [vmem:[%s278 + $0x40] sm:$0xff]
        %v334 = vld [vmem:[%s278 + $0x48] sm:$0xff]
        %v335 = vld [vmem:[%s278 + $0x50] sm:$0xff]
        %v336 = vld [vmem:[%s278 + $0x58] sm:$0xff]
        %v337 = vld [vmem:[%s278 + $0x60] sm:$0xff]
        %v338 = vld [vmem:[%s278 + $0x68] sm:$0xff]
        %v339 = vld [vmem:[%s278 + $0x70] sm:$0xff]
        %v340 = vld [vmem:[%s278 + $0x78] sm:$0xff]
        %v341 = vld [vmem:[#allocation6] sm:$0xff]
        %v342 = vld [vmem:[#allocation6 + $0x8] sm:$0xff]
        %v343 = vld [vmem:[#allocation6 + $0x10] sm:$0xff]
        %v344 = vld [vmem:[#allocation6 + $0x18] sm:$0xff]
        %v345 = vld [vmem:[%s2] sm:$0x1]
        %v347 = vperm.slane %v345, 0
        %vm349 = vcmask 261120
        %v351 = vsel %vm349, %v325, 0
        %v354 = vsel %vm349, %v326, 0
        %v357 = vsel %vm349, %v327, 0
        %v360 = vsel %vm349, %v328, 0
        %v363 = vsel %vm349, %v329, 0
        %v366 = vsel %vm349, %v330, 0
        %v369 = vsel %vm349, %v331, 0
        %v372 = vsel %vm349, %v332, 0
        %v375 = vsel %vm349, %v333, 0
        %v378 = vsel %vm349, %v334, 0
        %v381 = vsel %vm349, %v335, 0
        %v384 = vsel %vm349, %v336, 0
        %v387 = vsel %vm349, %v337, 0
        %v390 = vsel %vm349, %v338, 0
        %v393 = vsel %vm349, %v339, 0
        %v396 = vsel %vm349, %v340, 0
        %398 = vmatpush.msra.mxu0 0.0
        %399 = vmatpush.msra.mxu0 0.0
        %400 = vmatpush.msra.mxu0 0.0
        %401 = vmatpush.msra.mxu0 0.0
        %402 = vmatpush.msra.mxu0 0.0
        %403 = vmatpush.msra.mxu0 0.0
        %404 = vmatpush.msra.mxu0 0.0
        %405 = vmatpush.msra.mxu0 0.0
        %406 = vmatpush.msra.mxu0 0.0
        %407 = vmatpush.msra.mxu0 0.0
        %408 = vmatpush.msra.mxu0 0.0
        %409 = vmatpush.msra.mxu0 0.0
        %410 = vmatpush.msra.mxu0 %v344
        %411 = vmatpush.msra.mxu0 %v343
        %412 = vmatpush.msra.mxu0 %v342
        %413 = vmatpush.msra.mxu0 %v341
        %414 = vmatmul.f32.gmra.mxu0 %v351
        %v415 = vpop.f32.mrf.mxu0
        %v416 = vadd.f32 %v347, %v415
        %417 = vmatmul.f32.gmra.mxu0 %v354
        %v418 = vpop.f32.mrf.mxu0
        %v419 = vadd.f32 %v347, %v418
        %420 = vmatmul.f32.gmra.mxu0 %v357
        %v421 = vpop.f32.mrf.mxu0
        %v422 = vadd.f32 %v347, %v421
        %423 = vmatmul.f32.gmra.mxu0 %v360
        %v424 = vpop.f32.mrf.mxu0
        %v425 = vadd.f32 %v347, %v424
        %426 = vmatmul.f32.gmra.mxu0 %v363
        %v427 = vpop.f32.mrf.mxu0
        %v428 = vadd.f32 %v347, %v427
        %429 = vmatmul.f32.gmra.mxu0 %v366
        %v430 = vpop.f32.mrf.mxu0
        %v431 = vadd.f32 %v347, %v430
        %432 = vmatmul.f32.gmra.mxu0 %v369
        %v433 = vpop.f32.mrf.mxu0
        %v434 = vadd.f32 %v347, %v433
        %435 = vmatmul.f32.gmra.mxu0 %v372
        %v436 = vpop.f32.mrf.mxu0
        %v437 = vadd.f32 %v347, %v436
        %438 = vmatmul.f32.gmra.mxu0 %v375
        %v439 = vpop.f32.mrf.mxu0
        %v440 = vadd.f32 %v347, %v439
        %441 = vmatmul.f32.gmra.mxu0 %v378
        %v442 = vpop.f32.mrf.mxu0
        %v443 = vadd.f32 %v347, %v442
        %444 = vmatmul.f32.gmra.mxu0 %v381
        %v445 = vpop.f32.mrf.mxu0
        %v446 = vadd.f32 %v347, %v445
        %447 = vmatmul.f32.gmra.mxu0 %v384
        %v448 = vpop.f32.mrf.mxu0
        %v449 = vadd.f32 %v347, %v448
        %450 = vmatmul.f32.gmra.mxu0 %v387
        %v451 = vpop.f32.mrf.mxu0
        %v452 = vadd.f32 %v347, %v451
        %453 = vmatmul.f32.gmra.mxu0 %v390
        %v454 = vpop.f32.mrf.mxu0
        %v455 = vadd.f32 %v347, %v454
        %456 = vmatmul.f32.gmra.mxu0 %v393
        %v457 = vpop.f32.mrf.mxu0
        %v458 = vadd.f32 %v347, %v457
        %459 = vmatmul.f32.gmra.mxu0 %v396
        %v460 = vpop.f32.mrf.mxu0
        %v461 = vadd.f32 %v347, %v460
        %462 = vdwg.mxu0
        %v463 = vld [vmem:[#allocation9] sm:$0xff]
        %v464 = vld [vmem:[#allocation9 + $0x8] sm:$0xff]
        %467 = vrot.lane.b32.xlu0 %v416, 96
        %v468 = vpop.permute.xlu0 %467
        %469 = vrot.lane.b32.xlu0 %v419, 96
        %v470 = vpop.permute.xlu0 %469
        %vm471 = vcmask 64512
        %v472 = vsel %vm471, %v416, 0
        %v474 = vsel %vm471, %v419, 0
        %v476 = vsel %vm471, %v468, 0
        %v478 = vsel %vm471, %v470, 0
        %480 = vmatpush.xpose.msra.mxu0 0.0
        %481 = vmatpush.xpose.msra.mxu0 0.0
        %482 = vmatpush.xpose.msra.mxu0 0.0
        %483 = vmatpush.xpose.msra.mxu0 0.0
        %484 = vmatpush.xpose.msra.mxu0 0.0
        %485 = vmatpush.xpose.msra.mxu0 0.0
        %486 = vmatpush.xpose.msra.mxu0 0.0
        %487 = vmatpush.xpose.msra.mxu0 0.0
        %488 = vmatpush.xpose.msra.mxu0 0.0
        %489 = vmatpush.xpose.msra.mxu0 0.0
        %490 = vmatpush.xpose.msra.mxu0 0.0
        %491 = vmatpush.xpose.msra.mxu0 0.0
        %492 = vmatpush.xpose.msra.mxu0 0.0
        %493 = vmatpush.xpose.msra.mxu0 0.0
        %494 = vmatpush.xpose.msra.mxu0 %v478
        %495 = vmatpush.xpose.msra.mxu0 %v476
        %496 = vmatmul.f32.gmra.mxu0 %v472
        %v497 = vpop.f32.mrf.mxu0
        %v498 = vadd.f32 %v463, %v497
        %499 = vmatmul.f32.gmra.mxu0 %v474
        %v500 = vpop.f32.mrf.mxu0
        %v501 = vadd.f32 %v464, %v500
        %502 = vdwg.mxu0
        %505 = vrot.lane.b32.xlu0 %v422, 96
        %v506 = vpop.permute.xlu0 %505
        %507 = vrot.lane.b32.xlu0 %v425, 96
        %v508 = vpop.permute.xlu0 %507
        %v509 = vsel %vm471, %v422, 0
        %v511 = vsel %vm471, %v425, 0
        %v513 = vsel %vm471, %v506, 0
        %v515 = vsel %vm471, %v508, 0
        %517 = vmatpush.xpose.msra.mxu0 0.0
        %518 = vmatpush.xpose.msra.mxu0 0.0
        %519 = vmatpush.xpose.msra.mxu0 0.0
        %520 = vmatpush.xpose.msra.mxu0 0.0
        %521 = vmatpush.xpose.msra.mxu0 0.0
        %522 = vmatpush.xpose.msra.mxu0 0.0
        %523 = vmatpush.xpose.msra.mxu0 0.0
        %524 = vmatpush.xpose.msra.mxu0 0.0
        %525 = vmatpush.xpose.msra.mxu0 0.0
        %526 = vmatpush.xpose.msra.mxu0 0.0
        %527 = vmatpush.xpose.msra.mxu0 0.0
        %528 = vmatpush.xpose.msra.mxu0 0.0
        %529 = vmatpush.xpose.msra.mxu0 0.0
        %530 = vmatpush.xpose.msra.mxu0 0.0
        %531 = vmatpush.xpose.msra.mxu0 %v515
        %532 = vmatpush.xpose.msra.mxu0 %v513
        %533 = vmatmul.f32.gmra.mxu0 %v509
        %v534 = vpop.f32.mrf.mxu0
        %v535 = vadd.f32 %v463, %v534
        %536 = vmatmul.f32.gmra.mxu0 %v511
        %v537 = vpop.f32.mrf.mxu0
        %v538 = vadd.f32 %v464, %v537
        %539 = vdwg.mxu0
        %542 = vrot.lane.b32.xlu0 %v428, 96
        %v543 = vpop.permute.xlu0 %542
        %544 = vrot.lane.b32.xlu0 %v431, 96
        %v545 = vpop.permute.xlu0 %544
        %v546 = vsel %vm471, %v428, 0
        %v548 = vsel %vm471, %v431, 0
        %v550 = vsel %vm471, %v543, 0
        %v552 = vsel %vm471, %v545, 0
        %554 = vmatpush.xpose.msra.mxu0 0.0
        %555 = vmatpush.xpose.msra.mxu0 0.0
        %556 = vmatpush.xpose.msra.mxu0 0.0
        %557 = vmatpush.xpose.msra.mxu0 0.0
        %558 = vmatpush.xpose.msra.mxu0 0.0
        %559 = vmatpush.xpose.msra.mxu0 0.0
        %560 = vmatpush.xpose.msra.mxu0 0.0
        %561 = vmatpush.xpose.msra.mxu0 0.0
        %562 = vmatpush.xpose.msra.mxu0 0.0
        %563 = vmatpush.xpose.msra.mxu0 0.0
        %564 = vmatpush.xpose.msra.mxu0 0.0
        %565 = vmatpush.xpose.msra.mxu0 0.0
        %566 = vmatpush.xpose.msra.mxu0 0.0
        %567 = vmatpush.xpose.msra.mxu0 0.0
        %568 = vmatpush.xpose.msra.mxu0 %v552
        %569 = vmatpush.xpose.msra.mxu0 %v550
        %570 = vmatmul.f32.gmra.mxu0 %v546
        %v571 = vpop.f32.mrf.mxu0
        %v572 = vadd.f32 %v463, %v571
        %573 = vmatmul.f32.gmra.mxu0 %v548
        %v574 = vpop.f32.mrf.mxu0
        %v575 = vadd.f32 %v464, %v574
        %576 = vdwg.mxu0
        %579 = vrot.lane.b32.xlu0 %v434, 96
        %v580 = vpop.permute.xlu0 %579
        %581 = vrot.lane.b32.xlu0 %v437, 96
        %v582 = vpop.permute.xlu0 %581
        %v583 = vsel %vm471, %v434, 0
        %v585 = vsel %vm471, %v437, 0
        %v587 = vsel %vm471, %v580, 0
        %v589 = vsel %vm471, %v582, 0
        %591 = vmatpush.xpose.msra.mxu0 0.0
        %592 = vmatpush.xpose.msra.mxu0 0.0
        %593 = vmatpush.xpose.msra.mxu0 0.0
        %594 = vmatpush.xpose.msra.mxu0 0.0
        %595 = vmatpush.xpose.msra.mxu0 0.0
        %596 = vmatpush.xpose.msra.mxu0 0.0
        %597 = vmatpush.xpose.msra.mxu0 0.0
        %598 = vmatpush.xpose.msra.mxu0 0.0
        %599 = vmatpush.xpose.msra.mxu0 0.0
        %600 = vmatpush.xpose.msra.mxu0 0.0
        %601 = vmatpush.xpose.msra.mxu0 0.0
        %602 = vmatpush.xpose.msra.mxu0 0.0
        %603 = vmatpush.xpose.msra.mxu0 0.0
        %604 = vmatpush.xpose.msra.mxu0 0.0
        %605 = vmatpush.xpose.msra.mxu0 %v589
        %606 = vmatpush.xpose.msra.mxu0 %v587
        %607 = vmatmul.f32.gmra.mxu0 %v583
        %v608 = vpop.f32.mrf.mxu0
        %v609 = vadd.f32 %v463, %v608
        %610 = vmatmul.f32.gmra.mxu0 %v585
        %v611 = vpop.f32.mrf.mxu0
        %v612 = vadd.f32 %v464, %v611
        %613 = vdwg.mxu0
        %616 = vrot.lane.b32.xlu0 %v440, 96
        %v617 = vpop.permute.xlu0 %616
        %618 = vrot.lane.b32.xlu0 %v443, 96
        %v619 = vpop.permute.xlu0 %618
        %v620 = vsel %vm471, %v440, 0
        %v622 = vsel %vm471, %v443, 0
        %v624 = vsel %vm471, %v617, 0
        %v626 = vsel %vm471, %v619, 0
        %628 = vmatpush.xpose.msra.mxu0 0.0
        %629 = vmatpush.xpose.msra.mxu0 0.0
        %630 = vmatpush.xpose.msra.mxu0 0.0
        %631 = vmatpush.xpose.msra.mxu0 0.0
        %632 = vmatpush.xpose.msra.mxu0 0.0
        %633 = vmatpush.xpose.msra.mxu0 0.0
        %634 = vmatpush.xpose.msra.mxu0 0.0
        %635 = vmatpush.xpose.msra.mxu0 0.0
        %636 = vmatpush.xpose.msra.mxu0 0.0
        %637 = vmatpush.xpose.msra.mxu0 0.0
        %638 = vmatpush.xpose.msra.mxu0 0.0
        %639 = vmatpush.xpose.msra.mxu0 0.0
        %640 = vmatpush.xpose.msra.mxu0 0.0
        %641 = vmatpush.xpose.msra.mxu0 0.0
        %642 = vmatpush.xpose.msra.mxu0 %v626
        %643 = vmatpush.xpose.msra.mxu0 %v624
        %644 = vmatmul.f32.gmra.mxu0 %v620
        %v645 = vpop.f32.mrf.mxu0
        %v646 = vadd.f32 %v463, %v645
        %647 = vmatmul.f32.gmra.mxu0 %v622
        %v648 = vpop.f32.mrf.mxu0
        %v649 = vadd.f32 %v464, %v648
        %650 = vdwg.mxu0
        %653 = vrot.lane.b32.xlu0 %v446, 96
        %v654 = vpop.permute.xlu0 %653
        %655 = vrot.lane.b32.xlu0 %v449, 96
        %v656 = vpop.permute.xlu0 %655
        %v657 = vsel %vm471, %v446, 0
        %v659 = vsel %vm471, %v449, 0
        %v661 = vsel %vm471, %v654, 0
        %v663 = vsel %vm471, %v656, 0
        %665 = vmatpush.xpose.msra.mxu0 0.0
        %666 = vmatpush.xpose.msra.mxu0 0.0
        %667 = vmatpush.xpose.msra.mxu0 0.0
        %668 = vmatpush.xpose.msra.mxu0 0.0
        %669 = vmatpush.xpose.msra.mxu0 0.0
        %670 = vmatpush.xpose.msra.mxu0 0.0
        %671 = vmatpush.xpose.msra.mxu0 0.0
        %672 = vmatpush.xpose.msra.mxu0 0.0
        %673 = vmatpush.xpose.msra.mxu0 0.0
        %674 = vmatpush.xpose.msra.mxu0 0.0
        %675 = vmatpush.xpose.msra.mxu0 0.0
        %676 = vmatpush.xpose.msra.mxu0 0.0
        %677 = vmatpush.xpose.msra.mxu0 0.0
        %678 = vmatpush.xpose.msra.mxu0 0.0
        %679 = vmatpush.xpose.msra.mxu0 %v663
        %680 = vmatpush.xpose.msra.mxu0 %v661
        %681 = vmatmul.f32.gmra.mxu0 %v657
        %v682 = vpop.f32.mrf.mxu0
        %v683 = vadd.f32 %v463, %v682
        %684 = vmatmul.f32.gmra.mxu0 %v659
        %v685 = vpop.f32.mrf.mxu0
        %v686 = vadd.f32 %v464, %v685
        %687 = vdwg.mxu0
        %690 = vrot.lane.b32.xlu0 %v452, 96
        %v691 = vpop.permute.xlu0 %690
        %692 = vrot.lane.b32.xlu0 %v455, 96
        %v693 = vpop.permute.xlu0 %692
        %v694 = vsel %vm471, %v452, 0
        %v696 = vsel %vm471, %v455, 0
        %v698 = vsel %vm471, %v691, 0
        %v700 = vsel %vm471, %v693, 0
        %702 = vmatpush.xpose.msra.mxu0 0.0
        %703 = vmatpush.xpose.msra.mxu0 0.0
        %704 = vmatpush.xpose.msra.mxu0 0.0
        %705 = vmatpush.xpose.msra.mxu0 0.0
        %706 = vmatpush.xpose.msra.mxu0 0.0
        %707 = vmatpush.xpose.msra.mxu0 0.0
        %708 = vmatpush.xpose.msra.mxu0 0.0
        %709 = vmatpush.xpose.msra.mxu0 0.0
        %710 = vmatpush.xpose.msra.mxu0 0.0
        %711 = vmatpush.xpose.msra.mxu0 0.0
        %712 = vmatpush.xpose.msra.mxu0 0.0
        %713 = vmatpush.xpose.msra.mxu0 0.0
        %714 = vmatpush.xpose.msra.mxu0 0.0
        %715 = vmatpush.xpose.msra.mxu0 0.0
        %716 = vmatpush.xpose.msra.mxu0 %v700
        %717 = vmatpush.xpose.msra.mxu0 %v698
        %718 = vmatmul.f32.gmra.mxu0 %v694
        %v719 = vpop.f32.mrf.mxu0
        %v720 = vadd.f32 %v463, %v719
        %721 = vmatmul.f32.gmra.mxu0 %v696
        %v722 = vpop.f32.mrf.mxu0
        %v723 = vadd.f32 %v464, %v722
        %724 = vdwg.mxu0
        %727 = vrot.lane.b32.xlu0 %v458, 96
        %v728 = vpop.permute.xlu0 %727
        %729 = vrot.lane.b32.xlu0 %v461, 96
        %v730 = vpop.permute.xlu0 %729
        %v731 = vsel %vm471, %v458, 0
        %v733 = vsel %vm471, %v461, 0
        %v735 = vsel %vm471, %v728, 0
        %v737 = vsel %vm471, %v730, 0
        %739 = vmatpush.xpose.msra.mxu0 0.0
        %740 = vmatpush.xpose.msra.mxu0 0.0
        %741 = vmatpush.xpose.msra.mxu0 0.0
        %742 = vmatpush.xpose.msra.mxu0 0.0
        %743 = vmatpush.xpose.msra.mxu0 0.0
        %744 = vmatpush.xpose.msra.mxu0 0.0
        %745 = vmatpush.xpose.msra.mxu0 0.0
        %746 = vmatpush.xpose.msra.mxu0 0.0
        %747 = vmatpush.xpose.msra.mxu0 0.0
        %748 = vmatpush.xpose.msra.mxu0 0.0
        %749 = vmatpush.xpose.msra.mxu0 0.0
        %750 = vmatpush.xpose.msra.mxu0 0.0
        %751 = vmatpush.xpose.msra.mxu0 0.0
        %752 = vmatpush.xpose.msra.mxu0 0.0
        %753 = vmatpush.xpose.msra.mxu0 %v737
        %754 = vmatpush.xpose.msra.mxu0 %v735
        %755 = vmatmul.f32.gmra.mxu0 %v731
        %v756 = vpop.f32.mrf.mxu0
        %v757 = vadd.f32 %v463, %v756
        %758 = vmatmul.f32.gmra.mxu0 %v733
        %v759 = vpop.f32.mrf.mxu0
        %v760 = vadd.f32 %v464, %v759
        %761 = vdwg.mxu0
        %vm762 = vcmask 130048
        %v763 = vsel %vm762, %v498, -inf
        %764 = vmax.xlane.f32.xlu0 %v763
        %v765 = vpop.xlane.xlu0 %764
        %v766 = vsel %vm762, %v501, -inf
        %767 = vmax.xlane.f32.xlu0 %v766
        %v768 = vpop.xlane.xlu0 %767
        %v769 = vsel %vm762, %v535, -inf
        %770 = vmax.xlane.f32.xlu0 %v769
        %v771 = vpop.xlane.xlu0 %770
        %v772 = vsel %vm762, %v538, -inf
        %773 = vmax.xlane.f32.xlu0 %v772
        %v774 = vpop.xlane.xlu0 %773
        %v775 = vsel %vm762, %v572, -inf
        %776 = vmax.xlane.f32.xlu0 %v775
        %v777 = vpop.xlane.xlu0 %776
        %v778 = vsel %vm762, %v575, -inf
        %779 = vmax.xlane.f32.xlu0 %v778
        %v780 = vpop.xlane.xlu0 %779
        %v781 = vsel %vm762, %v609, -inf
        %782 = vmax.xlane.f32.xlu0 %v781
        %v783 = vpop.xlane.xlu0 %782
        %v784 = vsel %vm762, %v612, -inf
        %785 = vmax.xlane.f32.xlu0 %v784
        %v786 = vpop.xlane.xlu0 %785
        %v787 = vsel %vm762, %v646, -inf
        %788 = vmax.xlane.f32.xlu0 %v787
        %v789 = vpop.xlane.xlu0 %788
        %v790 = vsel %vm762, %v649, -inf
        %791 = vmax.xlane.f32.xlu0 %v790
        %v792 = vpop.xlane.xlu0 %791
        %v793 = vsel %vm762, %v683, -inf
        %794 = vmax.xlane.f32.xlu0 %v793
        %v795 = vpop.xlane.xlu0 %794
        %v796 = vsel %vm762, %v686, -inf
        %797 = vmax.xlane.f32.xlu0 %v796
        %v798 = vpop.xlane.xlu0 %797
        %v799 = vsel %vm762, %v720, -inf
        %800 = vmax.xlane.f32.xlu0 %v799
        %v801 = vpop.xlane.xlu0 %800
        %v802 = vsel %vm762, %v723, -inf
        %803 = vmax.xlane.f32.xlu0 %v802
        %v804 = vpop.xlane.xlu0 %803
        %v805 = vsel %vm762, %v757, -inf
        %806 = vmax.xlane.f32.xlu0 %v805
        %v807 = vpop.xlane.xlu0 %806
        %v808 = vsel %vm762, %v760, -inf
        %809 = vmax.xlane.f32.xlu0 %v808
        %v810 = vpop.xlane.xlu0 %809
        %v811 = vsub.f32 %v498, %v765
        %v812 = vsub.f32 %v501, %v768
        %v813 = vsub.f32 %v535, %v771
        %v814 = vsub.f32 %v538, %v774
        %v815 = vsub.f32 %v572, %v777
        %v816 = vsub.f32 %v575, %v780
        %v817 = vsub.f32 %v609, %v783
        %v818 = vsub.f32 %v612, %v786
        %v819 = vsub.f32 %v646, %v789
        %v820 = vsub.f32 %v649, %v792
        %v821 = vsub.f32 %v683, %v795
        %v822 = vsub.f32 %v686, %v798
        %v823 = vsub.f32 %v720, %v801
        %v824 = vsub.f32 %v723, %v804
        %v825 = vsub.f32 %v757, %v807
        %v826 = vsub.f32 %v760, %v810
        %v827 = vmul.f32 %v811, 1.442695
        %v828 = vpow.pop %v827
        %v829 = vmul.f32 %v812, 1.442695
        %v830 = vpow.pop %v829
        %v831 = vmul.f32 %v813, 1.442695
        %v832 = vpow.pop %v831
        %v833 = vmul.f32 %v814, 1.442695
        %v834 = vpow.pop %v833
        %v835 = vmul.f32 %v815, 1.442695
        %v836 = vpow.pop %v835
        %v837 = vmul.f32 %v816, 1.442695
        %v838 = vpow.pop %v837
        %v839 = vmul.f32 %v817, 1.442695
        %v840 = vpow.pop %v839
        %v841 = vmul.f32 %v818, 1.442695
        %v842 = vpow.pop %v841
        %v843 = vmul.f32 %v819, 1.442695
        %v844 = vpow.pop %v843
        %v845 = vmul.f32 %v820, 1.442695
        %v846 = vpow.pop %v845
        %v847 = vmul.f32 %v821, 1.442695
        %v848 = vpow.pop %v847
        %v849 = vmul.f32 %v822, 1.442695
        %v850 = vpow.pop %v849
        %v851 = vmul.f32 %v823, 1.442695
        %v852 = vpow.pop %v851
        %v853 = vmul.f32 %v824, 1.442695
        %v854 = vpow.pop %v853
        %v855 = vmul.f32 %v825, 1.442695
        %v856 = vpow.pop %v855
        %v857 = vmul.f32 %v826, 1.442695
        %v858 = vpow.pop %v857
        %v859 = vsel %vm762, %v828, 0.0
        %860 = vadd.xlane.f32.xlu0 %v859
        %v861 = vpop.xlane.xlu0 %860
        %v862 = vsel %vm762, %v830, 0.0
        %863 = vadd.xlane.f32.xlu0 %v862
        %v864 = vpop.xlane.xlu0 %863
        %v865 = vsel %vm762, %v832, 0.0
        %866 = vadd.xlane.f32.xlu0 %v865
        %v867 = vpop.xlane.xlu0 %866
        %v868 = vsel %vm762, %v834, 0.0
        %869 = vadd.xlane.f32.xlu0 %v868
        %v870 = vpop.xlane.xlu0 %869
        %v871 = vsel %vm762, %v836, 0.0
        %872 = vadd.xlane.f32.xlu0 %v871
        %v873 = vpop.xlane.xlu0 %872
        %v874 = vsel %vm762, %v838, 0.0
        %875 = vadd.xlane.f32.xlu0 %v874
        %v876 = vpop.xlane.xlu0 %875
        %v877 = vsel %vm762, %v840, 0.0
        %878 = vadd.xlane.f32.xlu0 %v877
        %v879 = vpop.xlane.xlu0 %878
        %v880 = vsel %vm762, %v842, 0.0
        %881 = vadd.xlane.f32.xlu0 %v880
        %v882 = vpop.xlane.xlu0 %881
        %v883 = vsel %vm762, %v844, 0.0
        %884 = vadd.xlane.f32.xlu0 %v883
        %v885 = vpop.xlane.xlu0 %884
        %v886 = vsel %vm762, %v846, 0.0
        %887 = vadd.xlane.f32.xlu0 %v886
        %v888 = vpop.xlane.xlu0 %887
        %v889 = vsel %vm762, %v848, 0.0
        %890 = vadd.xlane.f32.xlu0 %v889
        %v891 = vpop.xlane.xlu0 %890
        %v892 = vsel %vm762, %v850, 0.0
        %893 = vadd.xlane.f32.xlu0 %v892
        %v894 = vpop.xlane.xlu0 %893
        %v895 = vsel %vm762, %v852, 0.0
        %896 = vadd.xlane.f32.xlu0 %v895
        %v897 = vpop.xlane.xlu0 %896
        %v898 = vsel %vm762, %v854, 0.0
        %899 = vadd.xlane.f32.xlu0 %v898
        %v900 = vpop.xlane.xlu0 %899
        %v901 = vsel %vm762, %v856, 0.0
        %902 = vadd.xlane.f32.xlu0 %v901
        %v903 = vpop.xlane.xlu0 %902
        %v904 = vsel %vm762, %v858, 0.0
        %905 = vadd.xlane.f32.xlu0 %v904
        %v906 = vpop.xlane.xlu0 %905
        %v907 = vrcp.pop %v861
        %v908 = vrcp.pop %v864
        %v909 = vrcp.pop %v867
        %v910 = vrcp.pop %v870
        %v911 = vrcp.pop %v873
        %v912 = vrcp.pop %v876
        %v913 = vrcp.pop %v879
        %v914 = vrcp.pop %v882
        %v915 = vrcp.pop %v885
        %v916 = vrcp.pop %v888
        %v917 = vrcp.pop %v891
        %v918 = vrcp.pop %v894
        %v919 = vrcp.pop %v897
        %v920 = vrcp.pop %v900
        %v921 = vrcp.pop %v903
        %v922 = vrcp.pop %v906
        %v923 = vmul.f32 %v828, %v907
        %v924 = vmul.f32 %v830, %v908
        %v925 = vmul.f32 %v832, %v909
        %v926 = vmul.f32 %v834, %v910
        %v927 = vmul.f32 %v836, %v911
        %v928 = vmul.f32 %v838, %v912
        %v929 = vmul.f32 %v840, %v913
        %v930 = vmul.f32 %v842, %v914
        %v931 = vmul.f32 %v844, %v915
        %v932 = vmul.f32 %v846, %v916
        %v933 = vmul.f32 %v848, %v917
        %v934 = vmul.f32 %v850, %v918
        %v935 = vmul.f32 %v852, %v919
        %v936 = vmul.f32 %v854, %v920
        %v937 = vmul.f32 %v856, %v921
        %v938 = vmul.f32 %v858, %v922
        %939 = vrot.lane.b32.xlu0 %v416, 64
        %v940 = vpop.permute.xlu0 %939
        %941 = vrot.lane.b32.xlu0 %v419, 64
        %v942 = vpop.permute.xlu0 %941
        %v946 = vsel %vm762, %v923, 0
        %v949 = vsel %vm762, %v924, 0
        %951 = vmatpush.msra.mxu0 0.0
        %952 = vmatpush.msra.mxu0 0.0
        %953 = vmatpush.msra.mxu0 0.0
        %954 = vmatpush.msra.mxu0 0.0
        %955 = vmatpush.msra.mxu0 0.0
        %956 = vmatpush.msra.mxu0 0.0
        %957 = vmatpush.msra.mxu0 0.0
        %958 = vmatpush.msra.mxu0 0.0
        %959 = vmatpush.msra.mxu0 0.0
        %960 = vmatpush.msra.mxu0 0.0
        %961 = vmatpush.msra.mxu0 0.0
        %962 = vmatpush.msra.mxu0 0.0
        %963 = vmatpush.msra.mxu0 0.0
        %964 = vmatpush.msra.mxu0 0.0
        %965 = vmatpush.msra.mxu0 %v942
        %966 = vmatpush.msra.mxu0 %v940
        %967 = vmatmul.f32.gmra.mxu0 %v946
        %v968 = vpop.f32.mrf.mxu0
        %v969 = vadd.f32 0.0, %v968
        %970 = vmatmul.f32.gmra.mxu0 %v949
        %v971 = vpop.f32.mrf.mxu0
        %v972 = vadd.f32 0.0, %v971
        %973 = vdwg.mxu0
        %974 = vrot.lane.b32.xlu0 %v422, 64
        %v975 = vpop.permute.xlu0 %974
        %976 = vrot.lane.b32.xlu0 %v425, 64
        %v977 = vpop.permute.xlu0 %976
        %v981 = vsel %vm762, %v925, 0
        %v984 = vsel %vm762, %v926, 0
        %986 = vmatpush.msra.mxu0 0.0
        %987 = vmatpush.msra.mxu0 0.0
        %988 = vmatpush.msra.mxu0 0.0
        %989 = vmatpush.msra.mxu0 0.0
        %990 = vmatpush.msra.mxu0 0.0
        %991 = vmatpush.msra.mxu0 0.0
        %992 = vmatpush.msra.mxu0 0.0
        %993 = vmatpush.msra.mxu0 0.0
        %994 = vmatpush.msra.mxu0 0.0
        %995 = vmatpush.msra.mxu0 0.0
        %996 = vmatpush.msra.mxu0 0.0
        %997 = vmatpush.msra.mxu0 0.0
        %998 = vmatpush.msra.mxu0 0.0
        %999 = vmatpush.msra.mxu0 0.0
        %1000 = vmatpush.msra.mxu0 %v977
        %1001 = vmatpush.msra.mxu0 %v975
        %1002 = vmatmul.f32.gmra.mxu0 %v981
        %v1003 = vpop.f32.mrf.mxu0
        %v1004 = vadd.f32 0.0, %v1003
        %1005 = vmatmul.f32.gmra.mxu0 %v984
        %v1006 = vpop.f32.mrf.mxu0
        %v1007 = vadd.f32 0.0, %v1006
        %1008 = vdwg.mxu0
        %1009 = vrot.lane.b32.xlu0 %v428, 64
        %v1010 = vpop.permute.xlu0 %1009
        %1011 = vrot.lane.b32.xlu0 %v431, 64
        %v1012 = vpop.permute.xlu0 %1011
        %v1016 = vsel %vm762, %v927, 0
        %v1019 = vsel %vm762, %v928, 0
        %1021 = vmatpush.msra.mxu0 0.0
        %1022 = vmatpush.msra.mxu0 0.0
        %1023 = vmatpush.msra.mxu0 0.0
        %1024 = vmatpush.msra.mxu0 0.0
        %1025 = vmatpush.msra.mxu0 0.0
        %1026 = vmatpush.msra.mxu0 0.0
        %1027 = vmatpush.msra.mxu0 0.0
        %1028 = vmatpush.msra.mxu0 0.0
        %1029 = vmatpush.msra.mxu0 0.0
        %1030 = vmatpush.msra.mxu0 0.0
        %1031 = vmatpush.msra.mxu0 0.0
        %1032 = vmatpush.msra.mxu0 0.0
        %1033 = vmatpush.msra.mxu0 0.0
        %1034 = vmatpush.msra.mxu0 0.0
        %1035 = vmatpush.msra.mxu0 %v1012
        %1036 = vmatpush.msra.mxu0 %v1010
        %1037 = vmatmul.f32.gmra.mxu0 %v1016
        %v1038 = vpop.f32.mrf.mxu0
        %v1039 = vadd.f32 0.0, %v1038
        %1040 = vmatmul.f32.gmra.mxu0 %v1019
        %v1041 = vpop.f32.mrf.mxu0
        %v1042 = vadd.f32 0.0, %v1041
        %1043 = vdwg.mxu0
        %1044 = vrot.lane.b32.xlu0 %v434, 64
        %v1045 = vpop.permute.xlu0 %1044
        %1046 = vrot.lane.b32.xlu0 %v437, 64
        %v1047 = vpop.permute.xlu0 %1046
        %v1051 = vsel %vm762, %v929, 0
        %v1054 = vsel %vm762, %v930, 0
        %1056 = vmatpush.msra.mxu0 0.0
        %1057 = vmatpush.msra.mxu0 0.0
        %1058 = vmatpush.msra.mxu0 0.0
        %1059 = vmatpush.msra.mxu0 0.0
        %1060 = vmatpush.msra.mxu0 0.0
        %1061 = vmatpush.msra.mxu0 0.0
        %1062 = vmatpush.msra.mxu0 0.0
        %1063 = vmatpush.msra.mxu0 0.0
        %1064 = vmatpush.msra.mxu0 0.0
        %1065 = vmatpush.msra.mxu0 0.0
        %1066 = vmatpush.msra.mxu0 0.0
        %1067 = vmatpush.msra.mxu0 0.0
        %1068 = vmatpush.msra.mxu0 0.0
        %1069 = vmatpush.msra.mxu0 0.0
        %1070 = vmatpush.msra.mxu0 %v1047
        %1071 = vmatpush.msra.mxu0 %v1045
        %1072 = vmatmul.f32.gmra.mxu0 %v1051
        %v1073 = vpop.f32.mrf.mxu0
        %v1074 = vadd.f32 0.0, %v1073
        %1075 = vmatmul.f32.gmra.mxu0 %v1054
        %v1076 = vpop.f32.mrf.mxu0
        %v1077 = vadd.f32 0.0, %v1076
        %1078 = vdwg.mxu0
        %1079 = vrot.lane.b32.xlu0 %v440, 64
        %v1080 = vpop.permute.xlu0 %1079
        %1081 = vrot.lane.b32.xlu0 %v443, 64
        %v1082 = vpop.permute.xlu0 %1081
        %v1086 = vsel %vm762, %v931, 0
        %v1089 = vsel %vm762, %v932, 0
        %1091 = vmatpush.msra.mxu0 0.0
        %1092 = vmatpush.msra.mxu0 0.0
        %1093 = vmatpush.msra.mxu0 0.0
        %1094 = vmatpush.msra.mxu0 0.0
        %1095 = vmatpush.msra.mxu0 0.0
        %1096 = vmatpush.msra.mxu0 0.0
        %1097 = vmatpush.msra.mxu0 0.0
        %1098 = vmatpush.msra.mxu0 0.0
        %1099 = vmatpush.msra.mxu0 0.0
        %1100 = vmatpush.msra.mxu0 0.0
        %1101 = vmatpush.msra.mxu0 0.0
        %1102 = vmatpush.msra.mxu0 0.0
        %1103 = vmatpush.msra.mxu0 0.0
        %1104 = vmatpush.msra.mxu0 0.0
        %1105 = vmatpush.msra.mxu0 %v1082
        %1106 = vmatpush.msra.mxu0 %v1080
        %1107 = vmatmul.f32.gmra.mxu0 %v1086
        %v1108 = vpop.f32.mrf.mxu0
        %v1109 = vadd.f32 0.0, %v1108
        %1110 = vmatmul.f32.gmra.mxu0 %v1089
        %v1111 = vpop.f32.mrf.mxu0
        %v1112 = vadd.f32 0.0, %v1111
        %1113 = vdwg.mxu0
        %1114 = vrot.lane.b32.xlu0 %v446, 64
        %v1115 = vpop.permute.xlu0 %1114
        %1116 = vrot.lane.b32.xlu0 %v449, 64
        %v1117 = vpop.permute.xlu0 %1116
        %v1121 = vsel %vm762, %v933, 0
        %v1124 = vsel %vm762, %v934, 0
        %1126 = vmatpush.msra.mxu0 0.0
        %1127 = vmatpush.msra.mxu0 0.0
        %1128 = vmatpush.msra.mxu0 0.0
        %1129 = vmatpush.msra.mxu0 0.0
        %1130 = vmatpush.msra.mxu0 0.0
        %1131 = vmatpush.msra.mxu0 0.0
        %1132 = vmatpush.msra.mxu0 0.0
        %1133 = vmatpush.msra.mxu0 0.0
        %1134 = vmatpush.msra.mxu0 0.0
        %1135 = vmatpush.msra.mxu0 0.0
        %1136 = vmatpush.msra.mxu0 0.0
        %1137 = vmatpush.msra.mxu0 0.0
        %1138 = vmatpush.msra.mxu0 0.0
        %1139 = vmatpush.msra.mxu0 0.0
        %1140 = vmatpush.msra.mxu0 %v1117
        %1141 = vmatpush.msra.mxu0 %v1115
        %1142 = vmatmul.f32.gmra.mxu0 %v1121
        %v1143 = vpop.f32.mrf.mxu0
        %v1144 = vadd.f32 0.0, %v1143
        %1145 = vmatmul.f32.gmra.mxu0 %v1124
        %v1146 = vpop.f32.mrf.mxu0
        %v1147 = vadd.f32 0.0, %v1146
        %1148 = vdwg.mxu0
        %1149 = vrot.lane.b32.xlu0 %v452, 64
        %v1150 = vpop.permute.xlu0 %1149
        %1151 = vrot.lane.b32.xlu0 %v455, 64
        %v1152 = vpop.permute.xlu0 %1151
        %v1156 = vsel %vm762, %v935, 0
        %v1159 = vsel %vm762, %v936, 0
        %1161 = vmatpush.msra.mxu0 0.0
        %1162 = vmatpush.msra.mxu0 0.0
        %1163 = vmatpush.msra.mxu0 0.0
        %1164 = vmatpush.msra.mxu0 0.0
        %1165 = vmatpush.msra.mxu0 0.0
        %1166 = vmatpush.msra.mxu0 0.0
        %1167 = vmatpush.msra.mxu0 0.0
        %1168 = vmatpush.msra.mxu0 0.0
        %1169 = vmatpush.msra.mxu0 0.0
        %1170 = vmatpush.msra.mxu0 0.0
        %1171 = vmatpush.msra.mxu0 0.0
        %1172 = vmatpush.msra.mxu0 0.0
        %1173 = vmatpush.msra.mxu0 0.0
        %1174 = vmatpush.msra.mxu0 0.0
        %1175 = vmatpush.msra.mxu0 %v1152
        %1176 = vmatpush.msra.mxu0 %v1150
        %1177 = vmatmul.f32.gmra.mxu0 %v1156
        %v1178 = vpop.f32.mrf.mxu0
        %v1179 = vadd.f32 0.0, %v1178
        %1180 = vmatmul.f32.gmra.mxu0 %v1159
        %v1181 = vpop.f32.mrf.mxu0
        %v1182 = vadd.f32 0.0, %v1181
        %1183 = vdwg.mxu0
        %1184 = vrot.lane.b32.xlu0 %v458, 64
        %v1185 = vpop.permute.xlu0 %1184
        %1186 = vrot.lane.b32.xlu0 %v461, 64
        %v1187 = vpop.permute.xlu0 %1186
        %v1191 = vsel %vm762, %v937, 0
        %v1194 = vsel %vm762, %v938, 0
        %1196 = vmatpush.msra.mxu0 0.0
        %1197 = vmatpush.msra.mxu0 0.0
        %1198 = vmatpush.msra.mxu0 0.0
        %1199 = vmatpush.msra.mxu0 0.0
        %1200 = vmatpush.msra.mxu0 0.0
        %1201 = vmatpush.msra.mxu0 0.0
        %1202 = vmatpush.msra.mxu0 0.0
        %1203 = vmatpush.msra.mxu0 0.0
        %1204 = vmatpush.msra.mxu0 0.0
        %1205 = vmatpush.msra.mxu0 0.0
        %1206 = vmatpush.msra.mxu0 0.0
        %1207 = vmatpush.msra.mxu0 0.0
        %1208 = vmatpush.msra.mxu0 0.0
        %1209 = vmatpush.msra.mxu0 0.0
        %1210 = vmatpush.msra.mxu0 %v1187
        %1211 = vmatpush.msra.mxu0 %v1185
        %1212 = vmatmul.f32.gmra.mxu0 %v1191
        %v1213 = vpop.f32.mrf.mxu0
        %v1214 = vadd.f32 0.0, %v1213
        %1215 = vmatmul.f32.gmra.mxu0 %v1194
        %v1216 = vpop.f32.mrf.mxu0
        %v1217 = vadd.f32 0.0, %v1216
        %1218 = vdwg.mxu0
        %1219 = vst.msk [vmem:[#allocation2] sm:$0xff] %vm471, %v969
        %1220 = vst.msk [vmem:[#allocation2 + $0x8] sm:$0xff] %vm471, %v972
        %1221 = vst.msk [vmem:[#allocation2 + $0x10] sm:$0xff] %vm471, %v1004
        %1222 = vst.msk [vmem:[#allocation2 + $0x18] sm:$0xff] %vm471, %v1007
        %1223 = vst.msk [vmem:[#allocation2 + $0x20] sm:$0xff] %vm471, %v1039
        %1224 = vst.msk [vmem:[#allocation2 + $0x28] sm:$0xff] %vm471, %v1042
        %1225 = vst.msk [vmem:[#allocation2 + $0x30] sm:$0xff] %vm471, %v1074
        %1226 = vst.msk [vmem:[#allocation2 + $0x38] sm:$0xff] %vm471, %v1077
        %1227 = vst.msk [vmem:[#allocation2 + $0x40] sm:$0xff] %vm471, %v1109
        %1228 = vst.msk [vmem:[#allocation2 + $0x48] sm:$0xff] %vm471, %v1112
        %1229 = vst.msk [vmem:[#allocation2 + $0x50] sm:$0xff] %vm471, %v1144
        %1230 = vst.msk [vmem:[#allocation2 + $0x58] sm:$0xff] %vm471, %v1147
        %1231 = vst.msk [vmem:[#allocation2 + $0x60] sm:$0xff] %vm471, %v1179
        %1232 = vst.msk [vmem:[#allocation2 + $0x68] sm:$0xff] %vm471, %v1182
        %1233 = vst.msk [vmem:[#allocation2 + $0x70] sm:$0xff] %vm471, %v1214
        %1234 = vst.msk [vmem:[#allocation2 + $0x78] sm:$0xff] %vm471, %v1217
        %s1235 = scalar_lea.vmem [#allocation9], 16
        %v1236 = vld [vmem:[%s1235] sm:$0xff]
        %v1237 = vld [vmem:[%s1235 + $0x8] sm:$0xff]
        %1238 = vrot.lane.b32.xlu0 %v416, 120
        %v1239 = vpop.permute.xlu0 %1238
        %1240 = vrot.lane.b32.xlu0 %v419, 120
        %v1241 = vpop.permute.xlu0 %1240
        %1242 = vrot.lane.b32.xlu0 %v416, 88
        %v1243 = vpop.permute.xlu0 %1242
        %1244 = vrot.lane.b32.xlu0 %v419, 88
        %v1245 = vpop.permute.xlu0 %1244
        %v1246 = vsel %vm471, %v1239, 0
        %v1248 = vsel %vm471, %v1241, 0
        %v1250 = vsel %vm471, %v1243, 0
        %v1252 = vsel %vm471, %v1245, 0
        %1254 = vmatpush.xpose.msra.mxu0 0.0
        %1255 = vmatpush.xpose.msra.mxu0 0.0
        %1256 = vmatpush.xpose.msra.mxu0 0.0
        %1257 = vmatpush.xpose.msra.mxu0 0.0
        %1258 = vmatpush.xpose.msra.mxu0 0.0
        %1259 = vmatpush.xpose.msra.mxu0 0.0
        %1260 = vmatpush.xpose.msra.mxu0 0.0
        %1261 = vmatpush.xpose.msra.mxu0 0.0
        %1262 = vmatpush.xpose.msra.mxu0 0.0
        %1263 = vmatpush.xpose.msra.mxu0 0.0
        %1264 = vmatpush.xpose.msra.mxu0 0.0
        %1265 = vmatpush.xpose.msra.mxu0 0.0
        %1266 = vmatpush.xpose.msra.mxu0 0.0
        %1267 = vmatpush.xpose.msra.mxu0 0.0
        %1268 = vmatpush.xpose.msra.mxu0 %v1252
        %1269 = vmatpush.xpose.msra.mxu0 %v1250
        %1270 = vmatmul.f32.gmra.mxu0 %v1246
        %v1271 = vpop.f32.mrf.mxu0
        %v1272 = vadd.f32 %v1236, %v1271
        %1273 = vmatmul.f32.gmra.mxu0 %v1248
        %v1274 = vpop.f32.mrf.mxu0
        %v1275 = vadd.f32 %v1237, %v1274
        %1276 = vdwg.mxu0
        %1277 = vrot.lane.b32.xlu0 %v422, 120
        %v1278 = vpop.permute.xlu0 %1277
        %1279 = vrot.lane.b32.xlu0 %v425, 120
        %v1280 = vpop.permute.xlu0 %1279
        %1281 = vrot.lane.b32.xlu0 %v422, 88
        %v1282 = vpop.permute.xlu0 %1281
        %1283 = vrot.lane.b32.xlu0 %v425, 88
        %v1284 = vpop.permute.xlu0 %1283
        %v1285 = vsel %vm471, %v1278, 0
        %v1287 = vsel %vm471, %v1280, 0
        %v1289 = vsel %vm471, %v1282, 0
        %v1291 = vsel %vm471, %v1284, 0
        %1293 = vmatpush.xpose.msra.mxu0 0.0
        %1294 = vmatpush.xpose.msra.mxu0 0.0
        %1295 = vmatpush.xpose.msra.mxu0 0.0
        %1296 = vmatpush.xpose.msra.mxu0 0.0
        %1297 = vmatpush.xpose.msra.mxu0 0.0
        %1298 = vmatpush.xpose.msra.mxu0 0.0
        %1299 = vmatpush.xpose.msra.mxu0 0.0
        %1300 = vmatpush.xpose.msra.mxu0 0.0
        %1301 = vmatpush.xpose.msra.mxu0 0.0
        %1302 = vmatpush.xpose.msra.mxu0 0.0
        %1303 = vmatpush.xpose.msra.mxu0 0.0
        %1304 = vmatpush.xpose.msra.mxu0 0.0
        %1305 = vmatpush.xpose.msra.mxu0 0.0
        %1306 = vmatpush.xpose.msra.mxu0 0.0
        %1307 = vmatpush.xpose.msra.mxu0 %v1291
        %1308 = vmatpush.xpose.msra.mxu0 %v1289
        %1309 = vmatmul.f32.gmra.mxu0 %v1285
        %v1310 = vpop.f32.mrf.mxu0
        %v1311 = vadd.f32 %v1236, %v1310
        %1312 = vmatmul.f32.gmra.mxu0 %v1287
        %v1313 = vpop.f32.mrf.mxu0
        %v1314 = vadd.f32 %v1237, %v1313
        %1315 = vdwg.mxu0
        %1316 = vrot.lane.b32.xlu0 %v428, 120
        %v1317 = vpop.permute.xlu0 %1316
        %1318 = vrot.lane.b32.xlu0 %v431, 120
        %v1319 = vpop.permute.xlu0 %1318
        %1320 = vrot.lane.b32.xlu0 %v428, 88
        %v1321 = vpop.permute.xlu0 %1320
        %1322 = vrot.lane.b32.xlu0 %v431, 88
        %v1323 = vpop.permute.xlu0 %1322
        %v1324 = vsel %vm471, %v1317, 0
        %v1326 = vsel %vm471, %v1319, 0
        %v1328 = vsel %vm471, %v1321, 0
        %v1330 = vsel %vm471, %v1323, 0
        %1332 = vmatpush.xpose.msra.mxu0 0.0
        %1333 = vmatpush.xpose.msra.mxu0 0.0
        %1334 = vmatpush.xpose.msra.mxu0 0.0
        %1335 = vmatpush.xpose.msra.mxu0 0.0
        %1336 = vmatpush.xpose.msra.mxu0 0.0
        %1337 = vmatpush.xpose.msra.mxu0 0.0
        %1338 = vmatpush.xpose.msra.mxu0 0.0
        %1339 = vmatpush.xpose.msra.mxu0 0.0
        %1340 = vmatpush.xpose.msra.mxu0 0.0
        %1341 = vmatpush.xpose.msra.mxu0 0.0
        %1342 = vmatpush.xpose.msra.mxu0 0.0
        %1343 = vmatpush.xpose.msra.mxu0 0.0
        %1344 = vmatpush.xpose.msra.mxu0 0.0
        %1345 = vmatpush.xpose.msra.mxu0 0.0
        %1346 = vmatpush.xpose.msra.mxu0 %v1330
        %1347 = vmatpush.xpose.msra.mxu0 %v1328
        %1348 = vmatmul.f32.gmra.mxu0 %v1324
        %v1349 = vpop.f32.mrf.mxu0
        %v1350 = vadd.f32 %v1236, %v1349
        %1351 = vmatmul.f32.gmra.mxu0 %v1326
        %v1352 = vpop.f32.mrf.mxu0
        %v1353 = vadd.f32 %v1237, %v1352
        %1354 = vdwg.mxu0
        %1355 = vrot.lane.b32.xlu0 %v434, 120
        %v1356 = vpop.permute.xlu0 %1355
        %1357 = vrot.lane.b32.xlu0 %v437, 120
        %v1358 = vpop.permute.xlu0 %1357
        %1359 = vrot.lane.b32.xlu0 %v434, 88
        %v1360 = vpop.permute.xlu0 %1359
        %1361 = vrot.lane.b32.xlu0 %v437, 88
        %v1362 = vpop.permute.xlu0 %1361
        %v1363 = vsel %vm471, %v1356, 0
        %v1365 = vsel %vm471, %v1358, 0
        %v1367 = vsel %vm471, %v1360, 0
        %v1369 = vsel %vm471, %v1362, 0
        %1371 = vmatpush.xpose.msra.mxu0 0.0
        %1372 = vmatpush.xpose.msra.mxu0 0.0
        %1373 = vmatpush.xpose.msra.mxu0 0.0
        %1374 = vmatpush.xpose.msra.mxu0 0.0
        %1375 = vmatpush.xpose.msra.mxu0 0.0
        %1376 = vmatpush.xpose.msra.mxu0 0.0
        %1377 = vmatpush.xpose.msra.mxu0 0.0
        %1378 = vmatpush.xpose.msra.mxu0 0.0
        %1379 = vmatpush.xpose.msra.mxu0 0.0
        %1380 = vmatpush.xpose.msra.mxu0 0.0
        %1381 = vmatpush.xpose.msra.mxu0 0.0
        %1382 = vmatpush.xpose.msra.mxu0 0.0
        %1383 = vmatpush.xpose.msra.mxu0 0.0
        %1384 = vmatpush.xpose.msra.mxu0 0.0
        %1385 = vmatpush.xpose.msra.mxu0 %v1369
        %1386 = vmatpush.xpose.msra.mxu0 %v1367
        %1387 = vmatmul.f32.gmra.mxu0 %v1363
        %v1388 = vpop.f32.mrf.mxu0
        %v1389 = vadd.f32 %v1236, %v1388
        %1390 = vmatmul.f32.gmra.mxu0 %v1365
        %v1391 = vpop.f32.mrf.mxu0
        %v1392 = vadd.f32 %v1237, %v1391
        %1393 = vdwg.mxu0
        %1394 = vrot.lane.b32.xlu0 %v440, 120
        %v1395 = vpop.permute.xlu0 %1394
        %1396 = vrot.lane.b32.xlu0 %v443, 120
        %v1397 = vpop.permute.xlu0 %1396
        %1398 = vrot.lane.b32.xlu0 %v440, 88
        %v1399 = vpop.permute.xlu0 %1398
        %1400 = vrot.lane.b32.xlu0 %v443, 88
        %v1401 = vpop.permute.xlu0 %1400
        %v1402 = vsel %vm471, %v1395, 0
        %v1404 = vsel %vm471, %v1397, 0
        %v1406 = vsel %vm471, %v1399, 0
        %v1408 = vsel %vm471, %v1401, 0
        %1410 = vmatpush.xpose.msra.mxu0 0.0
        %1411 = vmatpush.xpose.msra.mxu0 0.0
        %1412 = vmatpush.xpose.msra.mxu0 0.0
        %1413 = vmatpush.xpose.msra.mxu0 0.0
        %1414 = vmatpush.xpose.msra.mxu0 0.0
        %1415 = vmatpush.xpose.msra.mxu0 0.0
        %1416 = vmatpush.xpose.msra.mxu0 0.0
        %1417 = vmatpush.xpose.msra.mxu0 0.0
        %1418 = vmatpush.xpose.msra.mxu0 0.0
        %1419 = vmatpush.xpose.msra.mxu0 0.0
        %1420 = vmatpush.xpose.msra.mxu0 0.0
        %1421 = vmatpush.xpose.msra.mxu0 0.0
        %1422 = vmatpush.xpose.msra.mxu0 0.0
        %1423 = vmatpush.xpose.msra.mxu0 0.0
        %1424 = vmatpush.xpose.msra.mxu0 %v1408
        %1425 = vmatpush.xpose.msra.mxu0 %v1406
        %1426 = vmatmul.f32.gmra.mxu0 %v1402
        %v1427 = vpop.f32.mrf.mxu0
        %v1428 = vadd.f32 %v1236, %v1427
        %1429 = vmatmul.f32.gmra.mxu0 %v1404
        %v1430 = vpop.f32.mrf.mxu0
        %v1431 = vadd.f32 %v1237, %v1430
        %1432 = vdwg.mxu0
        %1433 = vrot.lane.b32.xlu0 %v446, 120
        %v1434 = vpop.permute.xlu0 %1433
        %1435 = vrot.lane.b32.xlu0 %v449, 120
        %v1436 = vpop.permute.xlu0 %1435
        %1437 = vrot.lane.b32.xlu0 %v446, 88
        %v1438 = vpop.permute.xlu0 %1437
        %1439 = vrot.lane.b32.xlu0 %v449, 88
        %v1440 = vpop.permute.xlu0 %1439
        %v1441 = vsel %vm471, %v1434, 0
        %v1443 = vsel %vm471, %v1436, 0
        %v1445 = vsel %vm471, %v1438, 0
        %v1447 = vsel %vm471, %v1440, 0
        %1449 = vmatpush.xpose.msra.mxu0 0.0
        %1450 = vmatpush.xpose.msra.mxu0 0.0
        %1451 = vmatpush.xpose.msra.mxu0 0.0
        %1452 = vmatpush.xpose.msra.mxu0 0.0
        %1453 = vmatpush.xpose.msra.mxu0 0.0
        %1454 = vmatpush.xpose.msra.mxu0 0.0
        %1455 = vmatpush.xpose.msra.mxu0 0.0
        %1456 = vmatpush.xpose.msra.mxu0 0.0
        %1457 = vmatpush.xpose.msra.mxu0 0.0
        %1458 = vmatpush.xpose.msra.mxu0 0.0
        %1459 = vmatpush.xpose.msra.mxu0 0.0
        %1460 = vmatpush.xpose.msra.mxu0 0.0
        %1461 = vmatpush.xpose.msra.mxu0 0.0
        %1462 = vmatpush.xpose.msra.mxu0 0.0
        %1463 = vmatpush.xpose.msra.mxu0 %v1447
        %1464 = vmatpush.xpose.msra.mxu0 %v1445
        %1465 = vmatmul.f32.gmra.mxu0 %v1441
        %v1466 = vpop.f32.mrf.mxu0
        %v1467 = vadd.f32 %v1236, %v1466
        %1468 = vmatmul.f32.gmra.mxu0 %v1443
        %v1469 = vpop.f32.mrf.mxu0
        %v1470 = vadd.f32 %v1237, %v1469
        %1471 = vdwg.mxu0
        %1472 = vrot.lane.b32.xlu0 %v452, 120
        %v1473 = vpop.permute.xlu0 %1472
        %1474 = vrot.lane.b32.xlu0 %v455, 120
        %v1475 = vpop.permute.xlu0 %1474
        %1476 = vrot.lane.b32.xlu0 %v452, 88
        %v1477 = vpop.permute.xlu0 %1476
        %1478 = vrot.lane.b32.xlu0 %v455, 88
        %v1479 = vpop.permute.xlu0 %1478
        %v1480 = vsel %vm471, %v1473, 0
        %v1482 = vsel %vm471, %v1475, 0
        %v1484 = vsel %vm471, %v1477, 0
        %v1486 = vsel %vm471, %v1479, 0
        %1488 = vmatpush.xpose.msra.mxu0 0.0
        %1489 = vmatpush.xpose.msra.mxu0 0.0
        %1490 = vmatpush.xpose.msra.mxu0 0.0
        %1491 = vmatpush.xpose.msra.mxu0 0.0
        %1492 = vmatpush.xpose.msra.mxu0 0.0
        %1493 = vmatpush.xpose.msra.mxu0 0.0
        %1494 = vmatpush.xpose.msra.mxu0 0.0
        %1495 = vmatpush.xpose.msra.mxu0 0.0
        %1496 = vmatpush.xpose.msra.mxu0 0.0
        %1497 = vmatpush.xpose.msra.mxu0 0.0
        %1498 = vmatpush.xpose.msra.mxu0 0.0
        %1499 = vmatpush.xpose.msra.mxu0 0.0
        %1500 = vmatpush.xpose.msra.mxu0 0.0
        %1501 = vmatpush.xpose.msra.mxu0 0.0
        %1502 = vmatpush.xpose.msra.mxu0 %v1486
        %1503 = vmatpush.xpose.msra.mxu0 %v1484
        %1504 = vmatmul.f32.gmra.mxu0 %v1480
        %v1505 = vpop.f32.mrf.mxu0
        %v1506 = vadd.f32 %v1236, %v1505
        %1507 = vmatmul.f32.gmra.mxu0 %v1482
        %v1508 = vpop.f32.mrf.mxu0
        %v1509 = vadd.f32 %v1237, %v1508
        %1510 = vdwg.mxu0
        %1511 = vrot.lane.b32.xlu0 %v458, 120
        %v1512 = vpop.permute.xlu0 %1511
        %1513 = vrot.lane.b32.xlu0 %v461, 120
        %v1514 = vpop.permute.xlu0 %1513
        %1515 = vrot.lane.b32.xlu0 %v458, 88
        %v1516 = vpop.permute.xlu0 %1515
        %1517 = vrot.lane.b32.xlu0 %v461, 88
        %v1518 = vpop.permute.xlu0 %1517
        %v1519 = vsel %vm471, %v1512, 0
        %v1521 = vsel %vm471, %v1514, 0
        %v1523 = vsel %vm471, %v1516, 0
        %v1525 = vsel %vm471, %v1518, 0
        %1527 = vmatpush.xpose.msra.mxu0 0.0
        %1528 = vmatpush.xpose.msra.mxu0 0.0
        %1529 = vmatpush.xpose.msra.mxu0 0.0
        %1530 = vmatpush.xpose.msra.mxu0 0.0
        %1531 = vmatpush.xpose.msra.mxu0 0.0
        %1532 = vmatpush.xpose.msra.mxu0 0.0
        %1533 = vmatpush.xpose.msra.mxu0 0.0
        %1534 = vmatpush.xpose.msra.mxu0 0.0
        %1535 = vmatpush.xpose.msra.mxu0 0.0
        %1536 = vmatpush.xpose.msra.mxu0 0.0
        %1537 = vmatpush.xpose.msra.mxu0 0.0
        %1538 = vmatpush.xpose.msra.mxu0 0.0
        %1539 = vmatpush.xpose.msra.mxu0 0.0
        %1540 = vmatpush.xpose.msra.mxu0 0.0
        %1541 = vmatpush.xpose.msra.mxu0 %v1525
        %1542 = vmatpush.xpose.msra.mxu0 %v1523
        %1543 = vmatmul.f32.gmra.mxu0 %v1519
        %v1544 = vpop.f32.mrf.mxu0
        %v1545 = vadd.f32 %v1236, %v1544
        %1546 = vmatmul.f32.gmra.mxu0 %v1521
        %v1547 = vpop.f32.mrf.mxu0
        %v1548 = vadd.f32 %v1237, %v1547
        %1549 = vdwg.mxu0
        %v1550 = vsel %vm762, %v1272, -inf
        %1551 = vmax.xlane.f32.xlu0 %v1550
        %v1552 = vpop.xlane.xlu0 %1551
        %v1553 = vsel %vm762, %v1275, -inf
        %1554 = vmax.xlane.f32.xlu0 %v1553
        %v1555 = vpop.xlane.xlu0 %1554
        %v1556 = vsel %vm762, %v1311, -inf
        %1557 = vmax.xlane.f32.xlu0 %v1556
        %v1558 = vpop.xlane.xlu0 %1557
        %v1559 = vsel %vm762, %v1314, -inf
        %1560 = vmax.xlane.f32.xlu0 %v1559
        %v1561 = vpop.xlane.xlu0 %1560
        %v1562 = vsel %vm762, %v1350, -inf
        %1563 = vmax.xlane.f32.xlu0 %v1562
        %v1564 = vpop.xlane.xlu0 %1563
        %v1565 = vsel %vm762, %v1353, -inf
        %1566 = vmax.xlane.f32.xlu0 %v1565
        %v1567 = vpop.xlane.xlu0 %1566
        %v1568 = vsel %vm762, %v1389, -inf
        %1569 = vmax.xlane.f32.xlu0 %v1568
        %v1570 = vpop.xlane.xlu0 %1569
        %v1571 = vsel %vm762, %v1392, -inf
        %1572 = vmax.xlane.f32.xlu0 %v1571
        %v1573 = vpop.xlane.xlu0 %1572
        %v1574 = vsel %vm762, %v1428, -inf
        %1575 = vmax.xlane.f32.xlu0 %v1574
        %v1576 = vpop.xlane.xlu0 %1575
        %v1577 = vsel %vm762, %v1431, -inf
        %1578 = vmax.xlane.f32.xlu0 %v1577
        %v1579 = vpop.xlane.xlu0 %1578
        %v1580 = vsel %vm762, %v1467, -inf
        %1581 = vmax.xlane.f32.xlu0 %v1580
        %v1582 = vpop.xlane.xlu0 %1581
        %v1583 = vsel %vm762, %v1470, -inf
        %1584 = vmax.xlane.f32.xlu0 %v1583
        %v1585 = vpop.xlane.xlu0 %1584
        %v1586 = vsel %vm762, %v1506, -inf
        %1587 = vmax.xlane.f32.xlu0 %v1586
        %v1588 = vpop.xlane.xlu0 %1587
        %v1589 = vsel %vm762, %v1509, -inf
        %1590 = vmax.xlane.f32.xlu0 %v1589
        %v1591 = vpop.xlane.xlu0 %1590
        %v1592 = vsel %vm762, %v1545, -inf
        %1593 = vmax.xlane.f32.xlu0 %v1592
        %v1594 = vpop.xlane.xlu0 %1593
        %v1595 = vsel %vm762, %v1548, -inf
        %1596 = vmax.xlane.f32.xlu0 %v1595
        %v1597 = vpop.xlane.xlu0 %1596
        %v1598 = vsub.f32 %v1272, %v1552
        %v1599 = vsub.f32 %v1275, %v1555
        %v1600 = vsub.f32 %v1311, %v1558
        %v1601 = vsub.f32 %v1314, %v1561
        %v1602 = vsub.f32 %v1350, %v1564
        %v1603 = vsub.f32 %v1353, %v1567
        %v1604 = vsub.f32 %v1389, %v1570
        %v1605 = vsub.f32 %v1392, %v1573
        %v1606 = vsub.f32 %v1428, %v1576
        %v1607 = vsub.f32 %v1431, %v1579
        %v1608 = vsub.f32 %v1467, %v1582
        %v1609 = vsub.f32 %v1470, %v1585
        %v1610 = vsub.f32 %v1506, %v1588
        %v1611 = vsub.f32 %v1509, %v1591
        %v1612 = vsub.f32 %v1545, %v1594
        %v1613 = vsub.f32 %v1548, %v1597
        %v1614 = vmul.f32 %v1598, 1.442695
        %v1615 = vpow.pop %v1614
        %v1616 = vmul.f32 %v1599, 1.442695
        %v1617 = vpow.pop %v1616
        %v1618 = vmul.f32 %v1600, 1.442695
        %v1619 = vpow.pop %v1618
        %v1620 = vmul.f32 %v1601, 1.442695
        %v1621 = vpow.pop %v1620
        %v1622 = vmul.f32 %v1602, 1.442695
        %v1623 = vpow.pop %v1622
        %v1624 = vmul.f32 %v1603, 1.442695
        %v1625 = vpow.pop %v1624
        %v1626 = vmul.f32 %v1604, 1.442695
        %v1627 = vpow.pop %v1626
        %v1628 = vmul.f32 %v1605, 1.442695
        %v1629 = vpow.pop %v1628
        %v1630 = vmul.f32 %v1606, 1.442695
        %v1631 = vpow.pop %v1630
        %v1632 = vmul.f32 %v1607, 1.442695
        %v1633 = vpow.pop %v1632
        %v1634 = vmul.f32 %v1608, 1.442695
        %v1635 = vpow.pop %v1634
        %v1636 = vmul.f32 %v1609, 1.442695
        %v1637 = vpow.pop %v1636
        %v1638 = vmul.f32 %v1610, 1.442695
        %v1639 = vpow.pop %v1638
        %v1640 = vmul.f32 %v1611, 1.442695
        %v1641 = vpow.pop %v1640
        %v1642 = vmul.f32 %v1612, 1.442695
        %v1643 = vpow.pop %v1642
        %v1644 = vmul.f32 %v1613, 1.442695
        %v1645 = vpow.pop %v1644
        %v1646 = vsel %vm762, %v1615, 0.0
        %1647 = vadd.xlane.f32.xlu0 %v1646
        %v1648 = vpop.xlane.xlu0 %1647
        %v1649 = vsel %vm762, %v1617, 0.0
        %1650 = vadd.xlane.f32.xlu0 %v1649
        %v1651 = vpop.xlane.xlu0 %1650
        %v1652 = vsel %vm762, %v1619, 0.0
        %1653 = vadd.xlane.f32.xlu0 %v1652
        %v1654 = vpop.xlane.xlu0 %1653
        %v1655 = vsel %vm762, %v1621, 0.0
        %1656 = vadd.xlane.f32.xlu0 %v1655
        %v1657 = vpop.xlane.xlu0 %1656
        %v1658 = vsel %vm762, %v1623, 0.0
        %1659 = vadd.xlane.f32.xlu0 %v1658
        %v1660 = vpop.xlane.xlu0 %1659
        %v1661 = vsel %vm762, %v1625, 0.0
        %1662 = vadd.xlane.f32.xlu0 %v1661
        %v1663 = vpop.xlane.xlu0 %1662
        %v1664 = vsel %vm762, %v1627, 0.0
        %1665 = vadd.xlane.f32.xlu0 %v1664
        %v1666 = vpop.xlane.xlu0 %1665
        %v1667 = vsel %vm762, %v1629, 0.0
        %1668 = vadd.xlane.f32.xlu0 %v1667
        %v1669 = vpop.xlane.xlu0 %1668
        %v1670 = vsel %vm762, %v1631, 0.0
        %1671 = vadd.xlane.f32.xlu0 %v1670
        %v1672 = vpop.xlane.xlu0 %1671
        %v1673 = vsel %vm762, %v1633, 0.0
        %1674 = vadd.xlane.f32.xlu0 %v1673
        %v1675 = vpop.xlane.xlu0 %1674
        %v1676 = vsel %vm762, %v1635, 0.0
        %1677 = vadd.xlane.f32.xlu0 %v1676
        %v1678 = vpop.xlane.xlu0 %1677
        %v1679 = vsel %vm762, %v1637, 0.0
        %1680 = vadd.xlane.f32.xlu0 %v1679
        %v1681 = vpop.xlane.xlu0 %1680
        %v1682 = vsel %vm762, %v1639, 0.0
        %1683 = vadd.xlane.f32.xlu0 %v1682
        %v1684 = vpop.xlane.xlu0 %1683
        %v1685 = vsel %vm762, %v1641, 0.0
        %1686 = vadd.xlane.f32.xlu0 %v1685
        %v1687 = vpop.xlane.xlu0 %1686
        %v1688 = vsel %vm762, %v1643, 0.0
        %1689 = vadd.xlane.f32.xlu0 %v1688
        %v1690 = vpop.xlane.xlu0 %1689
        %v1691 = vsel %vm762, %v1645, 0.0
        %1692 = vadd.xlane.f32.xlu0 %v1691
        %v1693 = vpop.xlane.xlu0 %1692
        %v1694 = vrcp.pop %v1648
        %v1695 = vrcp.pop %v1651
        %v1696 = vrcp.pop %v1654
        %v1697 = vrcp.pop %v1657
        %v1698 = vrcp.pop %v1660
        %v1699 = vrcp.pop %v1663
        %v1700 = vrcp.pop %v1666
        %v1701 = vrcp.pop %v1669
        %v1702 = vrcp.pop %v1672
        %v1703 = vrcp.pop %v1675
        %v1704 = vrcp.pop %v1678
        %v1705 = vrcp.pop %v1681
        %v1706 = vrcp.pop %v1684
        %v1707 = vrcp.pop %v1687
        %v1708 = vrcp.pop %v1690
        %v1709 = vrcp.pop %v1693
        %v1710 = vmul.f32 %v1615, %v1694
        %v1711 = vmul.f32 %v1617, %v1695
        %v1712 = vmul.f32 %v1619, %v1696
        %v1713 = vmul.f32 %v1621, %v1697
        %v1714 = vmul.f32 %v1623, %v1698
        %v1715 = vmul.f32 %v1625, %v1699
        %v1716 = vmul.f32 %v1627, %v1700
        %v1717 = vmul.f32 %v1629, %v1701
        %v1718 = vmul.f32 %v1631, %v1702
        %v1719 = vmul.f32 %v1633, %v1703
        %v1720 = vmul.f32 %v1635, %v1704
        %v1721 = vmul.f32 %v1637, %v1705
        %v1722 = vmul.f32 %v1639, %v1706
        %v1723 = vmul.f32 %v1641, %v1707
        %v1724 = vmul.f32 %v1643, %v1708
        %v1725 = vmul.f32 %v1645, %v1709
        %1726 = vrot.lane.b32.xlu0 %v416, 56
        %v1727 = vpop.permute.xlu0 %1726
        %1728 = vrot.lane.b32.xlu0 %v419, 56
        %v1729 = vpop.permute.xlu0 %1728
        %v1733 = vsel %vm762, %v1710, 0
        %v1736 = vsel %vm762, %v1711, 0
        %1738 = vmatpush.msra.mxu0 0.0
        %1739 = vmatpush.msra.mxu0 0.0
        %1740 = vmatpush.msra.mxu0 0.0
        %1741 = vmatpush.msra.mxu0 0.0
        %1742 = vmatpush.msra.mxu0 0.0
        %1743 = vmatpush.msra.mxu0 0.0
        %1744 = vmatpush.msra.mxu0 0.0
        %1745 = vmatpush.msra.mxu0 0.0
        %1746 = vmatpush.msra.mxu0 0.0
        %1747 = vmatpush.msra.mxu0 0.0
        %1748 = vmatpush.msra.mxu0 0.0
        %1749 = vmatpush.msra.mxu0 0.0
        %1750 = vmatpush.msra.mxu0 0.0
        %1751 = vmatpush.msra.mxu0 0.0
        %1752 = vmatpush.msra.mxu0 %v1729
        %1753 = vmatpush.msra.mxu0 %v1727
        %1754 = vmatmul.f32.gmra.mxu0 %v1733
        %v1755 = vpop.f32.mrf.mxu0
        %v1756 = vadd.f32 0.0, %v1755
        %1757 = vmatmul.f32.gmra.mxu0 %v1736
        %v1758 = vpop.f32.mrf.mxu0
        %v1759 = vadd.f32 0.0, %v1758
        %1760 = vdwg.mxu0
        %1761 = vrot.lane.b32.xlu0 %v422, 56
        %v1762 = vpop.permute.xlu0 %1761
        %1763 = vrot.lane.b32.xlu0 %v425, 56
        %v1764 = vpop.permute.xlu0 %1763
        %v1768 = vsel %vm762, %v1712, 0
        %v1771 = vsel %vm762, %v1713, 0
        %1773 = vmatpush.msra.mxu0 0.0
        %1774 = vmatpush.msra.mxu0 0.0
        %1775 = vmatpush.msra.mxu0 0.0
        %1776 = vmatpush.msra.mxu0 0.0
        %1777 = vmatpush.msra.mxu0 0.0
        %1778 = vmatpush.msra.mxu0 0.0
        %1779 = vmatpush.msra.mxu0 0.0
        %1780 = vmatpush.msra.mxu0 0.0
        %1781 = vmatpush.msra.mxu0 0.0
        %1782 = vmatpush.msra.mxu0 0.0
        %1783 = vmatpush.msra.mxu0 0.0
        %1784 = vmatpush.msra.mxu0 0.0
        %1785 = vmatpush.msra.mxu0 0.0
        %1786 = vmatpush.msra.mxu0 0.0
        %1787 = vmatpush.msra.mxu0 %v1764
        %1788 = vmatpush.msra.mxu0 %v1762
        %1789 = vmatmul.f32.gmra.mxu0 %v1768
        %v1790 = vpop.f32.mrf.mxu0
        %v1791 = vadd.f32 0.0, %v1790
        %1792 = vmatmul.f32.gmra.mxu0 %v1771
        %v1793 = vpop.f32.mrf.mxu0
        %v1794 = vadd.f32 0.0, %v1793
        %1795 = vdwg.mxu0
        %1796 = vrot.lane.b32.xlu0 %v428, 56
        %v1797 = vpop.permute.xlu0 %1796
        %1798 = vrot.lane.b32.xlu0 %v431, 56
        %v1799 = vpop.permute.xlu0 %1798
        %v1803 = vsel %vm762, %v1714, 0
        %v1806 = vsel %vm762, %v1715, 0
        %1808 = vmatpush.msra.mxu0 0.0
        %1809 = vmatpush.msra.mxu0 0.0
        %1810 = vmatpush.msra.mxu0 0.0
        %1811 = vmatpush.msra.mxu0 0.0
        %1812 = vmatpush.msra.mxu0 0.0
        %1813 = vmatpush.msra.mxu0 0.0
        %1814 = vmatpush.msra.mxu0 0.0
        %1815 = vmatpush.msra.mxu0 0.0
        %1816 = vmatpush.msra.mxu0 0.0
        %1817 = vmatpush.msra.mxu0 0.0
        %1818 = vmatpush.msra.mxu0 0.0
        %1819 = vmatpush.msra.mxu0 0.0
        %1820 = vmatpush.msra.mxu0 0.0
        %1821 = vmatpush.msra.mxu0 0.0
        %1822 = vmatpush.msra.mxu0 %v1799
        %1823 = vmatpush.msra.mxu0 %v1797
        %1824 = vmatmul.f32.gmra.mxu0 %v1803
        %v1825 = vpop.f32.mrf.mxu0
        %v1826 = vadd.f32 0.0, %v1825
        %1827 = vmatmul.f32.gmra.mxu0 %v1806
        %v1828 = vpop.f32.mrf.mxu0
        %v1829 = vadd.f32 0.0, %v1828
        %1830 = vdwg.mxu0
        %1831 = vrot.lane.b32.xlu0 %v434, 56
        %v1832 = vpop.permute.xlu0 %1831
        %1833 = vrot.lane.b32.xlu0 %v437, 56
        %v1834 = vpop.permute.xlu0 %1833
        %v1838 = vsel %vm762, %v1716, 0
        %v1841 = vsel %vm762, %v1717, 0
        %1843 = vmatpush.msra.mxu0 0.0
        %1844 = vmatpush.msra.mxu0 0.0
        %1845 = vmatpush.msra.mxu0 0.0
        %1846 = vmatpush.msra.mxu0 0.0
        %1847 = vmatpush.msra.mxu0 0.0
        %1848 = vmatpush.msra.mxu0 0.0
        %1849 = vmatpush.msra.mxu0 0.0
        %1850 = vmatpush.msra.mxu0 0.0
        %1851 = vmatpush.msra.mxu0 0.0
        %1852 = vmatpush.msra.mxu0 0.0
        %1853 = vmatpush.msra.mxu0 0.0
        %1854 = vmatpush.msra.mxu0 0.0
        %1855 = vmatpush.msra.mxu0 0.0
        %1856 = vmatpush.msra.mxu0 0.0
        %1857 = vmatpush.msra.mxu0 %v1834
        %1858 = vmatpush.msra.mxu0 %v1832
        %1859 = vmatmul.f32.gmra.mxu0 %v1838
        %v1860 = vpop.f32.mrf.mxu0
        %v1861 = vadd.f32 0.0, %v1860
        %1862 = vmatmul.f32.gmra.mxu0 %v1841
        %v1863 = vpop.f32.mrf.mxu0
        %v1864 = vadd.f32 0.0, %v1863
        %1865 = vdwg.mxu0
        %1866 = vrot.lane.b32.xlu0 %v440, 56
        %v1867 = vpop.permute.xlu0 %1866
        %1868 = vrot.lane.b32.xlu0 %v443, 56
        %v1869 = vpop.permute.xlu0 %1868
        %v1873 = vsel %vm762, %v1718, 0
        %v1876 = vsel %vm762, %v1719, 0
        %1878 = vmatpush.msra.mxu0 0.0
        %1879 = vmatpush.msra.mxu0 0.0
        %1880 = vmatpush.msra.mxu0 0.0
        %1881 = vmatpush.msra.mxu0 0.0
        %1882 = vmatpush.msra.mxu0 0.0
        %1883 = vmatpush.msra.mxu0 0.0
        %1884 = vmatpush.msra.mxu0 0.0
        %1885 = vmatpush.msra.mxu0 0.0
        %1886 = vmatpush.msra.mxu0 0.0
        %1887 = vmatpush.msra.mxu0 0.0
        %1888 = vmatpush.msra.mxu0 0.0
        %1889 = vmatpush.msra.mxu0 0.0
        %1890 = vmatpush.msra.mxu0 0.0
        %1891 = vmatpush.msra.mxu0 0.0
        %1892 = vmatpush.msra.mxu0 %v1869
        %1893 = vmatpush.msra.mxu0 %v1867
        %1894 = vmatmul.f32.gmra.mxu0 %v1873
        %v1895 = vpop.f32.mrf.mxu0
        %v1896 = vadd.f32 0.0, %v1895
        %1897 = vmatmul.f32.gmra.mxu0 %v1876
        %v1898 = vpop.f32.mrf.mxu0
        %v1899 = vadd.f32 0.0, %v1898
        %1900 = vdwg.mxu0
        %1901 = vrot.lane.b32.xlu0 %v446, 56
        %v1902 = vpop.permute.xlu0 %1901
        %1903 = vrot.lane.b32.xlu0 %v449, 56
        %v1904 = vpop.permute.xlu0 %1903
        %v1908 = vsel %vm762, %v1720, 0
        %v1911 = vsel %vm762, %v1721, 0
        %1913 = vmatpush.msra.mxu0 0.0
        %1914 = vmatpush.msra.mxu0 0.0
        %1915 = vmatpush.msra.mxu0 0.0
        %1916 = vmatpush.msra.mxu0 0.0
        %1917 = vmatpush.msra.mxu0 0.0
        %1918 = vmatpush.msra.mxu0 0.0
        %1919 = vmatpush.msra.mxu0 0.0
        %1920 = vmatpush.msra.mxu0 0.0
        %1921 = vmatpush.msra.mxu0 0.0
        %1922 = vmatpush.msra.mxu0 0.0
        %1923 = vmatpush.msra.mxu0 0.0
        %1924 = vmatpush.msra.mxu0 0.0
        %1925 = vmatpush.msra.mxu0 0.0
        %1926 = vmatpush.msra.mxu0 0.0
        %1927 = vmatpush.msra.mxu0 %v1904
        %1928 = vmatpush.msra.mxu0 %v1902
        %1929 = vmatmul.f32.gmra.mxu0 %v1908
        %v1930 = vpop.f32.mrf.mxu0
        %v1931 = vadd.f32 0.0, %v1930
        %1932 = vmatmul.f32.gmra.mxu0 %v1911
        %v1933 = vpop.f32.mrf.mxu0
        %v1934 = vadd.f32 0.0, %v1933
        %1935 = vdwg.mxu0
        %1936 = vrot.lane.b32.xlu0 %v452, 56
        %v1937 = vpop.permute.xlu0 %1936
        %1938 = vrot.lane.b32.xlu0 %v455, 56
        %v1939 = vpop.permute.xlu0 %1938
        %v1943 = vsel %vm762, %v1722, 0
        %v1946 = vsel %vm762, %v1723, 0
        %1948 = vmatpush.msra.mxu0 0.0
        %1949 = vmatpush.msra.mxu0 0.0
        %1950 = vmatpush.msra.mxu0 0.0
        %1951 = vmatpush.msra.mxu0 0.0
        %1952 = vmatpush.msra.mxu0 0.0
        %1953 = vmatpush.msra.mxu0 0.0
        %1954 = vmatpush.msra.mxu0 0.0
        %1955 = vmatpush.msra.mxu0 0.0
        %1956 = vmatpush.msra.mxu0 0.0
        %1957 = vmatpush.msra.mxu0 0.0
        %1958 = vmatpush.msra.mxu0 0.0
        %1959 = vmatpush.msra.mxu0 0.0
        %1960 = vmatpush.msra.mxu0 0.0
        %1961 = vmatpush.msra.mxu0 0.0
        %1962 = vmatpush.msra.mxu0 %v1939
        %1963 = vmatpush.msra.mxu0 %v1937
        %1964 = vmatmul.f32.gmra.mxu0 %v1943
        %v1965 = vpop.f32.mrf.mxu0
        %v1966 = vadd.f32 0.0, %v1965
        %1967 = vmatmul.f32.gmra.mxu0 %v1946
        %v1968 = vpop.f32.mrf.mxu0
        %v1969 = vadd.f32 0.0, %v1968
        %1970 = vdwg.mxu0
        %1971 = vrot.lane.b32.xlu0 %v458, 56
        %v1972 = vpop.permute.xlu0 %1971
        %1973 = vrot.lane.b32.xlu0 %v461, 56
        %v1974 = vpop.permute.xlu0 %1973
        %v1978 = vsel %vm762, %v1724, 0
        %v1981 = vsel %vm762, %v1725, 0
        %1983 = vmatpush.msra.mxu0 0.0
        %1984 = vmatpush.msra.mxu0 0.0
        %1985 = vmatpush.msra.mxu0 0.0
        %1986 = vmatpush.msra.mxu0 0.0
        %1987 = vmatpush.msra.mxu0 0.0
        %1988 = vmatpush.msra.mxu0 0.0
        %1989 = vmatpush.msra.mxu0 0.0
        %1990 = vmatpush.msra.mxu0 0.0
        %1991 = vmatpush.msra.mxu0 0.0
        %1992 = vmatpush.msra.mxu0 0.0
        %1993 = vmatpush.msra.mxu0 0.0
        %1994 = vmatpush.msra.mxu0 0.0
        %1995 = vmatpush.msra.mxu0 0.0
        %1996 = vmatpush.msra.mxu0 0.0
        %1997 = vmatpush.msra.mxu0 %v1974
        %1998 = vmatpush.msra.mxu0 %v1972
        %1999 = vmatmul.f32.gmra.mxu0 %v1978
        %v2000 = vpop.f32.mrf.mxu0
        %v2001 = vadd.f32 0.0, %v2000
        %2002 = vmatmul.f32.gmra.mxu0 %v1981
        %v2003 = vpop.f32.mrf.mxu0
        %v2004 = vadd.f32 0.0, %v2003
        %2005 = vdwg.mxu0
        %2022 = vrot.lane.b32.xlu0 %v1756, 8
        %v2023 = vpop.permute.xlu0 %2022
        %2024 = vrot.lane.b32.xlu0 %v1759, 8
        %v2025 = vpop.permute.xlu0 %2024
        %2026 = vrot.lane.b32.xlu0 %v1791, 8
        %v2027 = vpop.permute.xlu0 %2026
        %2028 = vrot.lane.b32.xlu0 %v1794, 8
        %v2029 = vpop.permute.xlu0 %2028
        %2030 = vrot.lane.b32.xlu0 %v1826, 8
        %v2031 = vpop.permute.xlu0 %2030
        %2032 = vrot.lane.b32.xlu0 %v1829, 8
        %v2033 = vpop.permute.xlu0 %2032
        %2034 = vrot.lane.b32.xlu0 %v1861, 8
        %v2035 = vpop.permute.xlu0 %2034
        %2036 = vrot.lane.b32.xlu0 %v1864, 8
        %v2037 = vpop.permute.xlu0 %2036
        %2038 = vrot.lane.b32.xlu0 %v1896, 8
        %v2039 = vpop.permute.xlu0 %2038
        %2040 = vrot.lane.b32.xlu0 %v1899, 8
        %v2041 = vpop.permute.xlu0 %2040
        %2042 = vrot.lane.b32.xlu0 %v1931, 8
        %v2043 = vpop.permute.xlu0 %2042
        %2044 = vrot.lane.b32.xlu0 %v1934, 8
        %v2045 = vpop.permute.xlu0 %2044
        %2046 = vrot.lane.b32.xlu0 %v1966, 8
        %v2047 = vpop.permute.xlu0 %2046
        %2048 = vrot.lane.b32.xlu0 %v1969, 8
        %v2049 = vpop.permute.xlu0 %2048
        %2050 = vrot.lane.b32.xlu0 %v2001, 8
        %v2051 = vpop.permute.xlu0 %2050
        %2052 = vrot.lane.b32.xlu0 %v2004, 8
        %v2053 = vpop.permute.xlu0 %2052
        %vm2070 = vcmask 130112
        %2071 = vst.msk [vmem:[#allocation2] sm:$0xff] %vm2070, %v2023
        %2072 = vst.msk [vmem:[#allocation2 + $0x8] sm:$0xff] %vm2070, %v2025
        %2073 = vst.msk [vmem:[#allocation2 + $0x10] sm:$0xff] %vm2070, %v2027
        %2074 = vst.msk [vmem:[#allocation2 + $0x18] sm:$0xff] %vm2070, %v2029
        %2075 = vst.msk [vmem:[#allocation2 + $0x20] sm:$0xff] %vm2070, %v2031
        %2076 = vst.msk [vmem:[#allocation2 + $0x28] sm:$0xff] %vm2070, %v2033
        %2077 = vst.msk [vmem:[#allocation2 + $0x30] sm:$0xff] %vm2070, %v2035
        %2078 = vst.msk [vmem:[#allocation2 + $0x38] sm:$0xff] %vm2070, %v2037
        %2079 = vst.msk [vmem:[#allocation2 + $0x40] sm:$0xff] %vm2070, %v2039
        %2080 = vst.msk [vmem:[#allocation2 + $0x48] sm:$0xff] %vm2070, %v2041
        %2081 = vst.msk [vmem:[#allocation2 + $0x50] sm:$0xff] %vm2070, %v2043
        %2082 = vst.msk [vmem:[#allocation2 + $0x58] sm:$0xff] %vm2070, %v2045
        %2083 = vst.msk [vmem:[#allocation2 + $0x60] sm:$0xff] %vm2070, %v2047
        %2084 = vst.msk [vmem:[#allocation2 + $0x68] sm:$0xff] %vm2070, %v2049
        %2085 = vst.msk [vmem:[#allocation2 + $0x70] sm:$0xff] %vm2070, %v2051
        %2086 = vst.msk [vmem:[#allocation2 + $0x78] sm:$0xff] %vm2070, %v2053
        %s2087 = scalar_lea.vmem [#allocation9], 32
        %v2088 = vld [vmem:[%s2087] sm:$0xff]
        %v2089 = vld [vmem:[%s2087 + $0x8] sm:$0xff]
        %2090 = vrot.lane.b32.xlu0 %v416, 112
        %v2091 = vpop.permute.xlu0 %2090
        %2092 = vrot.lane.b32.xlu0 %v419, 112
        %v2093 = vpop.permute.xlu0 %2092
        %2094 = vrot.lane.b32.xlu0 %v416, 80
        %v2095 = vpop.permute.xlu0 %2094
        %2096 = vrot.lane.b32.xlu0 %v419, 80
        %v2097 = vpop.permute.xlu0 %2096
        %v2098 = vsel %vm471, %v2091, 0
        %v2100 = vsel %vm471, %v2093, 0
        %v2102 = vsel %vm471, %v2095, 0
        %v2104 = vsel %vm471, %v2097, 0
        %2106 = vmatpush.xpose.msra.mxu0 0.0
        %2107 = vmatpush.xpose.msra.mxu0 0.0
        %2108 = vmatpush.xpose.msra.mxu0 0.0
        %2109 = vmatpush.xpose.msra.mxu0 0.0
        %2110 = vmatpush.xpose.msra.mxu0 0.0
        %2111 = vmatpush.xpose.msra.mxu0 0.0
        %2112 = vmatpush.xpose.msra.mxu0 0.0
        %2113 = vmatpush.xpose.msra.mxu0 0.0
        %2114 = vmatpush.xpose.msra.mxu0 0.0
        %2115 = vmatpush.xpose.msra.mxu0 0.0
        %2116 = vmatpush.xpose.msra.mxu0 0.0
        %2117 = vmatpush.xpose.msra.mxu0 0.0
        %2118 = vmatpush.xpose.msra.mxu0 0.0
        %2119 = vmatpush.xpose.msra.mxu0 0.0
        %2120 = vmatpush.xpose.msra.mxu0 %v2104
        %2121 = vmatpush.xpose.msra.mxu0 %v2102
        %2122 = vmatmul.f32.gmra.mxu0 %v2098
        %v2123 = vpop.f32.mrf.mxu0
        %v2124 = vadd.f32 %v2088, %v2123
        %2125 = vmatmul.f32.gmra.mxu0 %v2100
        %v2126 = vpop.f32.mrf.mxu0
        %v2127 = vadd.f32 %v2089, %v2126
        %2128 = vdwg.mxu0
        %2129 = vrot.lane.b32.xlu0 %v422, 112
        %v2130 = vpop.permute.xlu0 %2129
        %2131 = vrot.lane.b32.xlu0 %v425, 112
        %v2132 = vpop.permute.xlu0 %2131
        %2133 = vrot.lane.b32.xlu0 %v422, 80
        %v2134 = vpop.permute.xlu0 %2133
        %2135 = vrot.lane.b32.xlu0 %v425, 80
        %v2136 = vpop.permute.xlu0 %2135
        %v2137 = vsel %vm471, %v2130, 0
        %v2139 = vsel %vm471, %v2132, 0
        %v2141 = vsel %vm471, %v2134, 0
        %v2143 = vsel %vm471, %v2136, 0
        %2145 = vmatpush.xpose.msra.mxu0 0.0
        %2146 = vmatpush.xpose.msra.mxu0 0.0
        %2147 = vmatpush.xpose.msra.mxu0 0.0
        %2148 = vmatpush.xpose.msra.mxu0 0.0
        %2149 = vmatpush.xpose.msra.mxu0 0.0
        %2150 = vmatpush.xpose.msra.mxu0 0.0
        %2151 = vmatpush.xpose.msra.mxu0 0.0
        %2152 = vmatpush.xpose.msra.mxu0 0.0
        %2153 = vmatpush.xpose.msra.mxu0 0.0
        %2154 = vmatpush.xpose.msra.mxu0 0.0
        %2155 = vmatpush.xpose.msra.mxu0 0.0
        %2156 = vmatpush.xpose.msra.mxu0 0.0
        %2157 = vmatpush.xpose.msra.mxu0 0.0
        %2158 = vmatpush.xpose.msra.mxu0 0.0
        %2159 = vmatpush.xpose.msra.mxu0 %v2143
        %2160 = vmatpush.xpose.msra.mxu0 %v2141
        %2161 = vmatmul.f32.gmra.mxu0 %v2137
        %v2162 = vpop.f32.mrf.mxu0
        %v2163 = vadd.f32 %v2088, %v2162
        %2164 = vmatmul.f32.gmra.mxu0 %v2139
        %v2165 = vpop.f32.mrf.mxu0
        %v2166 = vadd.f32 %v2089, %v2165
        %2167 = vdwg.mxu0
        %2168 = vrot.lane.b32.xlu0 %v428, 112
        %v2169 = vpop.permute.xlu0 %2168
        %2170 = vrot.lane.b32.xlu0 %v431, 112
        %v2171 = vpop.permute.xlu0 %2170
        %2172 = vrot.lane.b32.xlu0 %v428, 80
        %v2173 = vpop.permute.xlu0 %2172
        %2174 = vrot.lane.b32.xlu0 %v431, 80
        %v2175 = vpop.permute.xlu0 %2174
        %v2176 = vsel %vm471, %v2169, 0
        %v2178 = vsel %vm471, %v2171, 0
        %v2180 = vsel %vm471, %v2173, 0
        %v2182 = vsel %vm471, %v2175, 0
        %2184 = vmatpush.xpose.msra.mxu0 0.0
        %2185 = vmatpush.xpose.msra.mxu0 0.0
        %2186 = vmatpush.xpose.msra.mxu0 0.0
        %2187 = vmatpush.xpose.msra.mxu0 0.0
        %2188 = vmatpush.xpose.msra.mxu0 0.0
        %2189 = vmatpush.xpose.msra.mxu0 0.0
        %2190 = vmatpush.xpose.msra.mxu0 0.0
        %2191 = vmatpush.xpose.msra.mxu0 0.0
        %2192 = vmatpush.xpose.msra.mxu0 0.0
        %2193 = vmatpush.xpose.msra.mxu0 0.0
        %2194 = vmatpush.xpose.msra.mxu0 0.0
        %2195 = vmatpush.xpose.msra.mxu0 0.0
        %2196 = vmatpush.xpose.msra.mxu0 0.0
        %2197 = vmatpush.xpose.msra.mxu0 0.0
        %2198 = vmatpush.xpose.msra.mxu0 %v2182
        %2199 = vmatpush.xpose.msra.mxu0 %v2180
        %2200 = vmatmul.f32.gmra.mxu0 %v2176
        %v2201 = vpop.f32.mrf.mxu0
        %v2202 = vadd.f32 %v2088, %v2201
        %2203 = vmatmul.f32.gmra.mxu0 %v2178
        %v2204 = vpop.f32.mrf.mxu0
        %v2205 = vadd.f32 %v2089, %v2204
        %2206 = vdwg.mxu0
        %2207 = vrot.lane.b32.xlu0 %v434, 112
        %v2208 = vpop.permute.xlu0 %2207
        %2209 = vrot.lane.b32.xlu0 %v437, 112
        %v2210 = vpop.permute.xlu0 %2209
        %2211 = vrot.lane.b32.xlu0 %v434, 80
        %v2212 = vpop.permute.xlu0 %2211
        %2213 = vrot.lane.b32.xlu0 %v437, 80
        %v2214 = vpop.permute.xlu0 %2213
        %v2215 = vsel %vm471, %v2208, 0
        %v2217 = vsel %vm471, %v2210, 0
        %v2219 = vsel %vm471, %v2212, 0
        %v2221 = vsel %vm471, %v2214, 0
        %2223 = vmatpush.xpose.msra.mxu0 0.0
        %2224 = vmatpush.xpose.msra.mxu0 0.0
        %2225 = vmatpush.xpose.msra.mxu0 0.0
        %2226 = vmatpush.xpose.msra.mxu0 0.0
        %2227 = vmatpush.xpose.msra.mxu0 0.0
        %2228 = vmatpush.xpose.msra.mxu0 0.0
        %2229 = vmatpush.xpose.msra.mxu0 0.0
        %2230 = vmatpush.xpose.msra.mxu0 0.0
        %2231 = vmatpush.xpose.msra.mxu0 0.0
        %2232 = vmatpush.xpose.msra.mxu0 0.0
        %2233 = vmatpush.xpose.msra.mxu0 0.0
        %2234 = vmatpush.xpose.msra.mxu0 0.0
        %2235 = vmatpush.xpose.msra.mxu0 0.0
        %2236 = vmatpush.xpose.msra.mxu0 0.0
        %2237 = vmatpush.xpose.msra.mxu0 %v2221
        %2238 = vmatpush.xpose.msra.mxu0 %v2219
        %2239 = vmatmul.f32.gmra.mxu0 %v2215
        %v2240 = vpop.f32.mrf.mxu0
        %v2241 = vadd.f32 %v2088, %v2240
        %2242 = vmatmul.f32.gmra.mxu0 %v2217
        %v2243 = vpop.f32.mrf.mxu0
        %v2244 = vadd.f32 %v2089, %v2243
        %2245 = vdwg.mxu0
        %2246 = vrot.lane.b32.xlu0 %v440, 112
        %v2247 = vpop.permute.xlu0 %2246
        %2248 = vrot.lane.b32.xlu0 %v443, 112
        %v2249 = vpop.permute.xlu0 %2248
        %2250 = vrot.lane.b32.xlu0 %v440, 80
        %v2251 = vpop.permute.xlu0 %2250
        %2252 = vrot.lane.b32.xlu0 %v443, 80
        %v2253 = vpop.permute.xlu0 %2252
        %v2254 = vsel %vm471, %v2247, 0
        %v2256 = vsel %vm471, %v2249, 0
        %v2258 = vsel %vm471, %v2251, 0
        %v2260 = vsel %vm471, %v2253, 0
        %2262 = vmatpush.xpose.msra.mxu0 0.0
        %2263 = vmatpush.xpose.msra.mxu0 0.0
        %2264 = vmatpush.xpose.msra.mxu0 0.0
        %2265 = vmatpush.xpose.msra.mxu0 0.0
        %2266 = vmatpush.xpose.msra.mxu0 0.0
        %2267 = vmatpush.xpose.msra.mxu0 0.0
        %2268 = vmatpush.xpose.msra.mxu0 0.0
        %2269 = vmatpush.xpose.msra.mxu0 0.0
        %2270 = vmatpush.xpose.msra.mxu0 0.0
        %2271 = vmatpush.xpose.msra.mxu0 0.0
        %2272 = vmatpush.xpose.msra.mxu0 0.0
        %2273 = vmatpush.xpose.msra.mxu0 0.0
        %2274 = vmatpush.xpose.msra.mxu0 0.0
        %2275 = vmatpush.xpose.msra.mxu0 0.0
        %2276 = vmatpush.xpose.msra.mxu0 %v2260
        %2277 = vmatpush.xpose.msra.mxu0 %v2258
        %2278 = vmatmul.f32.gmra.mxu0 %v2254
        %v2279 = vpop.f32.mrf.mxu0
        %v2280 = vadd.f32 %v2088, %v2279
        %2281 = vmatmul.f32.gmra.mxu0 %v2256
        %v2282 = vpop.f32.mrf.mxu0
        %v2283 = vadd.f32 %v2089, %v2282
        %2284 = vdwg.mxu0
        %2285 = vrot.lane.b32.xlu0 %v446, 112
        %v2286 = vpop.permute.xlu0 %2285
        %2287 = vrot.lane.b32.xlu0 %v449, 112
        %v2288 = vpop.permute.xlu0 %2287
        %2289 = vrot.lane.b32.xlu0 %v446, 80
        %v2290 = vpop.permute.xlu0 %2289
        %2291 = vrot.lane.b32.xlu0 %v449, 80
        %v2292 = vpop.permute.xlu0 %2291
        %v2293 = vsel %vm471, %v2286, 0
        %v2295 = vsel %vm471, %v2288, 0
        %v2297 = vsel %vm471, %v2290, 0
        %v2299 = vsel %vm471, %v2292, 0
        %2301 = vmatpush.xpose.msra.mxu0 0.0
        %2302 = vmatpush.xpose.msra.mxu0 0.0
        %2303 = vmatpush.xpose.msra.mxu0 0.0
        %2304 = vmatpush.xpose.msra.mxu0 0.0
        %2305 = vmatpush.xpose.msra.mxu0 0.0
        %2306 = vmatpush.xpose.msra.mxu0 0.0
        %2307 = vmatpush.xpose.msra.mxu0 0.0
        %2308 = vmatpush.xpose.msra.mxu0 0.0
        %2309 = vmatpush.xpose.msra.mxu0 0.0
        %2310 = vmatpush.xpose.msra.mxu0 0.0
        %2311 = vmatpush.xpose.msra.mxu0 0.0
        %2312 = vmatpush.xpose.msra.mxu0 0.0
        %2313 = vmatpush.xpose.msra.mxu0 0.0
        %2314 = vmatpush.xpose.msra.mxu0 0.0
        %2315 = vmatpush.xpose.msra.mxu0 %v2299
        %2316 = vmatpush.xpose.msra.mxu0 %v2297
        %2317 = vmatmul.f32.gmra.mxu0 %v2293
        %v2318 = vpop.f32.mrf.mxu0
        %v2319 = vadd.f32 %v2088, %v2318
        %2320 = vmatmul.f32.gmra.mxu0 %v2295
        %v2321 = vpop.f32.mrf.mxu0
        %v2322 = vadd.f32 %v2089, %v2321
        %2323 = vdwg.mxu0
        %2324 = vrot.lane.b32.xlu0 %v452, 112
        %v2325 = vpop.permute.xlu0 %2324
        %2326 = vrot.lane.b32.xlu0 %v455, 112
        %v2327 = vpop.permute.xlu0 %2326
        %2328 = vrot.lane.b32.xlu0 %v452, 80
        %v2329 = vpop.permute.xlu0 %2328
        %2330 = vrot.lane.b32.xlu0 %v455, 80
        %v2331 = vpop.permute.xlu0 %2330
        %v2332 = vsel %vm471, %v2325, 0
        %v2334 = vsel %vm471, %v2327, 0
        %v2336 = vsel %vm471, %v2329, 0
        %v2338 = vsel %vm471, %v2331, 0
        %2340 = vmatpush.xpose.msra.mxu0 0.0
        %2341 = vmatpush.xpose.msra.mxu0 0.0
        %2342 = vmatpush.xpose.msra.mxu0 0.0
        %2343 = vmatpush.xpose.msra.mxu0 0.0
        %2344 = vmatpush.xpose.msra.mxu0 0.0
        %2345 = vmatpush.xpose.msra.mxu0 0.0
        %2346 = vmatpush.xpose.msra.mxu0 0.0
        %2347 = vmatpush.xpose.msra.mxu0 0.0
        %2348 = vmatpush.xpose.msra.mxu0 0.0
        %2349 = vmatpush.xpose.msra.mxu0 0.0
        %2350 = vmatpush.xpose.msra.mxu0 0.0
        %2351 = vmatpush.xpose.msra.mxu0 0.0
        %2352 = vmatpush.xpose.msra.mxu0 0.0
        %2353 = vmatpush.xpose.msra.mxu0 0.0
        %2354 = vmatpush.xpose.msra.mxu0 %v2338
        %2355 = vmatpush.xpose.msra.mxu0 %v2336
        %2356 = vmatmul.f32.gmra.mxu0 %v2332
        %v2357 = vpop.f32.mrf.mxu0
        %v2358 = vadd.f32 %v2088, %v2357
        %2359 = vmatmul.f32.gmra.mxu0 %v2334
        %v2360 = vpop.f32.mrf.mxu0
        %v2361 = vadd.f32 %v2089, %v2360
        %2362 = vdwg.mxu0
        %2363 = vrot.lane.b32.xlu0 %v458, 112
        %v2364 = vpop.permute.xlu0 %2363
        %2365 = vrot.lane.b32.xlu0 %v461, 112
        %v2366 = vpop.permute.xlu0 %2365
        %2367 = vrot.lane.b32.xlu0 %v458, 80
        %v2368 = vpop.permute.xlu0 %2367
        %2369 = vrot.lane.b32.xlu0 %v461, 80
        %v2370 = vpop.permute.xlu0 %2369
        %v2371 = vsel %vm471, %v2364, 0
        %v2373 = vsel %vm471, %v2366, 0
        %v2375 = vsel %vm471, %v2368, 0
        %v2377 = vsel %vm471, %v2370, 0
        %2379 = vmatpush.xpose.msra.mxu0 0.0
        %2380 = vmatpush.xpose.msra.mxu0 0.0
        %2381 = vmatpush.xpose.msra.mxu0 0.0
        %2382 = vmatpush.xpose.msra.mxu0 0.0
        %2383 = vmatpush.xpose.msra.mxu0 0.0
        %2384 = vmatpush.xpose.msra.mxu0 0.0
        %2385 = vmatpush.xpose.msra.mxu0 0.0
        %2386 = vmatpush.xpose.msra.mxu0 0.0
        %2387 = vmatpush.xpose.msra.mxu0 0.0
        %2388 = vmatpush.xpose.msra.mxu0 0.0
        %2389 = vmatpush.xpose.msra.mxu0 0.0
        %2390 = vmatpush.xpose.msra.mxu0 0.0
        %2391 = vmatpush.xpose.msra.mxu0 0.0
        %2392 = vmatpush.xpose.msra.mxu0 0.0
        %2393 = vmatpush.xpose.msra.mxu0 %v2377
        %2394 = vmatpush.xpose.msra.mxu0 %v2375
        %2395 = vmatmul.f32.gmra.mxu0 %v2371
        %v2396 = vpop.f32.mrf.mxu0
        %v2397 = vadd.f32 %v2088, %v2396
        %2398 = vmatmul.f32.gmra.mxu0 %v2373
        %v2399 = vpop.f32.mrf.mxu0
        %v2400 = vadd.f32 %v2089, %v2399
        %2401 = vdwg.mxu0
        %v2402 = vsel %vm762, %v2124, -inf
        %2403 = vmax.xlane.f32.xlu0 %v2402
        %v2404 = vpop.xlane.xlu0 %2403
        %v2405 = vsel %vm762, %v2127, -inf
        %2406 = vmax.xlane.f32.xlu0 %v2405
        %v2407 = vpop.xlane.xlu0 %2406
        %v2408 = vsel %vm762, %v2163, -inf
        %2409 = vmax.xlane.f32.xlu0 %v2408
        %v2410 = vpop.xlane.xlu0 %2409
        %v2411 = vsel %vm762, %v2166, -inf
        %2412 = vmax.xlane.f32.xlu0 %v2411
        %v2413 = vpop.xlane.xlu0 %2412
        %v2414 = vsel %vm762, %v2202, -inf
        %2415 = vmax.xlane.f32.xlu0 %v2414
        %v2416 = vpop.xlane.xlu0 %2415
        %v2417 = vsel %vm762, %v2205, -inf
        %2418 = vmax.xlane.f32.xlu0 %v2417
        %v2419 = vpop.xlane.xlu0 %2418
        %v2420 = vsel %vm762, %v2241, -inf
        %2421 = vmax.xlane.f32.xlu0 %v2420
        %v2422 = vpop.xlane.xlu0 %2421
        %v2423 = vsel %vm762, %v2244, -inf
        %2424 = vmax.xlane.f32.xlu0 %v2423
        %v2425 = vpop.xlane.xlu0 %2424
        %v2426 = vsel %vm762, %v2280, -inf
        %2427 = vmax.xlane.f32.xlu0 %v2426
        %v2428 = vpop.xlane.xlu0 %2427
        %v2429 = vsel %vm762, %v2283, -inf
        %2430 = vmax.xlane.f32.xlu0 %v2429
        %v2431 = vpop.xlane.xlu0 %2430
        %v2432 = vsel %vm762, %v2319, -inf
        %2433 = vmax.xlane.f32.xlu0 %v2432
        %v2434 = vpop.xlane.xlu0 %2433
        %v2435 = vsel %vm762, %v2322, -inf
        %2436 = vmax.xlane.f32.xlu0 %v2435
        %v2437 = vpop.xlane.xlu0 %2436
        %v2438 = vsel %vm762, %v2358, -inf
        %2439 = vmax.xlane.f32.xlu0 %v2438
        %v2440 = vpop.xlane.xlu0 %2439
        %v2441 = vsel %vm762, %v2361, -inf
        %2442 = vmax.xlane.f32.xlu0 %v2441
        %v2443 = vpop.xlane.xlu0 %2442
        %v2444 = vsel %vm762, %v2397, -inf
        %2445 = vmax.xlane.f32.xlu0 %v2444
        %v2446 = vpop.xlane.xlu0 %2445
        %v2447 = vsel %vm762, %v2400, -inf
        %2448 = vmax.xlane.f32.xlu0 %v2447
        %v2449 = vpop.xlane.xlu0 %2448
        %v2450 = vsub.f32 %v2124, %v2404
        %v2451 = vsub.f32 %v2127, %v2407
        %v2452 = vsub.f32 %v2163, %v2410
        %v2453 = vsub.f32 %v2166, %v2413
        %v2454 = vsub.f32 %v2202, %v2416
        %v2455 = vsub.f32 %v2205, %v2419
        %v2456 = vsub.f32 %v2241, %v2422
        %v2457 = vsub.f32 %v2244, %v2425
        %v2458 = vsub.f32 %v2280, %v2428
        %v2459 = vsub.f32 %v2283, %v2431
        %v2460 = vsub.f32 %v2319, %v2434
        %v2461 = vsub.f32 %v2322, %v2437
        %v2462 = vsub.f32 %v2358, %v2440
        %v2463 = vsub.f32 %v2361, %v2443
        %v2464 = vsub.f32 %v2397, %v2446
        %v2465 = vsub.f32 %v2400, %v2449
        %v2466 = vmul.f32 %v2450, 1.442695
        %v2467 = vpow.pop %v2466
        %v2468 = vmul.f32 %v2451, 1.442695
        %v2469 = vpow.pop %v2468
        %v2470 = vmul.f32 %v2452, 1.442695
        %v2471 = vpow.pop %v2470
        %v2472 = vmul.f32 %v2453, 1.442695
        %v2473 = vpow.pop %v2472
        %v2474 = vmul.f32 %v2454, 1.442695
        %v2475 = vpow.pop %v2474
        %v2476 = vmul.f32 %v2455, 1.442695
        %v2477 = vpow.pop %v2476
        %v2478 = vmul.f32 %v2456, 1.442695
        %v2479 = vpow.pop %v2478
        %v2480 = vmul.f32 %v2457, 1.442695
        %v2481 = vpow.pop %v2480
        %v2482 = vmul.f32 %v2458, 1.442695
        %v2483 = vpow.pop %v2482
        %v2484 = vmul.f32 %v2459, 1.442695
        %v2485 = vpow.pop %v2484
        %v2486 = vmul.f32 %v2460, 1.442695
        %v2487 = vpow.pop %v2486
        %v2488 = vmul.f32 %v2461, 1.442695
        %v2489 = vpow.pop %v2488
        %v2490 = vmul.f32 %v2462, 1.442695
        %v2491 = vpow.pop %v2490
        %v2492 = vmul.f32 %v2463, 1.442695
        %v2493 = vpow.pop %v2492
        %v2494 = vmul.f32 %v2464, 1.442695
        %v2495 = vpow.pop %v2494
        %v2496 = vmul.f32 %v2465, 1.442695
        %v2497 = vpow.pop %v2496
        %v2498 = vsel %vm762, %v2467, 0.0
        %2499 = vadd.xlane.f32.xlu0 %v2498
        %v2500 = vpop.xlane.xlu0 %2499
        %v2501 = vsel %vm762, %v2469, 0.0
        %2502 = vadd.xlane.f32.xlu0 %v2501
        %v2503 = vpop.xlane.xlu0 %2502
        %v2504 = vsel %vm762, %v2471, 0.0
        %2505 = vadd.xlane.f32.xlu0 %v2504
        %v2506 = vpop.xlane.xlu0 %2505
        %v2507 = vsel %vm762, %v2473, 0.0
        %2508 = vadd.xlane.f32.xlu0 %v2507
        %v2509 = vpop.xlane.xlu0 %2508
        %v2510 = vsel %vm762, %v2475, 0.0
        %2511 = vadd.xlane.f32.xlu0 %v2510
        %v2512 = vpop.xlane.xlu0 %2511
        %v2513 = vsel %vm762, %v2477, 0.0
        %2514 = vadd.xlane.f32.xlu0 %v2513
        %v2515 = vpop.xlane.xlu0 %2514
        %v2516 = vsel %vm762, %v2479, 0.0
        %2517 = vadd.xlane.f32.xlu0 %v2516
        %v2518 = vpop.xlane.xlu0 %2517
        %v2519 = vsel %vm762, %v2481, 0.0
        %2520 = vadd.xlane.f32.xlu0 %v2519
        %v2521 = vpop.xlane.xlu0 %2520
        %v2522 = vsel %vm762, %v2483, 0.0
        %2523 = vadd.xlane.f32.xlu0 %v2522
        %v2524 = vpop.xlane.xlu0 %2523
        %v2525 = vsel %vm762, %v2485, 0.0
        %2526 = vadd.xlane.f32.xlu0 %v2525
        %v2527 = vpop.xlane.xlu0 %2526
        %v2528 = vsel %vm762, %v2487, 0.0
        %2529 = vadd.xlane.f32.xlu0 %v2528
        %v2530 = vpop.xlane.xlu0 %2529
        %v2531 = vsel %vm762, %v2489, 0.0
        %2532 = vadd.xlane.f32.xlu0 %v2531
        %v2533 = vpop.xlane.xlu0 %2532
        %v2534 = vsel %vm762, %v2491, 0.0
        %2535 = vadd.xlane.f32.xlu0 %v2534
        %v2536 = vpop.xlane.xlu0 %2535
        %v2537 = vsel %vm762, %v2493, 0.0
        %2538 = vadd.xlane.f32.xlu0 %v2537
        %v2539 = vpop.xlane.xlu0 %2538
        %v2540 = vsel %vm762, %v2495, 0.0
        %2541 = vadd.xlane.f32.xlu0 %v2540
        %v2542 = vpop.xlane.xlu0 %2541
        %v2543 = vsel %vm762, %v2497, 0.0
        %2544 = vadd.xlane.f32.xlu0 %v2543
        %v2545 = vpop.xlane.xlu0 %2544
        %v2546 = vrcp.pop %v2500
        %v2547 = vrcp.pop %v2503
        %v2548 = vrcp.pop %v2506
        %v2549 = vrcp.pop %v2509
        %v2550 = vrcp.pop %v2512
        %v2551 = vrcp.pop %v2515
        %v2552 = vrcp.pop %v2518
        %v2553 = vrcp.pop %v2521
        %v2554 = vrcp.pop %v2524
        %v2555 = vrcp.pop %v2527
        %v2556 = vrcp.pop %v2530
        %v2557 = vrcp.pop %v2533
        %v2558 = vrcp.pop %v2536
        %v2559 = vrcp.pop %v2539
        %v2560 = vrcp.pop %v2542
        %v2561 = vrcp.pop %v2545
        %v2562 = vmul.f32 %v2467, %v2546
        %v2563 = vmul.f32 %v2469, %v2547
        %v2564 = vmul.f32 %v2471, %v2548
        %v2565 = vmul.f32 %v2473, %v2549
        %v2566 = vmul.f32 %v2475, %v2550
        %v2567 = vmul.f32 %v2477, %v2551
        %v2568 = vmul.f32 %v2479, %v2552
        %v2569 = vmul.f32 %v2481, %v2553
        %v2570 = vmul.f32 %v2483, %v2554
        %v2571 = vmul.f32 %v2485, %v2555
        %v2572 = vmul.f32 %v2487, %v2556
        %v2573 = vmul.f32 %v2489, %v2557
        %v2574 = vmul.f32 %v2491, %v2558
        %v2575 = vmul.f32 %v2493, %v2559
        %v2576 = vmul.f32 %v2495, %v2560
        %v2577 = vmul.f32 %v2497, %v2561
        %2578 = vrot.lane.b32.xlu0 %v416, 48
        %v2579 = vpop.permute.xlu0 %2578
        %2580 = vrot.lane.b32.xlu0 %v419, 48
        %v2581 = vpop.permute.xlu0 %2580
        %v2585 = vsel %vm762, %v2562, 0
        %v2588 = vsel %vm762, %v2563, 0
        %2590 = vmatpush.msra.mxu0 0.0
        %2591 = vmatpush.msra.mxu0 0.0
        %2592 = vmatpush.msra.mxu0 0.0
        %2593 = vmatpush.msra.mxu0 0.0
        %2594 = vmatpush.msra.mxu0 0.0
        %2595 = vmatpush.msra.mxu0 0.0
        %2596 = vmatpush.msra.mxu0 0.0
        %2597 = vmatpush.msra.mxu0 0.0
        %2598 = vmatpush.msra.mxu0 0.0
        %2599 = vmatpush.msra.mxu0 0.0
        %2600 = vmatpush.msra.mxu0 0.0
        %2601 = vmatpush.msra.mxu0 0.0
        %2602 = vmatpush.msra.mxu0 0.0
        %2603 = vmatpush.msra.mxu0 0.0
        %2604 = vmatpush.msra.mxu0 %v2581
        %2605 = vmatpush.msra.mxu0 %v2579
        %2606 = vmatmul.f32.gmra.mxu0 %v2585
        %v2607 = vpop.f32.mrf.mxu0
        %v2608 = vadd.f32 0.0, %v2607
        %2609 = vmatmul.f32.gmra.mxu0 %v2588
        %v2610 = vpop.f32.mrf.mxu0
        %v2611 = vadd.f32 0.0, %v2610
        %2612 = vdwg.mxu0
        %2613 = vrot.lane.b32.xlu0 %v422, 48
        %v2614 = vpop.permute.xlu0 %2613
        %2615 = vrot.lane.b32.xlu0 %v425, 48
        %v2616 = vpop.permute.xlu0 %2615
        %v2620 = vsel %vm762, %v2564, 0
        %v2623 = vsel %vm762, %v2565, 0
        %2625 = vmatpush.msra.mxu0 0.0
        %2626 = vmatpush.msra.mxu0 0.0
        %2627 = vmatpush.msra.mxu0 0.0
        %2628 = vmatpush.msra.mxu0 0.0
        %2629 = vmatpush.msra.mxu0 0.0
        %2630 = vmatpush.msra.mxu0 0.0
        %2631 = vmatpush.msra.mxu0 0.0
        %2632 = vmatpush.msra.mxu0 0.0
        %2633 = vmatpush.msra.mxu0 0.0
        %2634 = vmatpush.msra.mxu0 0.0
        %2635 = vmatpush.msra.mxu0 0.0
        %2636 = vmatpush.msra.mxu0 0.0
        %2637 = vmatpush.msra.mxu0 0.0
        %2638 = vmatpush.msra.mxu0 0.0
        %2639 = vmatpush.msra.mxu0 %v2616
        %2640 = vmatpush.msra.mxu0 %v2614
        %2641 = vmatmul.f32.gmra.mxu0 %v2620
        %v2642 = vpop.f32.mrf.mxu0
        %v2643 = vadd.f32 0.0, %v2642
        %2644 = vmatmul.f32.gmra.mxu0 %v2623
        %v2645 = vpop.f32.mrf.mxu0
        %v2646 = vadd.f32 0.0, %v2645
        %2647 = vdwg.mxu0
        %2648 = vrot.lane.b32.xlu0 %v428, 48
        %v2649 = vpop.permute.xlu0 %2648
        %2650 = vrot.lane.b32.xlu0 %v431, 48
        %v2651 = vpop.permute.xlu0 %2650
        %v2655 = vsel %vm762, %v2566, 0
        %v2658 = vsel %vm762, %v2567, 0
        %2660 = vmatpush.msra.mxu0 0.0
        %2661 = vmatpush.msra.mxu0 0.0
        %2662 = vmatpush.msra.mxu0 0.0
        %2663 = vmatpush.msra.mxu0 0.0
        %2664 = vmatpush.msra.mxu0 0.0
        %2665 = vmatpush.msra.mxu0 0.0
        %2666 = vmatpush.msra.mxu0 0.0
        %2667 = vmatpush.msra.mxu0 0.0
        %2668 = vmatpush.msra.mxu0 0.0
        %2669 = vmatpush.msra.mxu0 0.0
        %2670 = vmatpush.msra.mxu0 0.0
        %2671 = vmatpush.msra.mxu0 0.0
        %2672 = vmatpush.msra.mxu0 0.0
        %2673 = vmatpush.msra.mxu0 0.0
        %2674 = vmatpush.msra.mxu0 %v2651
        %2675 = vmatpush.msra.mxu0 %v2649
        %2676 = vmatmul.f32.gmra.mxu0 %v2655
        %v2677 = vpop.f32.mrf.mxu0
        %v2678 = vadd.f32 0.0, %v2677
        %2679 = vmatmul.f32.gmra.mxu0 %v2658
        %v2680 = vpop.f32.mrf.mxu0
        %v2681 = vadd.f32 0.0, %v2680
        %2682 = vdwg.mxu0
        %2683 = vrot.lane.b32.xlu0 %v434, 48
        %v2684 = vpop.permute.xlu0 %2683
        %2685 = vrot.lane.b32.xlu0 %v437, 48
        %v2686 = vpop.permute.xlu0 %2685
        %v2690 = vsel %vm762, %v2568, 0
        %v2693 = vsel %vm762, %v2569, 0
        %2695 = vmatpush.msra.mxu0 0.0
        %2696 = vmatpush.msra.mxu0 0.0
        %2697 = vmatpush.msra.mxu0 0.0
        %2698 = vmatpush.msra.mxu0 0.0
        %2699 = vmatpush.msra.mxu0 0.0
        %2700 = vmatpush.msra.mxu0 0.0
        %2701 = vmatpush.msra.mxu0 0.0
        %2702 = vmatpush.msra.mxu0 0.0
        %2703 = vmatpush.msra.mxu0 0.0
        %2704 = vmatpush.msra.mxu0 0.0
        %2705 = vmatpush.msra.mxu0 0.0
        %2706 = vmatpush.msra.mxu0 0.0
        %2707 = vmatpush.msra.mxu0 0.0
        %2708 = vmatpush.msra.mxu0 0.0
        %2709 = vmatpush.msra.mxu0 %v2686
        %2710 = vmatpush.msra.mxu0 %v2684
        %2711 = vmatmul.f32.gmra.mxu0 %v2690
        %v2712 = vpop.f32.mrf.mxu0
        %v2713 = vadd.f32 0.0, %v2712
        %2714 = vmatmul.f32.gmra.mxu0 %v2693
        %v2715 = vpop.f32.mrf.mxu0
        %v2716 = vadd.f32 0.0, %v2715
        %2717 = vdwg.mxu0
        %2718 = vrot.lane.b32.xlu0 %v440, 48
        %v2719 = vpop.permute.xlu0 %2718
        %2720 = vrot.lane.b32.xlu0 %v443, 48
        %v2721 = vpop.permute.xlu0 %2720
        %v2725 = vsel %vm762, %v2570, 0
        %v2728 = vsel %vm762, %v2571, 0
        %2730 = vmatpush.msra.mxu0 0.0
        %2731 = vmatpush.msra.mxu0 0.0
        %2732 = vmatpush.msra.mxu0 0.0
        %2733 = vmatpush.msra.mxu0 0.0
        %2734 = vmatpush.msra.mxu0 0.0
        %2735 = vmatpush.msra.mxu0 0.0
        %2736 = vmatpush.msra.mxu0 0.0
        %2737 = vmatpush.msra.mxu0 0.0
        %2738 = vmatpush.msra.mxu0 0.0
        %2739 = vmatpush.msra.mxu0 0.0
        %2740 = vmatpush.msra.mxu0 0.0
        %2741 = vmatpush.msra.mxu0 0.0
        %2742 = vmatpush.msra.mxu0 0.0
        %2743 = vmatpush.msra.mxu0 0.0
        %2744 = vmatpush.msra.mxu0 %v2721
        %2745 = vmatpush.msra.mxu0 %v2719
        %2746 = vmatmul.f32.gmra.mxu0 %v2725
        %v2747 = vpop.f32.mrf.mxu0
        %v2748 = vadd.f32 0.0, %v2747
        %2749 = vmatmul.f32.gmra.mxu0 %v2728
        %v2750 = vpop.f32.mrf.mxu0
        %v2751 = vadd.f32 0.0, %v2750
        %2752 = vdwg.mxu0
        %2753 = vrot.lane.b32.xlu0 %v446, 48
        %v2754 = vpop.permute.xlu0 %2753
        %2755 = vrot.lane.b32.xlu0 %v449, 48
        %v2756 = vpop.permute.xlu0 %2755
        %v2760 = vsel %vm762, %v2572, 0
        %v2763 = vsel %vm762, %v2573, 0
        %2765 = vmatpush.msra.mxu0 0.0
        %2766 = vmatpush.msra.mxu0 0.0
        %2767 = vmatpush.msra.mxu0 0.0
        %2768 = vmatpush.msra.mxu0 0.0
        %2769 = vmatpush.msra.mxu0 0.0
        %2770 = vmatpush.msra.mxu0 0.0
        %2771 = vmatpush.msra.mxu0 0.0
        %2772 = vmatpush.msra.mxu0 0.0
        %2773 = vmatpush.msra.mxu0 0.0
        %2774 = vmatpush.msra.mxu0 0.0
        %2775 = vmatpush.msra.mxu0 0.0
        %2776 = vmatpush.msra.mxu0 0.0
        %2777 = vmatpush.msra.mxu0 0.0
        %2778 = vmatpush.msra.mxu0 0.0
        %2779 = vmatpush.msra.mxu0 %v2756
        %2780 = vmatpush.msra.mxu0 %v2754
        %2781 = vmatmul.f32.gmra.mxu0 %v2760
        %v2782 = vpop.f32.mrf.mxu0
        %v2783 = vadd.f32 0.0, %v2782
        %2784 = vmatmul.f32.gmra.mxu0 %v2763
        %v2785 = vpop.f32.mrf.mxu0
        %v2786 = vadd.f32 0.0, %v2785
        %2787 = vdwg.mxu0
        %2788 = vrot.lane.b32.xlu0 %v452, 48
        %v2789 = vpop.permute.xlu0 %2788
        %2790 = vrot.lane.b32.xlu0 %v455, 48
        %v2791 = vpop.permute.xlu0 %2790
        %v2795 = vsel %vm762, %v2574, 0
        %v2798 = vsel %vm762, %v2575, 0
        %2800 = vmatpush.msra.mxu0 0.0
        %2801 = vmatpush.msra.mxu0 0.0
        %2802 = vmatpush.msra.mxu0 0.0
        %2803 = vmatpush.msra.mxu0 0.0
        %2804 = vmatpush.msra.mxu0 0.0
        %2805 = vmatpush.msra.mxu0 0.0
        %2806 = vmatpush.msra.mxu0 0.0
        %2807 = vmatpush.msra.mxu0 0.0
        %2808 = vmatpush.msra.mxu0 0.0
        %2809 = vmatpush.msra.mxu0 0.0
        %2810 = vmatpush.msra.mxu0 0.0
        %2811 = vmatpush.msra.mxu0 0.0
        %2812 = vmatpush.msra.mxu0 0.0
        %2813 = vmatpush.msra.mxu0 0.0
        %2814 = vmatpush.msra.mxu0 %v2791
        %2815 = vmatpush.msra.mxu0 %v2789
        %2816 = vmatmul.f32.gmra.mxu0 %v2795
        %v2817 = vpop.f32.mrf.mxu0
        %v2818 = vadd.f32 0.0, %v2817
        %2819 = vmatmul.f32.gmra.mxu0 %v2798
        %v2820 = vpop.f32.mrf.mxu0
        %v2821 = vadd.f32 0.0, %v2820
        %2822 = vdwg.mxu0
        %2823 = vrot.lane.b32.xlu0 %v458, 48
        %v2824 = vpop.permute.xlu0 %2823
        %2825 = vrot.lane.b32.xlu0 %v461, 48
        %v2826 = vpop.permute.xlu0 %2825
        %v2830 = vsel %vm762, %v2576, 0
        %v2833 = vsel %vm762, %v2577, 0
        %2835 = vmatpush.msra.mxu0 0.0
        %2836 = vmatpush.msra.mxu0 0.0
        %2837 = vmatpush.msra.mxu0 0.0
        %2838 = vmatpush.msra.mxu0 0.0
        %2839 = vmatpush.msra.mxu0 0.0
        %2840 = vmatpush.msra.mxu0 0.0
        %2841 = vmatpush.msra.mxu0 0.0
        %2842 = vmatpush.msra.mxu0 0.0
        %2843 = vmatpush.msra.mxu0 0.0
        %2844 = vmatpush.msra.mxu0 0.0
        %2845 = vmatpush.msra.mxu0 0.0
        %2846 = vmatpush.msra.mxu0 0.0
        %2847 = vmatpush.msra.mxu0 0.0
        %2848 = vmatpush.msra.mxu0 0.0
        %2849 = vmatpush.msra.mxu0 %v2826
        %2850 = vmatpush.msra.mxu0 %v2824
        %2851 = vmatmul.f32.gmra.mxu0 %v2830
        %v2852 = vpop.f32.mrf.mxu0
        %v2853 = vadd.f32 0.0, %v2852
        %2854 = vmatmul.f32.gmra.mxu0 %v2833
        %v2855 = vpop.f32.mrf.mxu0
        %v2856 = vadd.f32 0.0, %v2855
        %2857 = vdwg.mxu0
        %2874 = vrot.lane.b32.xlu0 %v2608, 16
        %v2875 = vpop.permute.xlu0 %2874
        %2876 = vrot.lane.b32.xlu0 %v2611, 16
        %v2877 = vpop.permute.xlu0 %2876
        %2878 = vrot.lane.b32.xlu0 %v2643, 16
        %v2879 = vpop.permute.xlu0 %2878
        %2880 = vrot.lane.b32.xlu0 %v2646, 16
        %v2881 = vpop.permute.xlu0 %2880
        %2882 = vrot.lane.b32.xlu0 %v2678, 16
        %v2883 = vpop.permute.xlu0 %2882
        %2884 = vrot.lane.b32.xlu0 %v2681, 16
        %v2885 = vpop.permute.xlu0 %2884
        %2886 = vrot.lane.b32.xlu0 %v2713, 16
        %v2887 = vpop.permute.xlu0 %2886
        %2888 = vrot.lane.b32.xlu0 %v2716, 16
        %v2889 = vpop.permute.xlu0 %2888
        %2890 = vrot.lane.b32.xlu0 %v2748, 16
        %v2891 = vpop.permute.xlu0 %2890
        %2892 = vrot.lane.b32.xlu0 %v2751, 16
        %v2893 = vpop.permute.xlu0 %2892
        %2894 = vrot.lane.b32.xlu0 %v2783, 16
        %v2895 = vpop.permute.xlu0 %2894
        %2896 = vrot.lane.b32.xlu0 %v2786, 16
        %v2897 = vpop.permute.xlu0 %2896
        %2898 = vrot.lane.b32.xlu0 %v2818, 16
        %v2899 = vpop.permute.xlu0 %2898
        %2900 = vrot.lane.b32.xlu0 %v2821, 16
        %v2901 = vpop.permute.xlu0 %2900
        %2902 = vrot.lane.b32.xlu0 %v2853, 16
        %v2903 = vpop.permute.xlu0 %2902
        %2904 = vrot.lane.b32.xlu0 %v2856, 16
        %v2905 = vpop.permute.xlu0 %2904
        %vm2922 = vcmask 195712
        %2923 = vst.msk [vmem:[#allocation2] sm:$0xff] %vm2922, %v2875
        %2924 = vst.msk [vmem:[#allocation2 + $0x8] sm:$0xff] %vm2922, %v2877
        %2925 = vst.msk [vmem:[#allocation2 + $0x10] sm:$0xff] %vm2922, %v2879
        %2926 = vst.msk [vmem:[#allocation2 + $0x18] sm:$0xff] %vm2922, %v2881
        %2927 = vst.msk [vmem:[#allocation2 + $0x20] sm:$0xff] %vm2922, %v2883
        %2928 = vst.msk [vmem:[#allocation2 + $0x28] sm:$0xff] %vm2922, %v2885
        %2929 = vst.msk [vmem:[#allocation2 + $0x30] sm:$0xff] %vm2922, %v2887
        %2930 = vst.msk [vmem:[#allocation2 + $0x38] sm:$0xff] %vm2922, %v2889
        %2931 = vst.msk [vmem:[#allocation2 + $0x40] sm:$0xff] %vm2922, %v2891
        %2932 = vst.msk [vmem:[#allocation2 + $0x48] sm:$0xff] %vm2922, %v2893
        %2933 = vst.msk [vmem:[#allocation2 + $0x50] sm:$0xff] %vm2922, %v2895
        %2934 = vst.msk [vmem:[#allocation2 + $0x58] sm:$0xff] %vm2922, %v2897
        %2935 = vst.msk [vmem:[#allocation2 + $0x60] sm:$0xff] %vm2922, %v2899
        %2936 = vst.msk [vmem:[#allocation2 + $0x68] sm:$0xff] %vm2922, %v2901
        %2937 = vst.msk [vmem:[#allocation2 + $0x70] sm:$0xff] %vm2922, %v2903
        %2938 = vst.msk [vmem:[#allocation2 + $0x78] sm:$0xff] %vm2922, %v2905
        %s2939 = scalar_lea.vmem [#allocation9], 48
        %v2940 = vld [vmem:[%s2939] sm:$0xff]
        %v2941 = vld [vmem:[%s2939 + $0x8] sm:$0xff]
        %2942 = vrot.lane.b32.xlu0 %v416, 104
        %v2943 = vpop.permute.xlu0 %2942
        %2944 = vrot.lane.b32.xlu0 %v419, 104
        %v2945 = vpop.permute.xlu0 %2944
        %2946 = vrot.lane.b32.xlu0 %v416, 72
        %v2947 = vpop.permute.xlu0 %2946
        %2948 = vrot.lane.b32.xlu0 %v419, 72
        %v2949 = vpop.permute.xlu0 %2948
        %v2950 = vsel %vm471, %v2943, 0
        %v2952 = vsel %vm471, %v2945, 0
        %v2954 = vsel %vm471, %v2947, 0
        %v2956 = vsel %vm471, %v2949, 0
        %2958 = vmatpush.xpose.msra.mxu0 0.0
        %2959 = vmatpush.xpose.msra.mxu0 0.0
        %2960 = vmatpush.xpose.msra.mxu0 0.0
        %2961 = vmatpush.xpose.msra.mxu0 0.0
        %2962 = vmatpush.xpose.msra.mxu0 0.0
        %2963 = vmatpush.xpose.msra.mxu0 0.0
        %2964 = vmatpush.xpose.msra.mxu0 0.0
        %2965 = vmatpush.xpose.msra.mxu0 0.0
        %2966 = vmatpush.xpose.msra.mxu0 0.0
        %2967 = vmatpush.xpose.msra.mxu0 0.0
        %2968 = vmatpush.xpose.msra.mxu0 0.0
        %2969 = vmatpush.xpose.msra.mxu0 0.0
        %2970 = vmatpush.xpose.msra.mxu0 0.0
        %2971 = vmatpush.xpose.msra.mxu0 0.0
        %2972 = vmatpush.xpose.msra.mxu0 %v2956
        %2973 = vmatpush.xpose.msra.mxu0 %v2954
        %2974 = vmatmul.f32.gmra.mxu0 %v2950
        %v2975 = vpop.f32.mrf.mxu0
        %v2976 = vadd.f32 %v2940, %v2975
        %2977 = vmatmul.f32.gmra.mxu0 %v2952
        %v2978 = vpop.f32.mrf.mxu0
        %v2979 = vadd.f32 %v2941, %v2978
        %2980 = vdwg.mxu0
        %2981 = vrot.lane.b32.xlu0 %v422, 104
        %v2982 = vpop.permute.xlu0 %2981
        %2983 = vrot.lane.b32.xlu0 %v425, 104
        %v2984 = vpop.permute.xlu0 %2983
        %2985 = vrot.lane.b32.xlu0 %v422, 72
        %v2986 = vpop.permute.xlu0 %2985
        %2987 = vrot.lane.b32.xlu0 %v425, 72
        %v2988 = vpop.permute.xlu0 %2987
        %v2989 = vsel %vm471, %v2982, 0
        %v2991 = vsel %vm471, %v2984, 0
        %v2993 = vsel %vm471, %v2986, 0
        %v2995 = vsel %vm471, %v2988, 0
        %2997 = vmatpush.xpose.msra.mxu0 0.0
        %2998 = vmatpush.xpose.msra.mxu0 0.0
        %2999 = vmatpush.xpose.msra.mxu0 0.0
        %3000 = vmatpush.xpose.msra.mxu0 0.0
        %3001 = vmatpush.xpose.msra.mxu0 0.0
        %3002 = vmatpush.xpose.msra.mxu0 0.0
        %3003 = vmatpush.xpose.msra.mxu0 0.0
        %3004 = vmatpush.xpose.msra.mxu0 0.0
        %3005 = vmatpush.xpose.msra.mxu0 0.0
        %3006 = vmatpush.xpose.msra.mxu0 0.0
        %3007 = vmatpush.xpose.msra.mxu0 0.0
        %3008 = vmatpush.xpose.msra.mxu0 0.0
        %3009 = vmatpush.xpose.msra.mxu0 0.0
        %3010 = vmatpush.xpose.msra.mxu0 0.0
        %3011 = vmatpush.xpose.msra.mxu0 %v2995
        %3012 = vmatpush.xpose.msra.mxu0 %v2993
        %3013 = vmatmul.f32.gmra.mxu0 %v2989
        %v3014 = vpop.f32.mrf.mxu0
        %v3015 = vadd.f32 %v2940, %v3014
        %3016 = vmatmul.f32.gmra.mxu0 %v2991
        %v3017 = vpop.f32.mrf.mxu0
        %v3018 = vadd.f32 %v2941, %v3017
        %3019 = vdwg.mxu0
        %3020 = vrot.lane.b32.xlu0 %v428, 104
        %v3021 = vpop.permute.xlu0 %3020
        %3022 = vrot.lane.b32.xlu0 %v431, 104
        %v3023 = vpop.permute.xlu0 %3022
        %3024 = vrot.lane.b32.xlu0 %v428, 72
        %v3025 = vpop.permute.xlu0 %3024
        %3026 = vrot.lane.b32.xlu0 %v431, 72
        %v3027 = vpop.permute.xlu0 %3026
        %v3028 = vsel %vm471, %v3021, 0
        %v3030 = vsel %vm471, %v3023, 0
        %v3032 = vsel %vm471, %v3025, 0
        %v3034 = vsel %vm471, %v3027, 0
        %3036 = vmatpush.xpose.msra.mxu0 0.0
        %3037 = vmatpush.xpose.msra.mxu0 0.0
        %3038 = vmatpush.xpose.msra.mxu0 0.0
        %3039 = vmatpush.xpose.msra.mxu0 0.0
        %3040 = vmatpush.xpose.msra.mxu0 0.0
        %3041 = vmatpush.xpose.msra.mxu0 0.0
        %3042 = vmatpush.xpose.msra.mxu0 0.0
        %3043 = vmatpush.xpose.msra.mxu0 0.0
        %3044 = vmatpush.xpose.msra.mxu0 0.0
        %3045 = vmatpush.xpose.msra.mxu0 0.0
        %3046 = vmatpush.xpose.msra.mxu0 0.0
        %3047 = vmatpush.xpose.msra.mxu0 0.0
        %3048 = vmatpush.xpose.msra.mxu0 0.0
        %3049 = vmatpush.xpose.msra.mxu0 0.0
        %3050 = vmatpush.xpose.msra.mxu0 %v3034
        %3051 = vmatpush.xpose.msra.mxu0 %v3032
        %3052 = vmatmul.f32.gmra.mxu0 %v3028
        %v3053 = vpop.f32.mrf.mxu0
        %v3054 = vadd.f32 %v2940, %v3053
        %3055 = vmatmul.f32.gmra.mxu0 %v3030
        %v3056 = vpop.f32.mrf.mxu0
        %v3057 = vadd.f32 %v2941, %v3056
        %3058 = vdwg.mxu0
        %3059 = vrot.lane.b32.xlu0 %v434, 104
        %v3060 = vpop.permute.xlu0 %3059
        %3061 = vrot.lane.b32.xlu0 %v437, 104
        %v3062 = vpop.permute.xlu0 %3061
        %3063 = vrot.lane.b32.xlu0 %v434, 72
        %v3064 = vpop.permute.xlu0 %3063
        %3065 = vrot.lane.b32.xlu0 %v437, 72
        %v3066 = vpop.permute.xlu0 %3065
        %v3067 = vsel %vm471, %v3060, 0
        %v3069 = vsel %vm471, %v3062, 0
        %v3071 = vsel %vm471, %v3064, 0
        %v3073 = vsel %vm471, %v3066, 0
        %3075 = vmatpush.xpose.msra.mxu0 0.0
        %3076 = vmatpush.xpose.msra.mxu0 0.0
        %3077 = vmatpush.xpose.msra.mxu0 0.0
        %3078 = vmatpush.xpose.msra.mxu0 0.0
        %3079 = vmatpush.xpose.msra.mxu0 0.0
        %3080 = vmatpush.xpose.msra.mxu0 0.0
        %3081 = vmatpush.xpose.msra.mxu0 0.0
        %3082 = vmatpush.xpose.msra.mxu0 0.0
        %3083 = vmatpush.xpose.msra.mxu0 0.0
        %3084 = vmatpush.xpose.msra.mxu0 0.0
        %3085 = vmatpush.xpose.msra.mxu0 0.0
        %3086 = vmatpush.xpose.msra.mxu0 0.0
        %3087 = vmatpush.xpose.msra.mxu0 0.0
        %3088 = vmatpush.xpose.msra.mxu0 0.0
        %3089 = vmatpush.xpose.msra.mxu0 %v3073
        %3090 = vmatpush.xpose.msra.mxu0 %v3071
        %3091 = vmatmul.f32.gmra.mxu0 %v3067
        %v3092 = vpop.f32.mrf.mxu0
        %v3093 = vadd.f32 %v2940, %v3092
        %3094 = vmatmul.f32.gmra.mxu0 %v3069
        %v3095 = vpop.f32.mrf.mxu0
        %v3096 = vadd.f32 %v2941, %v3095
        %3097 = vdwg.mxu0
        %3098 = vrot.lane.b32.xlu0 %v440, 104
        %v3099 = vpop.permute.xlu0 %3098
        %3100 = vrot.lane.b32.xlu0 %v443, 104
        %v3101 = vpop.permute.xlu0 %3100
        %3102 = vrot.lane.b32.xlu0 %v440, 72
        %v3103 = vpop.permute.xlu0 %3102
        %3104 = vrot.lane.b32.xlu0 %v443, 72
        %v3105 = vpop.permute.xlu0 %3104
        %v3106 = vsel %vm471, %v3099, 0
        %v3108 = vsel %vm471, %v3101, 0
        %v3110 = vsel %vm471, %v3103, 0
        %v3112 = vsel %vm471, %v3105, 0
        %3114 = vmatpush.xpose.msra.mxu0 0.0
        %3115 = vmatpush.xpose.msra.mxu0 0.0
        %3116 = vmatpush.xpose.msra.mxu0 0.0
        %3117 = vmatpush.xpose.msra.mxu0 0.0
        %3118 = vmatpush.xpose.msra.mxu0 0.0
        %3119 = vmatpush.xpose.msra.mxu0 0.0
        %3120 = vmatpush.xpose.msra.mxu0 0.0
        %3121 = vmatpush.xpose.msra.mxu0 0.0
        %3122 = vmatpush.xpose.msra.mxu0 0.0
        %3123 = vmatpush.xpose.msra.mxu0 0.0
        %3124 = vmatpush.xpose.msra.mxu0 0.0
        %3125 = vmatpush.xpose.msra.mxu0 0.0
        %3126 = vmatpush.xpose.msra.mxu0 0.0
        %3127 = vmatpush.xpose.msra.mxu0 0.0
        %3128 = vmatpush.xpose.msra.mxu0 %v3112
        %3129 = vmatpush.xpose.msra.mxu0 %v3110
        %3130 = vmatmul.f32.gmra.mxu0 %v3106
        %v3131 = vpop.f32.mrf.mxu0
        %v3132 = vadd.f32 %v2940, %v3131
        %3133 = vmatmul.f32.gmra.mxu0 %v3108
        %v3134 = vpop.f32.mrf.mxu0
        %v3135 = vadd.f32 %v2941, %v3134
        %3136 = vdwg.mxu0
        %3137 = vrot.lane.b32.xlu0 %v446, 104
        %v3138 = vpop.permute.xlu0 %3137
        %3139 = vrot.lane.b32.xlu0 %v449, 104
        %v3140 = vpop.permute.xlu0 %3139
        %3141 = vrot.lane.b32.xlu0 %v446, 72
        %v3142 = vpop.permute.xlu0 %3141
        %3143 = vrot.lane.b32.xlu0 %v449, 72
        %v3144 = vpop.permute.xlu0 %3143
        %v3145 = vsel %vm471, %v3138, 0
        %v3147 = vsel %vm471, %v3140, 0
        %v3149 = vsel %vm471, %v3142, 0
        %v3151 = vsel %vm471, %v3144, 0
        %3153 = vmatpush.xpose.msra.mxu0 0.0
        %3154 = vmatpush.xpose.msra.mxu0 0.0
        %3155 = vmatpush.xpose.msra.mxu0 0.0
        %3156 = vmatpush.xpose.msra.mxu0 0.0
        %3157 = vmatpush.xpose.msra.mxu0 0.0
        %3158 = vmatpush.xpose.msra.mxu0 0.0
        %3159 = vmatpush.xpose.msra.mxu0 0.0
        %3160 = vmatpush.xpose.msra.mxu0 0.0
        %3161 = vmatpush.xpose.msra.mxu0 0.0
        %3162 = vmatpush.xpose.msra.mxu0 0.0
        %3163 = vmatpush.xpose.msra.mxu0 0.0
        %3164 = vmatpush.xpose.msra.mxu0 0.0
        %3165 = vmatpush.xpose.msra.mxu0 0.0
        %3166 = vmatpush.xpose.msra.mxu0 0.0
        %3167 = vmatpush.xpose.msra.mxu0 %v3151
        %3168 = vmatpush.xpose.msra.mxu0 %v3149
        %3169 = vmatmul.f32.gmra.mxu0 %v3145
        %v3170 = vpop.f32.mrf.mxu0
        %v3171 = vadd.f32 %v2940, %v3170
        %3172 = vmatmul.f32.gmra.mxu0 %v3147
        %v3173 = vpop.f32.mrf.mxu0
        %v3174 = vadd.f32 %v2941, %v3173
        %3175 = vdwg.mxu0
        %3176 = vrot.lane.b32.xlu0 %v452, 104
        %v3177 = vpop.permute.xlu0 %3176
        %3178 = vrot.lane.b32.xlu0 %v455, 104
        %v3179 = vpop.permute.xlu0 %3178
        %3180 = vrot.lane.b32.xlu0 %v452, 72
        %v3181 = vpop.permute.xlu0 %3180
        %3182 = vrot.lane.b32.xlu0 %v455, 72
        %v3183 = vpop.permute.xlu0 %3182
        %v3184 = vsel %vm471, %v3177, 0
        %v3186 = vsel %vm471, %v3179, 0
        %v3188 = vsel %vm471, %v3181, 0
        %v3190 = vsel %vm471, %v3183, 0
        %3192 = vmatpush.xpose.msra.mxu0 0.0
        %3193 = vmatpush.xpose.msra.mxu0 0.0
        %3194 = vmatpush.xpose.msra.mxu0 0.0
        %3195 = vmatpush.xpose.msra.mxu0 0.0
        %3196 = vmatpush.xpose.msra.mxu0 0.0
        %3197 = vmatpush.xpose.msra.mxu0 0.0
        %3198 = vmatpush.xpose.msra.mxu0 0.0
        %3199 = vmatpush.xpose.msra.mxu0 0.0
        %3200 = vmatpush.xpose.msra.mxu0 0.0
        %3201 = vmatpush.xpose.msra.mxu0 0.0
        %3202 = vmatpush.xpose.msra.mxu0 0.0
        %3203 = vmatpush.xpose.msra.mxu0 0.0
        %3204 = vmatpush.xpose.msra.mxu0 0.0
        %3205 = vmatpush.xpose.msra.mxu0 0.0
        %3206 = vmatpush.xpose.msra.mxu0 %v3190
        %3207 = vmatpush.xpose.msra.mxu0 %v3188
        %3208 = vmatmul.f32.gmra.mxu0 %v3184
        %v3209 = vpop.f32.mrf.mxu0
        %v3210 = vadd.f32 %v2940, %v3209
        %3211 = vmatmul.f32.gmra.mxu0 %v3186
        %v3212 = vpop.f32.mrf.mxu0
        %v3213 = vadd.f32 %v2941, %v3212
        %3214 = vdwg.mxu0
        %3215 = vrot.lane.b32.xlu0 %v458, 104
        %v3216 = vpop.permute.xlu0 %3215
        %3217 = vrot.lane.b32.xlu0 %v461, 104
        %v3218 = vpop.permute.xlu0 %3217
        %3219 = vrot.lane.b32.xlu0 %v458, 72
        %v3220 = vpop.permute.xlu0 %3219
        %3221 = vrot.lane.b32.xlu0 %v461, 72
        %v3222 = vpop.permute.xlu0 %3221
        %v3223 = vsel %vm471, %v3216, 0
        %v3225 = vsel %vm471, %v3218, 0
        %v3227 = vsel %vm471, %v3220, 0
        %v3229 = vsel %vm471, %v3222, 0
        %3231 = vmatpush.xpose.msra.mxu0 0.0
        %3232 = vmatpush.xpose.msra.mxu0 0.0
        %3233 = vmatpush.xpose.msra.mxu0 0.0
        %3234 = vmatpush.xpose.msra.mxu0 0.0
        %3235 = vmatpush.xpose.msra.mxu0 0.0
        %3236 = vmatpush.xpose.msra.mxu0 0.0
        %3237 = vmatpush.xpose.msra.mxu0 0.0
        %3238 = vmatpush.xpose.msra.mxu0 0.0
        %3239 = vmatpush.xpose.msra.mxu0 0.0
        %3240 = vmatpush.xpose.msra.mxu0 0.0
        %3241 = vmatpush.xpose.msra.mxu0 0.0
        %3242 = vmatpush.xpose.msra.mxu0 0.0
        %3243 = vmatpush.xpose.msra.mxu0 0.0
        %3244 = vmatpush.xpose.msra.mxu0 0.0
        %3245 = vmatpush.xpose.msra.mxu0 %v3229
        %3246 = vmatpush.xpose.msra.mxu0 %v3227
        %3247 = vmatmul.f32.gmra.mxu0 %v3223
        %v3248 = vpop.f32.mrf.mxu0
        %v3249 = vadd.f32 %v2940, %v3248
        %3250 = vmatmul.f32.gmra.mxu0 %v3225
        %v3251 = vpop.f32.mrf.mxu0
        %v3252 = vadd.f32 %v2941, %v3251
        %3253 = vdwg.mxu0
        %v3254 = vsel %vm762, %v2976, -inf
        %3255 = vmax.xlane.f32.xlu0 %v3254
        %v3256 = vpop.xlane.xlu0 %3255
        %v3257 = vsel %vm762, %v2979, -inf
        %3258 = vmax.xlane.f32.xlu0 %v3257
        %v3259 = vpop.xlane.xlu0 %3258
        %v3260 = vsel %vm762, %v3015, -inf
        %3261 = vmax.xlane.f32.xlu0 %v3260
        %v3262 = vpop.xlane.xlu0 %3261
        %v3263 = vsel %vm762, %v3018, -inf
        %3264 = vmax.xlane.f32.xlu0 %v3263
        %v3265 = vpop.xlane.xlu0 %3264
        %v3266 = vsel %vm762, %v3054, -inf
        %3267 = vmax.xlane.f32.xlu0 %v3266
        %v3268 = vpop.xlane.xlu0 %3267
        %v3269 = vsel %vm762, %v3057, -inf
        %3270 = vmax.xlane.f32.xlu0 %v3269
        %v3271 = vpop.xlane.xlu0 %3270
        %v3272 = vsel %vm762, %v3093, -inf
        %3273 = vmax.xlane.f32.xlu0 %v3272
        %v3274 = vpop.xlane.xlu0 %3273
        %v3275 = vsel %vm762, %v3096, -inf
        %3276 = vmax.xlane.f32.xlu0 %v3275
        %v3277 = vpop.xlane.xlu0 %3276
        %v3278 = vsel %vm762, %v3132, -inf
        %3279 = vmax.xlane.f32.xlu0 %v3278
        %v3280 = vpop.xlane.xlu0 %3279
        %v3281 = vsel %vm762, %v3135, -inf
        %3282 = vmax.xlane.f32.xlu0 %v3281
        %v3283 = vpop.xlane.xlu0 %3282
        %v3284 = vsel %vm762, %v3171, -inf
        %3285 = vmax.xlane.f32.xlu0 %v3284
        %v3286 = vpop.xlane.xlu0 %3285
        %v3287 = vsel %vm762, %v3174, -inf
        %3288 = vmax.xlane.f32.xlu0 %v3287
        %v3289 = vpop.xlane.xlu0 %3288
        %v3290 = vsel %vm762, %v3210, -inf
        %3291 = vmax.xlane.f32.xlu0 %v3290
        %v3292 = vpop.xlane.xlu0 %3291
        %v3293 = vsel %vm762, %v3213, -inf
        %3294 = vmax.xlane.f32.xlu0 %v3293
        %v3295 = vpop.xlane.xlu0 %3294
        %v3296 = vsel %vm762, %v3249, -inf
        %3297 = vmax.xlane.f32.xlu0 %v3296
        %v3298 = vpop.xlane.xlu0 %3297
        %v3299 = vsel %vm762, %v3252, -inf
        %3300 = vmax.xlane.f32.xlu0 %v3299
        %v3301 = vpop.xlane.xlu0 %3300
        %v3302 = vsub.f32 %v2976, %v3256
        %v3303 = vsub.f32 %v2979, %v3259
        %v3304 = vsub.f32 %v3015, %v3262
        %v3305 = vsub.f32 %v3018, %v3265
        %v3306 = vsub.f32 %v3054, %v3268
        %v3307 = vsub.f32 %v3057, %v3271
        %v3308 = vsub.f32 %v3093, %v3274
        %v3309 = vsub.f32 %v3096, %v3277
        %v3310 = vsub.f32 %v3132, %v3280
        %v3311 = vsub.f32 %v3135, %v3283
        %v3312 = vsub.f32 %v3171, %v3286
        %v3313 = vsub.f32 %v3174, %v3289
        %v3314 = vsub.f32 %v3210, %v3292
        %v3315 = vsub.f32 %v3213, %v3295
        %v3316 = vsub.f32 %v3249, %v3298
        %v3317 = vsub.f32 %v3252, %v3301
        %v3318 = vmul.f32 %v3302, 1.442695
        %v3319 = vpow.pop %v3318
        %v3320 = vmul.f32 %v3303, 1.442695
        %v3321 = vpow.pop %v3320
        %v3322 = vmul.f32 %v3304, 1.442695
        %v3323 = vpow.pop %v3322
        %v3324 = vmul.f32 %v3305, 1.442695
        %v3325 = vpow.pop %v3324
        %v3326 = vmul.f32 %v3306, 1.442695
        %v3327 = vpow.pop %v3326
        %v3328 = vmul.f32 %v3307, 1.442695
        %v3329 = vpow.pop %v3328
        %v3330 = vmul.f32 %v3308, 1.442695
        %v3331 = vpow.pop %v3330
        %v3332 = vmul.f32 %v3309, 1.442695
        %v3333 = vpow.pop %v3332
        %v3334 = vmul.f32 %v3310, 1.442695
        %v3335 = vpow.pop %v3334
        %v3336 = vmul.f32 %v3311, 1.442695
        %v3337 = vpow.pop %v3336
        %v3338 = vmul.f32 %v3312, 1.442695
        %v3339 = vpow.pop %v3338
        %v3340 = vmul.f32 %v3313, 1.442695
        %v3341 = vpow.pop %v3340
        %v3342 = vmul.f32 %v3314, 1.442695
        %v3343 = vpow.pop %v3342
        %v3344 = vmul.f32 %v3315, 1.442695
        %v3345 = vpow.pop %v3344
        %v3346 = vmul.f32 %v3316, 1.442695
        %v3347 = vpow.pop %v3346
        %v3348 = vmul.f32 %v3317, 1.442695
        %v3349 = vpow.pop %v3348
        %v3350 = vsel %vm762, %v3319, 0.0
        %3351 = vadd.xlane.f32.xlu0 %v3350
        %v3352 = vpop.xlane.xlu0 %3351
        %v3353 = vsel %vm762, %v3321, 0.0
        %3354 = vadd.xlane.f32.xlu0 %v3353
        %v3355 = vpop.xlane.xlu0 %3354
        %v3356 = vsel %vm762, %v3323, 0.0
        %3357 = vadd.xlane.f32.xlu0 %v3356
        %v3358 = vpop.xlane.xlu0 %3357
        %v3359 = vsel %vm762, %v3325, 0.0
        %3360 = vadd.xlane.f32.xlu0 %v3359
        %v3361 = vpop.xlane.xlu0 %3360
        %v3362 = vsel %vm762, %v3327, 0.0
        %3363 = vadd.xlane.f32.xlu0 %v3362
        %v3364 = vpop.xlane.xlu0 %3363
        %v3365 = vsel %vm762, %v3329, 0.0
        %3366 = vadd.xlane.f32.xlu0 %v3365
        %v3367 = vpop.xlane.xlu0 %3366
        %v3368 = vsel %vm762, %v3331, 0.0
        %3369 = vadd.xlane.f32.xlu0 %v3368
        %v3370 = vpop.xlane.xlu0 %3369
        %v3371 = vsel %vm762, %v3333, 0.0
        %3372 = vadd.xlane.f32.xlu0 %v3371
        %v3373 = vpop.xlane.xlu0 %3372
        %v3374 = vsel %vm762, %v3335, 0.0
        %3375 = vadd.xlane.f32.xlu0 %v3374
        %v3376 = vpop.xlane.xlu0 %3375
        %v3377 = vsel %vm762, %v3337, 0.0
        %3378 = vadd.xlane.f32.xlu0 %v3377
        %v3379 = vpop.xlane.xlu0 %3378
        %v3380 = vsel %vm762, %v3339, 0.0
        %3381 = vadd.xlane.f32.xlu0 %v3380
        %v3382 = vpop.xlane.xlu0 %3381
        %v3383 = vsel %vm762, %v3341, 0.0
        %3384 = vadd.xlane.f32.xlu0 %v3383
        %v3385 = vpop.xlane.xlu0 %3384
        %v3386 = vsel %vm762, %v3343, 0.0
        %3387 = vadd.xlane.f32.xlu0 %v3386
        %v3388 = vpop.xlane.xlu0 %3387
        %v3389 = vsel %vm762, %v3345, 0.0
        %3390 = vadd.xlane.f32.xlu0 %v3389
        %v3391 = vpop.xlane.xlu0 %3390
        %v3392 = vsel %vm762, %v3347, 0.0
        %3393 = vadd.xlane.f32.xlu0 %v3392
        %v3394 = vpop.xlane.xlu0 %3393
        %v3395 = vsel %vm762, %v3349, 0.0
        %3396 = vadd.xlane.f32.xlu0 %v3395
        %v3397 = vpop.xlane.xlu0 %3396
        %v3398 = vrcp.pop %v3352
        %v3399 = vrcp.pop %v3355
        %v3400 = vrcp.pop %v3358
        %v3401 = vrcp.pop %v3361
        %v3402 = vrcp.pop %v3364
        %v3403 = vrcp.pop %v3367
        %v3404 = vrcp.pop %v3370
        %v3405 = vrcp.pop %v3373
        %v3406 = vrcp.pop %v3376
        %v3407 = vrcp.pop %v3379
        %v3408 = vrcp.pop %v3382
        %v3409 = vrcp.pop %v3385
        %v3410 = vrcp.pop %v3388
        %v3411 = vrcp.pop %v3391
        %v3412 = vrcp.pop %v3394
        %v3413 = vrcp.pop %v3397
        %v3414 = vmul.f32 %v3319, %v3398
        %v3415 = vmul.f32 %v3321, %v3399
        %v3416 = vmul.f32 %v3323, %v3400
        %v3417 = vmul.f32 %v3325, %v3401
        %v3418 = vmul.f32 %v3327, %v3402
        %v3419 = vmul.f32 %v3329, %v3403
        %v3420 = vmul.f32 %v3331, %v3404
        %v3421 = vmul.f32 %v3333, %v3405
        %v3422 = vmul.f32 %v3335, %v3406
        %v3423 = vmul.f32 %v3337, %v3407
        %v3424 = vmul.f32 %v3339, %v3408
        %v3425 = vmul.f32 %v3341, %v3409
        %v3426 = vmul.f32 %v3343, %v3410
        %v3427 = vmul.f32 %v3345, %v3411
        %v3428 = vmul.f32 %v3347, %v3412
        %v3429 = vmul.f32 %v3349, %v3413
        %3430 = vrot.lane.b32.xlu0 %v416, 40
        %v3431 = vpop.permute.xlu0 %3430
        %3432 = vrot.lane.b32.xlu0 %v419, 40
        %v3433 = vpop.permute.xlu0 %3432
        %v3437 = vsel %vm762, %v3414, 0
        %v3440 = vsel %vm762, %v3415, 0
        %3442 = vmatpush.msra.mxu0 0.0
        %3443 = vmatpush.msra.mxu0 0.0
        %3444 = vmatpush.msra.mxu0 0.0
        %3445 = vmatpush.msra.mxu0 0.0
        %3446 = vmatpush.msra.mxu0 0.0
        %3447 = vmatpush.msra.mxu0 0.0
        %3448 = vmatpush.msra.mxu0 0.0
        %3449 = vmatpush.msra.mxu0 0.0
        %3450 = vmatpush.msra.mxu0 0.0
        %3451 = vmatpush.msra.mxu0 0.0
        %3452 = vmatpush.msra.mxu0 0.0
        %3453 = vmatpush.msra.mxu0 0.0
        %3454 = vmatpush.msra.mxu0 0.0
        %3455 = vmatpush.msra.mxu0 0.0
        %3456 = vmatpush.msra.mxu0 %v3433
        %3457 = vmatpush.msra.mxu0 %v3431
        %3458 = vmatmul.f32.gmra.mxu0 %v3437
        %v3459 = vpop.f32.mrf.mxu0
        %v3460 = vadd.f32 0.0, %v3459
        %3461 = vmatmul.f32.gmra.mxu0 %v3440
        %v3462 = vpop.f32.mrf.mxu0
        %v3463 = vadd.f32 0.0, %v3462
        %3464 = vdwg.mxu0
        %3465 = vrot.lane.b32.xlu0 %v422, 40
        %v3466 = vpop.permute.xlu0 %3465
        %3467 = vrot.lane.b32.xlu0 %v425, 40
        %v3468 = vpop.permute.xlu0 %3467
        %v3472 = vsel %vm762, %v3416, 0
        %v3475 = vsel %vm762, %v3417, 0
        %3477 = vmatpush.msra.mxu0 0.0
        %3478 = vmatpush.msra.mxu0 0.0
        %3479 = vmatpush.msra.mxu0 0.0
        %3480 = vmatpush.msra.mxu0 0.0
        %3481 = vmatpush.msra.mxu0 0.0
        %3482 = vmatpush.msra.mxu0 0.0
        %3483 = vmatpush.msra.mxu0 0.0
        %3484 = vmatpush.msra.mxu0 0.0
        %3485 = vmatpush.msra.mxu0 0.0
        %3486 = vmatpush.msra.mxu0 0.0
        %3487 = vmatpush.msra.mxu0 0.0
        %3488 = vmatpush.msra.mxu0 0.0
        %3489 = vmatpush.msra.mxu0 0.0
        %3490 = vmatpush.msra.mxu0 0.0
        %3491 = vmatpush.msra.mxu0 %v3468
        %3492 = vmatpush.msra.mxu0 %v3466
        %3493 = vmatmul.f32.gmra.mxu0 %v3472
        %v3494 = vpop.f32.mrf.mxu0
        %v3495 = vadd.f32 0.0, %v3494
        %3496 = vmatmul.f32.gmra.mxu0 %v3475
        %v3497 = vpop.f32.mrf.mxu0
        %v3498 = vadd.f32 0.0, %v3497
        %3499 = vdwg.mxu0
        %3500 = vrot.lane.b32.xlu0 %v428, 40
        %v3501 = vpop.permute.xlu0 %3500
        %3502 = vrot.lane.b32.xlu0 %v431, 40
        %v3503 = vpop.permute.xlu0 %3502
        %v3507 = vsel %vm762, %v3418, 0
        %v3510 = vsel %vm762, %v3419, 0
        %3512 = vmatpush.msra.mxu0 0.0
        %3513 = vmatpush.msra.mxu0 0.0
        %3514 = vmatpush.msra.mxu0 0.0
        %3515 = vmatpush.msra.mxu0 0.0
        %3516 = vmatpush.msra.mxu0 0.0
        %3517 = vmatpush.msra.mxu0 0.0
        %3518 = vmatpush.msra.mxu0 0.0
        %3519 = vmatpush.msra.mxu0 0.0
        %3520 = vmatpush.msra.mxu0 0.0
        %3521 = vmatpush.msra.mxu0 0.0
        %3522 = vmatpush.msra.mxu0 0.0
        %3523 = vmatpush.msra.mxu0 0.0
        %3524 = vmatpush.msra.mxu0 0.0
        %3525 = vmatpush.msra.mxu0 0.0
        %3526 = vmatpush.msra.mxu0 %v3503
        %3527 = vmatpush.msra.mxu0 %v3501
        %3528 = vmatmul.f32.gmra.mxu0 %v3507
        %v3529 = vpop.f32.mrf.mxu0
        %v3530 = vadd.f32 0.0, %v3529
        %3531 = vmatmul.f32.gmra.mxu0 %v3510
        %v3532 = vpop.f32.mrf.mxu0
        %v3533 = vadd.f32 0.0, %v3532
        %3534 = vdwg.mxu0
        %3535 = vrot.lane.b32.xlu0 %v434, 40
        %v3536 = vpop.permute.xlu0 %3535
        %3537 = vrot.lane.b32.xlu0 %v437, 40
        %v3538 = vpop.permute.xlu0 %3537
        %v3542 = vsel %vm762, %v3420, 0
        %v3545 = vsel %vm762, %v3421, 0
        %3547 = vmatpush.msra.mxu0 0.0
        %3548 = vmatpush.msra.mxu0 0.0
        %3549 = vmatpush.msra.mxu0 0.0
        %3550 = vmatpush.msra.mxu0 0.0
        %3551 = vmatpush.msra.mxu0 0.0
        %3552 = vmatpush.msra.mxu0 0.0
        %3553 = vmatpush.msra.mxu0 0.0
        %3554 = vmatpush.msra.mxu0 0.0
        %3555 = vmatpush.msra.mxu0 0.0
        %3556 = vmatpush.msra.mxu0 0.0
        %3557 = vmatpush.msra.mxu0 0.0
        %3558 = vmatpush.msra.mxu0 0.0
        %3559 = vmatpush.msra.mxu0 0.0
        %3560 = vmatpush.msra.mxu0 0.0
        %3561 = vmatpush.msra.mxu0 %v3538
        %3562 = vmatpush.msra.mxu0 %v3536
        %3563 = vmatmul.f32.gmra.mxu0 %v3542
        %v3564 = vpop.f32.mrf.mxu0
        %v3565 = vadd.f32 0.0, %v3564
        %3566 = vmatmul.f32.gmra.mxu0 %v3545
        %v3567 = vpop.f32.mrf.mxu0
        %v3568 = vadd.f32 0.0, %v3567
        %3569 = vdwg.mxu0
        %3570 = vrot.lane.b32.xlu0 %v440, 40
        %v3571 = vpop.permute.xlu0 %3570
        %3572 = vrot.lane.b32.xlu0 %v443, 40
        %v3573 = vpop.permute.xlu0 %3572
        %v3577 = vsel %vm762, %v3422, 0
        %v3580 = vsel %vm762, %v3423, 0
        %3582 = vmatpush.msra.mxu0 0.0
        %3583 = vmatpush.msra.mxu0 0.0
        %3584 = vmatpush.msra.mxu0 0.0
        %3585 = vmatpush.msra.mxu0 0.0
        %3586 = vmatpush.msra.mxu0 0.0
        %3587 = vmatpush.msra.mxu0 0.0
        %3588 = vmatpush.msra.mxu0 0.0
        %3589 = vmatpush.msra.mxu0 0.0
        %3590 = vmatpush.msra.mxu0 0.0
        %3591 = vmatpush.msra.mxu0 0.0
        %3592 = vmatpush.msra.mxu0 0.0
        %3593 = vmatpush.msra.mxu0 0.0
        %3594 = vmatpush.msra.mxu0 0.0
        %3595 = vmatpush.msra.mxu0 0.0
        %3596 = vmatpush.msra.mxu0 %v3573
        %3597 = vmatpush.msra.mxu0 %v3571
        %3598 = vmatmul.f32.gmra.mxu0 %v3577
        %v3599 = vpop.f32.mrf.mxu0
        %v3600 = vadd.f32 0.0, %v3599
        %3601 = vmatmul.f32.gmra.mxu0 %v3580
        %v3602 = vpop.f32.mrf.mxu0
        %v3603 = vadd.f32 0.0, %v3602
        %3604 = vdwg.mxu0
        %3605 = vrot.lane.b32.xlu0 %v446, 40
        %v3606 = vpop.permute.xlu0 %3605
        %3607 = vrot.lane.b32.xlu0 %v449, 40
        %v3608 = vpop.permute.xlu0 %3607
        %v3612 = vsel %vm762, %v3424, 0
        %v3615 = vsel %vm762, %v3425, 0
        %3617 = vmatpush.msra.mxu0 0.0
        %3618 = vmatpush.msra.mxu0 0.0
        %3619 = vmatpush.msra.mxu0 0.0
        %3620 = vmatpush.msra.mxu0 0.0
        %3621 = vmatpush.msra.mxu0 0.0
        %3622 = vmatpush.msra.mxu0 0.0
        %3623 = vmatpush.msra.mxu0 0.0
        %3624 = vmatpush.msra.mxu0 0.0
        %3625 = vmatpush.msra.mxu0 0.0
        %3626 = vmatpush.msra.mxu0 0.0
        %3627 = vmatpush.msra.mxu0 0.0
        %3628 = vmatpush.msra.mxu0 0.0
        %3629 = vmatpush.msra.mxu0 0.0
        %3630 = vmatpush.msra.mxu0 0.0
        %3631 = vmatpush.msra.mxu0 %v3608
        %3632 = vmatpush.msra.mxu0 %v3606
        %3633 = vmatmul.f32.gmra.mxu0 %v3612
        %v3634 = vpop.f32.mrf.mxu0
        %v3635 = vadd.f32 0.0, %v3634
        %3636 = vmatmul.f32.gmra.mxu0 %v3615
        %v3637 = vpop.f32.mrf.mxu0
        %v3638 = vadd.f32 0.0, %v3637
        %3639 = vdwg.mxu0
        %3640 = vrot.lane.b32.xlu0 %v452, 40
        %v3641 = vpop.permute.xlu0 %3640
        %3642 = vrot.lane.b32.xlu0 %v455, 40
        %v3643 = vpop.permute.xlu0 %3642
        %v3647 = vsel %vm762, %v3426, 0
        %v3650 = vsel %vm762, %v3427, 0
        %3652 = vmatpush.msra.mxu0 0.0
        %3653 = vmatpush.msra.mxu0 0.0
        %3654 = vmatpush.msra.mxu0 0.0
        %3655 = vmatpush.msra.mxu0 0.0
        %3656 = vmatpush.msra.mxu0 0.0
        %3657 = vmatpush.msra.mxu0 0.0
        %3658 = vmatpush.msra.mxu0 0.0
        %3659 = vmatpush.msra.mxu0 0.0
        %3660 = vmatpush.msra.mxu0 0.0
        %3661 = vmatpush.msra.mxu0 0.0
        %3662 = vmatpush.msra.mxu0 0.0
        %3663 = vmatpush.msra.mxu0 0.0
        %3664 = vmatpush.msra.mxu0 0.0
        %3665 = vmatpush.msra.mxu0 0.0
        %3666 = vmatpush.msra.mxu0 %v3643
        %3667 = vmatpush.msra.mxu0 %v3641
        %3668 = vmatmul.f32.gmra.mxu0 %v3647
        %v3669 = vpop.f32.mrf.mxu0
        %v3670 = vadd.f32 0.0, %v3669
        %3671 = vmatmul.f32.gmra.mxu0 %v3650
        %v3672 = vpop.f32.mrf.mxu0
        %v3673 = vadd.f32 0.0, %v3672
        %3674 = vdwg.mxu0
        %3675 = vrot.lane.b32.xlu0 %v458, 40
        %v3676 = vpop.permute.xlu0 %3675
        %3677 = vrot.lane.b32.xlu0 %v461, 40
        %v3678 = vpop.permute.xlu0 %3677
        %v3682 = vsel %vm762, %v3428, 0
        %v3685 = vsel %vm762, %v3429, 0
        %3687 = vmatpush.msra.mxu0 0.0
        %3688 = vmatpush.msra.mxu0 0.0
        %3689 = vmatpush.msra.mxu0 0.0
        %3690 = vmatpush.msra.mxu0 0.0
        %3691 = vmatpush.msra.mxu0 0.0
        %3692 = vmatpush.msra.mxu0 0.0
        %3693 = vmatpush.msra.mxu0 0.0
        %3694 = vmatpush.msra.mxu0 0.0
        %3695 = vmatpush.msra.mxu0 0.0
        %3696 = vmatpush.msra.mxu0 0.0
        %3697 = vmatpush.msra.mxu0 0.0
        %3698 = vmatpush.msra.mxu0 0.0
        %3699 = vmatpush.msra.mxu0 0.0
        %3700 = vmatpush.msra.mxu0 0.0
        %3701 = vmatpush.msra.mxu0 %v3678
        %3702 = vmatpush.msra.mxu0 %v3676
        %3703 = vmatmul.f32.gmra.mxu0 %v3682
        %v3704 = vpop.f32.mrf.mxu0
        %v3705 = vadd.f32 0.0, %v3704
        %3706 = vmatmul.f32.gmra.mxu0 %v3685
        %v3707 = vpop.f32.mrf.mxu0
        %v3708 = vadd.f32 0.0, %v3707
        %3709 = vdwg.mxu0
        %3726 = vrot.lane.b32.xlu0 %v3460, 24
        %v3727 = vpop.permute.xlu0 %3726
        %3728 = vrot.lane.b32.xlu0 %v3463, 24
        %v3729 = vpop.permute.xlu0 %3728
        %3730 = vrot.lane.b32.xlu0 %v3495, 24
        %v3731 = vpop.permute.xlu0 %3730
        %3732 = vrot.lane.b32.xlu0 %v3498, 24
        %v3733 = vpop.permute.xlu0 %3732
        %3734 = vrot.lane.b32.xlu0 %v3530, 24
        %v3735 = vpop.permute.xlu0 %3734
        %3736 = vrot.lane.b32.xlu0 %v3533, 24
        %v3737 = vpop.permute.xlu0 %3736
        %3738 = vrot.lane.b32.xlu0 %v3565, 24
        %v3739 = vpop.permute.xlu0 %3738
        %3740 = vrot.lane.b32.xlu0 %v3568, 24
        %v3741 = vpop.permute.xlu0 %3740
        %3742 = vrot.lane.b32.xlu0 %v3600, 24
        %v3743 = vpop.permute.xlu0 %3742
        %3744 = vrot.lane.b32.xlu0 %v3603, 24
        %v3745 = vpop.permute.xlu0 %3744
        %3746 = vrot.lane.b32.xlu0 %v3635, 24
        %v3747 = vpop.permute.xlu0 %3746
        %3748 = vrot.lane.b32.xlu0 %v3638, 24
        %v3749 = vpop.permute.xlu0 %3748
        %3750 = vrot.lane.b32.xlu0 %v3670, 24
        %v3751 = vpop.permute.xlu0 %3750
        %3752 = vrot.lane.b32.xlu0 %v3673, 24
        %v3753 = vpop.permute.xlu0 %3752
        %3754 = vrot.lane.b32.xlu0 %v3705, 24
        %v3755 = vpop.permute.xlu0 %3754
        %3756 = vrot.lane.b32.xlu0 %v3708, 24
        %v3757 = vpop.permute.xlu0 %3756
        %vm3774 = vcmask 261312
        %3775 = vst.msk [vmem:[#allocation2] sm:$0xff] %vm3774, %v3727
        %3776 = vst.msk [vmem:[#allocation2 + $0x8] sm:$0xff] %vm3774, %v3729
        %3777 = vst.msk [vmem:[#allocation2 + $0x10] sm:$0xff] %vm3774, %v3731
        %3778 = vst.msk [vmem:[#allocation2 + $0x18] sm:$0xff] %vm3774, %v3733
        %3779 = vst.msk [vmem:[#allocation2 + $0x20] sm:$0xff] %vm3774, %v3735
        %3780 = vst.msk [vmem:[#allocation2 + $0x28] sm:$0xff] %vm3774, %v3737
        %3781 = vst.msk [vmem:[#allocation2 + $0x30] sm:$0xff] %vm3774, %v3739
        %3782 = vst.msk [vmem:[#allocation2 + $0x38] sm:$0xff] %vm3774, %v3741
        %3783 = vst.msk [vmem:[#allocation2 + $0x40] sm:$0xff] %vm3774, %v3743
        %3784 = vst.msk [vmem:[#allocation2 + $0x48] sm:$0xff] %vm3774, %v3745
        %3785 = vst.msk [vmem:[#allocation2 + $0x50] sm:$0xff] %vm3774, %v3747
        %3786 = vst.msk [vmem:[#allocation2 + $0x58] sm:$0xff] %vm3774, %v3749
        %3787 = vst.msk [vmem:[#allocation2 + $0x60] sm:$0xff] %vm3774, %v3751
        %3788 = vst.msk [vmem:[#allocation2 + $0x68] sm:$0xff] %vm3774, %v3753
        %3789 = vst.msk [vmem:[#allocation2 + $0x70] sm:$0xff] %vm3774, %v3755
        %3790 = vst.msk [vmem:[#allocation2 + $0x78] sm:$0xff] %vm3774, %v3757
        %v3791 = vld [vmem:[#allocation2] sm:$0xff]
        %v3792 = vld [vmem:[#allocation2 + $0x8] sm:$0xff]
        %v3793 = vld [vmem:[#allocation2 + $0x10] sm:$0xff]
        %v3794 = vld [vmem:[#allocation2 + $0x18] sm:$0xff]
        %v3795 = vld [vmem:[#allocation2 + $0x20] sm:$0xff]
        %v3796 = vld [vmem:[#allocation2 + $0x28] sm:$0xff]
        %v3797 = vld [vmem:[#allocation2 + $0x30] sm:$0xff]
        %v3798 = vld [vmem:[#allocation2 + $0x38] sm:$0xff]
        %v3799 = vld [vmem:[#allocation2 + $0x40] sm:$0xff]
        %v3800 = vld [vmem:[#allocation2 + $0x48] sm:$0xff]
        %v3801 = vld [vmem:[#allocation2 + $0x50] sm:$0xff]
        %v3802 = vld [vmem:[#allocation2 + $0x58] sm:$0xff]
        %v3803 = vld [vmem:[#allocation2 + $0x60] sm:$0xff]
        %v3804 = vld [vmem:[#allocation2 + $0x68] sm:$0xff]
        %v3805 = vld [vmem:[#allocation2 + $0x70] sm:$0xff]
        %v3806 = vld [vmem:[#allocation2 + $0x78] sm:$0xff]
        %v3807 = vld [vmem:[#allocation8] sm:$0xff]
        %v3808 = vld [vmem:[#allocation8 + $0x8] sm:$0xff]
        %v3809 = vld [vmem:[#allocation8 + $0x10] sm:$0xff]
        %v3810 = vld [vmem:[#allocation8 + $0x18] sm:$0xff]
        %v3811 = vld [vmem:[%s4] sm:$0x1]
        %v3813 = vperm.slane %v3811, 0
        %v3816 = vsel %vm349, %v3791, 0
        %v3819 = vsel %vm349, %v3792, 0
        %v3822 = vsel %vm349, %v3793, 0
        %v3825 = vsel %vm349, %v3794, 0
        %v3828 = vsel %vm349, %v3795, 0
        %v3831 = vsel %vm349, %v3796, 0
        %v3834 = vsel %vm349, %v3797, 0
        %v3837 = vsel %vm349, %v3798, 0
        %v3840 = vsel %vm349, %v3799, 0
        %v3843 = vsel %vm349, %v3800, 0
        %v3846 = vsel %vm349, %v3801, 0
        %v3849 = vsel %vm349, %v3802, 0
        %v3852 = vsel %vm349, %v3803, 0
        %v3855 = vsel %vm349, %v3804, 0
        %v3858 = vsel %vm349, %v3805, 0
        %v3861 = vsel %vm349, %v3806, 0
        %3863 = vmatpush.msra.mxu0 0.0
        %3864 = vmatpush.msra.mxu0 0.0
        %3865 = vmatpush.msra.mxu0 0.0
        %3866 = vmatpush.msra.mxu0 0.0
        %3867 = vmatpush.msra.mxu0 0.0
        %3868 = vmatpush.msra.mxu0 0.0
        %3869 = vmatpush.msra.mxu0 0.0
        %3870 = vmatpush.msra.mxu0 0.0
        %3871 = vmatpush.msra.mxu0 0.0
        %3872 = vmatpush.msra.mxu0 0.0
        %3873 = vmatpush.msra.mxu0 0.0
        %3874 = vmatpush.msra.mxu0 0.0
        %3875 = vmatpush.msra.mxu0 %v3810
        %3876 = vmatpush.msra.mxu0 %v3809
        %3877 = vmatpush.msra.mxu0 %v3808
        %3878 = vmatpush.msra.mxu0 %v3807
        %3879 = vmatmul.f32.gmra.mxu0 %v3816
        %v3880 = vpop.f32.mrf.mxu0
        %v3881 = vadd.f32 %v3813, %v3880
        %3882 = vmatmul.f32.gmra.mxu0 %v3819
        %v3883 = vpop.f32.mrf.mxu0
        %v3884 = vadd.f32 %v3813, %v3883
        %3885 = vmatmul.f32.gmra.mxu0 %v3822
        %v3886 = vpop.f32.mrf.mxu0
        %v3887 = vadd.f32 %v3813, %v3886
        %3888 = vmatmul.f32.gmra.mxu0 %v3825
        %v3889 = vpop.f32.mrf.mxu0
        %v3890 = vadd.f32 %v3813, %v3889
        %3891 = vmatmul.f32.gmra.mxu0 %v3828
        %v3892 = vpop.f32.mrf.mxu0
        %v3893 = vadd.f32 %v3813, %v3892
        %3894 = vmatmul.f32.gmra.mxu0 %v3831
        %v3895 = vpop.f32.mrf.mxu0
        %v3896 = vadd.f32 %v3813, %v3895
        %3897 = vmatmul.f32.gmra.mxu0 %v3834
        %v3898 = vpop.f32.mrf.mxu0
        %v3899 = vadd.f32 %v3813, %v3898
        %3900 = vmatmul.f32.gmra.mxu0 %v3837
        %v3901 = vpop.f32.mrf.mxu0
        %v3902 = vadd.f32 %v3813, %v3901
        %3903 = vmatmul.f32.gmra.mxu0 %v3840
        %v3904 = vpop.f32.mrf.mxu0
        %v3905 = vadd.f32 %v3813, %v3904
        %3906 = vmatmul.f32.gmra.mxu0 %v3843
        %v3907 = vpop.f32.mrf.mxu0
        %v3908 = vadd.f32 %v3813, %v3907
        %3909 = vmatmul.f32.gmra.mxu0 %v3846
        %v3910 = vpop.f32.mrf.mxu0
        %v3911 = vadd.f32 %v3813, %v3910
        %3912 = vmatmul.f32.gmra.mxu0 %v3849
        %v3913 = vpop.f32.mrf.mxu0
        %v3914 = vadd.f32 %v3813, %v3913
        %3915 = vmatmul.f32.gmra.mxu0 %v3852
        %v3916 = vpop.f32.mrf.mxu0
        %v3917 = vadd.f32 %v3813, %v3916
        %3918 = vmatmul.f32.gmra.mxu0 %v3855
        %v3919 = vpop.f32.mrf.mxu0
        %v3920 = vadd.f32 %v3813, %v3919
        %3921 = vmatmul.f32.gmra.mxu0 %v3858
        %v3922 = vpop.f32.mrf.mxu0
        %v3923 = vadd.f32 %v3813, %v3922
        %3924 = vmatmul.f32.gmra.mxu0 %v3861
        %v3925 = vpop.f32.mrf.mxu0
        %v3926 = vadd.f32 %v3813, %v3925
        %3927 = vdwg.mxu0
        %3928 = vst.msk [vmem:[%s322] sm:$0xff] %vm349, %v3881
        %3929 = vst.msk [vmem:[%s322 + $0x8] sm:$0xff] %vm349, %v3884
        %3930 = vst.msk [vmem:[%s322 + $0x10] sm:$0xff] %vm349, %v3887
        %3931 = vst.msk [vmem:[%s322 + $0x18] sm:$0xff] %vm349, %v3890
        %3932 = vst.msk [vmem:[%s322 + $0x20] sm:$0xff] %vm349, %v3893
        %3933 = vst.msk [vmem:[%s322 + $0x28] sm:$0xff] %vm349, %v3896
        %3934 = vst.msk [vmem:[%s322 + $0x30] sm:$0xff] %vm349, %v3899
        %3935 = vst.msk [vmem:[%s322 + $0x38] sm:$0xff] %vm349, %v3902
        %3936 = vst.msk [vmem:[%s322 + $0x40] sm:$0xff] %vm349, %v3905
        %3937 = vst.msk [vmem:[%s322 + $0x48] sm:$0xff] %vm349, %v3908
        %3938 = vst.msk [vmem:[%s322 + $0x50] sm:$0xff] %vm349, %v3911
        %3939 = vst.msk [vmem:[%s322 + $0x58] sm:$0xff] %vm349, %v3914
        %3940 = vst.msk [vmem:[%s322 + $0x60] sm:$0xff] %vm349, %v3917
        %3941 = vst.msk [vmem:[%s322 + $0x68] sm:$0xff] %vm349, %v3920
        %3942 = vst.msk [vmem:[%s322 + $0x70] sm:$0xff] %vm349, %v3923
        %3943 = vst.msk [vmem:[%s322 + $0x78] sm:$0xff] %vm349, %v3926
        %s3944 = sand.u32 %s164, 1
        %s3945 = scalar_lea.sflag [#allocation5], %s3944
        %s3946 = sand.u32 %s164, 1
        %s3947 = smul.addr %s3946, 128
        %s3948 = scalar_lea.vmem [#allocation11], %s3947
        // Predicated region
        $region61: #{tpu_custom_call.1} parent=43 // pred_check
          %p3949 = pneg %p174
        $region62: #{tpu_custom_call.1} parent=43 // pred_check_branch
          %3951 = sbr.rel (%p3949) target = $region64
        $region63: #{tpu_custom_call.1} parent=43 // pred_region
          %s3952 = smul.u32 8, %s25
          %3954 = vsyncadd %s3945, 0
          %s3955 = smul.addr %s3952, 2
          %s3956 = smul.addr %s3955, 8
          %s3957 = scalar_lea.hbm %s6, %s3956
          %s3958 = sshll.u32 %s3948, 4
          %s3959 = int_to_ptr.vmem [resolvable:$true] %s3958
          %s3960 = sshll.u32 %s3957, 4
          %s3961 = int_to_ptr.hbm [resolvable:$true] %s3960
          %3966 = dma.vmem_to_hbm [thread:$0]  %s3959, 2048, %s3961, %s3945, 128, 128, 8
        $region64: #{tpu_custom_call.1} parent=43 // pred_fallthru
          _
      $region44: #{tpu_custom_call.1} parent=5 // pred_fallthru
        _
      %p3967 = scmp.le.s32.totalorder 2, %s20
      // Predicated region
      $region65: #{tpu_custom_call.1} parent=5 // pred_check
        %p3968 = pneg %p3967
      $region66: #{tpu_custom_call.1} parent=5 // pred_check_branch
        %3970 = sbr.rel (%p3968) target = $region68
      $region67: #{tpu_custom_call.1} parent=5 // pred_region
        %s3971 = ssub.s32 %s20, 2
        // Predicated region
        $region69: #{tpu_custom_call.1} parent=67 // pred_check
          %p3972 = pneg %p180
        $region70: #{tpu_custom_call.1} parent=67 // pred_check_branch
          %3974 = sbr.rel (%p3972) target = $region72
        $region71: #{tpu_custom_call.1} parent=67 // pred_region
          %s3975 = sand.u32 %s165, 1
          %s3976 = scalar_lea.sflag [#allocation5], %s3975
          %s3977 = sand.u32 %s165, 1
          %s3978 = smul.addr %s3977, 128
          %s3979 = scalar_lea.vmem [#allocation11], %s3978
          %3981 = dma.done %s3976, 2048
        $region72: #{tpu_custom_call.1} parent=67 // pred_fallthru
          _
      $region68: #{tpu_custom_call.1} parent=5 // pred_fallthru
        _
    $region6: #{tpu_custom_call.1} parent=1 // loop_footer
      %s24 = sadd.s32 1, %s20
    $region7: #{tpu_custom_call.1} parent=1 // loop_footer_branch
      %19 = sbr.rel target = $region3
    $region8: #{tpu_custom_call.1} parent=1 // loop_exit
      _
    %3982 = vsyncpa [#allocation4], 1
    %s3983 = scalar_lea.sflag [#allocation4], 1
    %3984 = vsyncpa %s3983, 1
    %3985 = vsyncpa [#allocation7], 1
    %3986 = vsyncpa [#allocation10], 1
    %3987 = vsyncpa [#allocation5], 1
    %s3988 = scalar_lea.sflag [#allocation5], 1
    %3989 = vsyncpa %s3988, 1

</llo_original>
